<compile_context>
chip_gen: v6e
topology: v6e:2x2x1
jax: 0.10.0
libtpu: 0.0.40
codegen_flags: <defaults>
</compile_context>

<pallas_src>
import math

import jax
import jax.numpy as jnp
from jax.experimental import pallas as pl
from jax.experimental.pallas import tpu as pltpu


# --------------------------------------------------------------------------------------
# small helpers
# --------------------------------------------------------------------------------------
def _full_spec(a):
    """Whole-array VMEM block, fetched once (constant index map)."""
    return pl.BlockSpec(a.shape, lambda *_: (0,) * a.ndim)


def _gru_cell(gi, gh, h, gs):
    """One GRU cell update, PyTorch gate order (r, z, n); gs = 128-aligned gate stride."""
    r = jax.nn.sigmoid(gi[:, :gs] + gh[:, :gs])
    z = jax.nn.sigmoid(gi[:, gs:2 * gs] + gh[:, gs:2 * gs])
    n = jnp.tanh(gi[:, 2 * gs:3 * gs] + r * gh[:, 2 * gs:3 * gs])
    return n + z * (h - n)            # == (1 - z) * n + z * h, one fewer VALU op per step


def _project(vals, w_refs, b_ref):
    """Chunk gate projection: sum_k vals[k] @ W_k + b (big MXU matmul, off the serial chain)."""
    acc = jnp.dot(vals[0], w_refs[0][...], preferred_element_type=jnp.float32)
    for s in range(1, len(vals)):
        acc = acc + jnp.dot(vals[s], w_refs[s][...], preferred_element_type=jnp.float32)
    return acc + b_ref[...]


def _largest_divisor_leq(n, target):
    """Largest divisor of n that is <= target (avoids the gcd tile-collapse cliff)."""
    d = min(n, max(1, target))
    while n % d:
        d -= 1
    return d


# --------------------------------------------------------------------------------------
# kernel 1: fused bidirectional GRU layer (projection + scan, full-sequence outputs).
#   2D time-major layout: row = t*Bp + b.  Grid step i: forward consumes chunk i, backward
#   consumes chunk N-1-i.  Hidden states carried in VMEM scratch; one block-diagonal
#   (Bp,2GP)x(2GP,6GP) recurrent matmul per step.
# --------------------------------------------------------------------------------------
def _make_bidir_kernel(num_in, tc, bp, gp):
    g3 = 3 * gp

    def kernel(*refs):
        k = 0
        in_f = refs[k:k + num_in]; k += num_in          # input streams, chunk i
        in_b = refs[k:k + num_in]; k += num_in          # input streams, chunk N-1-i
        w_f = refs[k:k + num_in]; k += num_in           # (width_k, 3GP) forward-dir gate weights
        w_b = refs[k:k + num_in]; k += num_in           # (width_k, 3GP) backward-dir gate weights
        (b_f, b_b, whh2, bhh2, out_f, out_b,
         h_f_scr, h_b_scr, gif_scr, gib_scr) = refs[k:]

        @pl.when(pl.program_id(0) == 0)
        def _init():
            h_f_scr[...] = jnp.zeros_like(h_f_scr)
            h_b_scr[...] = jnp.zeros_like(h_b_scr)

        # chunk gate pre-activations (gi never round-trips HBM)
        gif_scr[...] = _project([r[...].astype(jnp.float32) for r in in_f], w_f, b_f)
        gib_scr[...] = _project([r[...].astype(jnp.float32) for r in in_b], w_b, b_b)

        # loop-invariant bias broadcast hoisted out of the recurrent loop
        bhh2b = jnp.broadcast_to(bhh2[...], (bp, 2 * g3))

        unroll = 4 if tc % 4 == 0 else 1

        def step(si, carry):
            for j in range(unroll):
                t = si * unroll + j
                row_f = pl.multiple_of(t * bp, bp)                 # forward: local time t
                row_b = pl.multiple_of((tc - 1 - t) * bp, bp)      # backward: reversed local time
                h_f = h_f_scr[...]
                h_b = h_b_scr[...]
                # single fused recurrent matmul: [h_f | h_b] @ blockdiag(W_hh_f, W_hh_b)
                gh = jnp.dot(jnp.concatenate([h_f, h_b], axis=-1), whh2[...],
                             preferred_element_type=jnp.float32) + bhh2b
                new_f = _gru_cell(gif_scr[pl.ds(row_f, bp), :], gh[:, :g3], h_f, gp)
                new_b = _gru_cell(gib_scr[pl.ds(row_b, bp), :], gh[:, g3:], h_b, gp)
                h_f_scr[...] = new_f
                h_b_scr[...] = new_b
                out_f[pl.ds(row_f, bp), :] = new_f.astype(out_f.dtype)
                out_b[pl.ds(row_b, bp), :] = new_b.astype(out_b.dtype)
            return carry

        jax.lax.fori_loop(0, tc // unroll, step, 0)

    return kernel


def _bidir_layer(streams, p, *, t, bp, gp, tc, act_dtype, vmem_limit):
    n = t // tc
    rows = tc * bp
    num_in = len(streams)
    g3 = 3 * gp

    in_specs = ([pl.BlockSpec((rows, s.shape[1]), lambda i: (i, 0)) for s in streams]
                + [pl.BlockSpec((rows, s.shape[1]), lambda i: (n - 1 - i, 0)) for s in streams]
                + [_full_spec(w) for w in p["w_in_f"]]
                + [_full_spec(w) for w in p["w_in_b"]]
                + [_full_spec(p["b_in_f"]), _full_spec(p["b_in_b"]),
                   _full_spec(p["whh2"]), _full_spec(p["bhh2"])])

    out_specs = (pl.BlockSpec((rows, gp), lambda i: (i, 0)),
                 pl.BlockSpec((rows, gp), lambda i: (n - 1 - i, 0)))

    return pl.pallas_call(
        _make_bidir_kernel(num_in, tc, bp, gp),
        grid=(n,),
        out_shape=(jax.ShapeDtypeStruct((t * bp, gp), act_dtype),
                   jax.ShapeDtypeStruct((t * bp, gp), act_dtype)),
        in_specs=in_specs,
        out_specs=out_specs,
        scratch_shapes=[pltpu.VMEM((bp, gp), jnp.float32),       # forward hidden (carried)
                        pltpu.VMEM((bp, gp), jnp.float32),       # backward hidden (carried)
                        pltpu.VMEM((rows, g3), jnp.float32),     # fw gate pre-activations, chunk
                        pltpu.VMEM((rows, g3), jnp.float32)],    # bw gate pre-activations, chunk
        compiler_params=pltpu.CompilerParams(
            dimension_semantics=("arbitrary",),
            vmem_limit_bytes=vmem_limit),
    )(*(list(streams) + list(streams) + list(p["w_in_f"]) + list(p["w_in_b"])
        + [p["b_in_f"], p["b_in_b"], p["whh2"], p["bhh2"]]))


# --------------------------------------------------------------------------------------
# kernel 2: last GRU layer + fused classifier.
#   Only the forward direction runs over the full sequence; its gates are projected per chunk
#   inside the kernel.  out[:, -1, H:] (backward direction, h0 = 0) is ONE GRU step whose gates
#   are computed in the epilogue from the last timestep of the final chunk; the MLP classifier
#   runs right after.  Nothing of this layer's sequence output ever touches HBM.
# --------------------------------------------------------------------------------------
def _make_last_kernel(num_in, tc, bp, gp):
    g3 = 3 * gp

    def kernel(*refs):
        k = 0
        ins = refs[k:k + num_in]; k += num_in           # input streams, chunk i
        w_f = refs[k:k + num_in]; k += num_in           # forward-dir gate weights
        w_b = refs[k:k + num_in]; k += num_in           # backward-dir gate weights (epilogue only)
        (b_f, b_b, whh, bhh_f, bhh_b, w1f, w1b, b1, w2, b2,
         logits, h_scr, gif_scr) = refs[k:]

        i = pl.program_id(0)

        @pl.when(i == 0)
        def _init():
            h_scr[...] = jnp.zeros_like(h_scr)
            logits[...] = jnp.zeros_like(logits)

        # forward-direction gates only (backward gates for the whole sequence are never needed)
        gif_scr[...] = _project([r[...].astype(jnp.float32) for r in ins], w_f, b_f)

        bhhfb = jnp.broadcast_to(bhh_f[...], (bp, g3))
        unroll = 4 if tc % 4 == 0 else 1

        def step(si, carry):
            for j in range(unroll):
                t = si * unroll + j
                row = pl.multiple_of(t * bp, bp)
                h = h_scr[...]
                gh = jnp.dot(h, whh[...], preferred_element_type=jnp.float32) + bhhfb
                h_scr[...] = _gru_cell(gif_scr[pl.ds(row, bp), :], gh, h, gp)
            return carry

        jax.lax.fori_loop(0, tc // unroll, step, 0)

        @pl.when(i == pl.num_programs(0) - 1)
        def _epilogue():
            # single backward-direction step at t = T-1 (h0 = 0  =>  W_hh @ h0 = 0)
            row_last = (tc - 1) * bp
            gi_b = _project([r[pl.ds(row_last, bp), :].astype(jnp.float32) for r in ins],
                            w_b, b_b)
            gh_b = jnp.broadcast_to(bhh_b[...], (bp, g3))
            h_bw = _gru_cell(gi_b, gh_b, jnp.zeros((bp, gp), jnp.float32), gp)
            h_fw = h_scr[...]
            # fused MLP classifier (Dropout is identity at inference)
            hid = (jnp.dot(h_fw, w1f[...], preferred_element_type=jnp.float32)
                   + jnp.dot(h_bw, w1b[...], preferred_element_type=jnp.float32)
                   + b1[...])
            hid = jnp.maximum(hid, 0.0)
            logits[...] = (jnp.dot(hid, w2[...], preferred_element_type=jnp.float32)
                           + b2[...]).astype(logits.dtype)

    return kernel


def _last_layer_classifier(streams, p, cls, *, t, bp, gp, tc, vmem_limit):
    n = t // tc
    rows = tc * bp
    num_in = len(streams)
    w1f, w1b, b1, w2, b2 = cls
    num_classes = w2.shape[1]

    in_specs = ([pl.BlockSpec((rows, s.shape[1]), lambda i: (i, 0)) for s in streams]
                + [_full_spec(w) for w in p["w_in_f"]]
                + [_full_spec(w) for w in p["w_in_b"]]
                + [_full_spec(p["b_in_f"]), _full_spec(p["b_in_b"]),
                   _full_spec(p["whh_f"]), _full_spec(p["bhh_f"]), _full_spec(p["bhh_b"]),
                   _full_spec(w1f), _full_spec(w1b), _full_spec(b1),
                   _full_spec(w2), _full_spec(b2)])

    return pl.pallas_call(
        _make_last_kernel(num_in, tc, bp, gp),
        grid=(n,),
        out_shape=jax.ShapeDtypeStruct((bp, num_classes), jnp.float32),
        in_specs=in_specs,
        out_specs=pl.BlockSpec((bp, num_classes), lambda i: (0, 0)),
        scratch_shapes=[pltpu.VMEM((bp, gp), jnp.float32),        # forward hidden (carried)
                        pltpu.VMEM((rows, 3 * gp), jnp.float32)], # fw gate pre-activations, chunk
        compiler_params=pltpu.CompilerParams(
            dimension_semantics=("arbitrary",),
            vmem_limit_bytes=vmem_limit),
    )(*(list(streams) + list(p["w_in_f"]) + list(p["w_in_b"])
        + [p["b_in_f"], p["b_in_b"], p["whh_f"], p["bhh_f"], p["bhh_b"],
           w1f, w1b, b1, w2, b2]))


# --------------------------------------------------------------------------------------
# parameter init + packing (pre-transposed / gate-padded once, not per forward)
# Zero-padding invariant (load-bearing): pad lanes/rows of every packed weight and bias are
# exactly 0 so pad lanes of the hidden state stay exactly 0 through the recursion.
# --------------------------------------------------------------------------------------
def _pad_gate_cols(w, h, gp):
    """(rows, 3H) -> (rows, 3*GP): gate g occupies lanes [g*GP, g*GP+H), rest zero."""
    rows = w.shape[0]
    out = jnp.zeros((rows, 3 * gp), w.dtype)
    for g in range(3):
        out = out.at[:, g * gp:g * gp + h].set(w[:, g * h:(g + 1) * h])
    return out


def _pad_rows(w, rows_to):
    return jnp.zeros((rows_to, w.shape[1]), w.dtype).at[:w.shape[0], :].set(w)


def _pack_layer(dir_fw, dir_bw, layer, h, gp):
    wih_f, whh_f, bih_f, bhh_f = dir_fw
    wih_b, whh_b, bih_b, bhh_b = dir_bw
    g3 = 3 * gp

    whh_f_p = _pad_rows(_pad_gate_cols(whh_f.T, h, gp), gp)      # (GP, 3GP)
    whh_b_p = _pad_rows(_pad_gate_cols(whh_b.T, h, gp), gp)
    bhh_f_p = _pad_gate_cols(bhh_f.reshape(1, -1), h, gp)        # (1, 3GP)
    bhh_b_p = _pad_gate_cols(bhh_b.reshape(1, -1), h, gp)

    # block-diagonal fused recurrent weight: one (Bp,2GP)x(2GP,6GP) matmul per step
    whh2 = jnp.zeros((2 * gp, 2 * g3), jnp.float32)
    whh2 = whh2.at[:gp, :g3].set(whh_f_p).at[gp:, g3:].set(whh_b_p)
    bhh2 = jnp.concatenate([bhh_f_p, bhh_b_p], axis=1)           # (1, 6GP)

    out = {
        "whh2": whh2, "bhh2": bhh2,
        "whh_f": whh_f_p, "bhh_f": bhh_f_p, "bhh_b": bhh_b_p,
        "b_in_f": _pad_gate_cols(bih_f.reshape(1, -1), h, gp),
        "b_in_b": _pad_gate_cols(bih_b.reshape(1, -1), h, gp),
    }
    if layer == 0:
        # one raw-feature input stream; both directions read the same input
        out["w_in_f"] = [_pad_gate_cols(wih_f.T, h, gp)]          # [(D, 3GP)]
        out["w_in_b"] = [_pad_gate_cols(wih_b.T, h, gp)]
    else:
        # layer input is the pair of GP-padded streams (prev_fw, prev_bw): split W_ih by its
        # from-fw / from-bw rows so the feature concat is never materialized.
        wtf = _pad_gate_cols(wih_f.T, h, gp)                      # (2H, 3GP)
        wtb = _pad_gate_cols(wih_b.T, h, gp)
        out["w_in_f"] = [_pad_rows(wtf[:h], gp), _pad_rows(wtf[h:2 * h], gp)]
        out["w_in_b"] = [_pad_rows(wtb[:h], gp), _pad_rows(wtb[h:2 * h], gp)]
    return out


def init_params(key, input_size=20, hidden_size=32, num_layers=2,
                bidirectional=True, num_classes=2, act_dtype=jnp.float32):
    """PyTorch-style uniform(-1/sqrt(fan), 1/sqrt(fan)) init, packed for the kernels.

    act_dtype: storage dtype of the inter-layer fw/bw sequence streams (opt-in bf16 knob;
    default float32 for strict parity with the PyTorch reference)."""
    assert bidirectional, "Pallas path implements the module default bidirectional=True."
    assert num_layers >= 2, "Pallas path implements the module default num_layers >= 2."
    h = hidden_size
    gp = ((h + 127) // 128) * 128      # 128-aligned gate stride / padded hidden width
    kg = 1.0 / math.sqrt(h)

    def u(k, shape, bound):
        return jax.random.uniform(k, shape, jnp.float32, -bound, bound)

    layers = []
    for layer in range(num_layers):
        d_in = input_size if layer == 0 else 2 * h
        dirs = []
        for _ in range(2):
            key, k1, k2, k3, k4 = jax.random.split(key, 5)
            dirs.append((u(k1, (3 * h, d_in), kg), u(k2, (3 * h, h), kg),
                         u(k3, (3 * h,), kg), u(k4, (3 * h,), kg)))
        layers.append(_pack_layer(dirs[0], dirs[1], layer, h, gp))

    key, k1, k2, k3, k4 = jax.random.split(key, 5)
    kw1 = 1.0 / math.sqrt(2 * h)
    kw2 = 1.0 / math.sqrt(64)
    w1, b1 = u(k1, (64, 2 * h), kw1), u(k2, (64,), kw1)
    w2, b2 = u(k3, (num_classes, 64), kw2), u(k4, (num_classes,), kw2)
    w1t = w1.T
    cls = (_pad_rows(w1t[:h], gp),            # applied to the forward final hidden
           _pad_rows(w1t[h:2 * h], gp),       # applied to the backward hidden at t = T-1
           b1.reshape(1, -1), w2.T, b2.reshape(1, -1))

    return {"hidden_size": h, "gp": gp, "num_layers": num_layers,
            "layers": layers, "cls": cls, "act_dtype": act_dtype}


# --------------------------------------------------------------------------------------
# model forward (eval mode)
# --------------------------------------------------------------------------------------
def rnn_model_forward(x, params):
    if x.ndim == 2:
        x = x.reshape(x.shape[0], 4096, 20)    # same reshape the PyTorch forward does
    batch, t, d_in = x.shape
    gp = params["gp"]
    num_layers = params["num_layers"]
    act_dtype = params["act_dtype"]

    bp = ((batch + 7) // 8) * 8                            # sublane-pad the batch
    # ~2048 rows (tc*Bp) per grid step: few grid steps, long contiguous DMAs, and the per-step
    # working set (~25 MiB at T=4096) stays under v7x's 64 MiB VMEM; v5e/v6e have 2x headroom.
    tc = _largest_divisor_leq(t, max(1, 2048 // bp))
    vmem_limit = 40 * 1024 * 1024

    xt = jnp.transpose(x.astype(jnp.float32), (1, 0, 2))   # (T, B, D) time-major
    if bp != batch:
        xt = jnp.pad(xt, ((0, 0), (0, bp - batch), (0, 0)))
    streams = [xt.reshape(t * bp, d_in)]                    # 2D layout: row = t*Bp + b

    for layer in range(num_layers - 1):
        p = params["layers"][layer]
        fw, bw = _bidir_layer(streams, p, t=t, bp=bp, gp=gp, tc=tc,
                              act_dtype=act_dtype, vmem_limit=vmem_limit)
        streams = [fw, bw]

    p = params["layers"][num_layers - 1]
    logits = _last_layer_classifier(streams, p, params["cls"],
                                    t=t, bp=bp, gp=gp, tc=tc, vmem_limit=vmem_limit)
    return logits[:batch]


if __name__ == "__main__":
    B, T, D_IN = 2, 8, 20
    HIDDEN, LAYERS, NUM_CLASSES = 32, 2, 2

    key = jax.random.PRNGKey(0)
    key, kx, kp = jax.random.split(key, 3)
    x = jax.random.normal(kx, (B, T, D_IN), dtype=jnp.float32)
    params = init_params(kp, input_size=D_IN, hidden_size=HIDDEN,
                         num_layers=LAYERS, bidirectional=True, num_classes=NUM_CLASSES)

    logits = rnn_model_forward(x, params)
    jax.block_until_ready(logits)
    assert logits.shape == (B, NUM_CLASSES)
    print("KERNEL_OK")
</pallas_src>

<mosaic_0001>
module attributes {stable_mosaic.version = 11 : i64} {
  func.func @kernel(%arg0: i32, %arg1: memref<64x20xf32, #tpu.memory_space<vmem>>, %arg2: memref<64x20xf32, #tpu.memory_space<vmem>>, %arg3: memref<20x384xf32, #tpu.memory_space<vmem>>, %arg4: memref<20x384xf32, #tpu.memory_space<vmem>>, %arg5: memref<1x384xf32, #tpu.memory_space<vmem>>, %arg6: memref<1x384xf32, #tpu.memory_space<vmem>>, %arg7: memref<256x768xf32, #tpu.memory_space<vmem>>, %arg8: memref<1x768xf32, #tpu.memory_space<vmem>>, %arg9: memref<64x128xf32, #tpu.memory_space<vmem>>, %arg10: memref<64x128xf32, #tpu.memory_space<vmem>>, %arg11: memref<8x128xf32, #tpu.memory_space<vmem>>, %arg12: memref<8x128xf32, #tpu.memory_space<vmem>>, %arg13: memref<64x384xf32, #tpu.memory_space<vmem>>, %arg14: memref<64x384xf32, #tpu.memory_space<vmem>>) attributes {dimension_semantics = [#tpu.dimension_semantics<arbitrary>], iteration_bounds = array<i64: 1>, scalar_prefetch = 0 : i64, scratch_operands = 4 : i64, tpu.core_type = #tpu.core_type<tc>, window_params = [{transform_indices = @transform_0, window_bounds = array<i64: 64, 20>}, {transform_indices = @transform_1, window_bounds = array<i64: 64, 20>}, {pipeline_mode = #tpu.pipeline_mode<synchronous>, transform_indices = @transform_2, window_bounds = array<i64: 20, 384>}, {pipeline_mode = #tpu.pipeline_mode<synchronous>, transform_indices = @transform_3, window_bounds = array<i64: 20, 384>}, {pipeline_mode = #tpu.pipeline_mode<synchronous>, transform_indices = @transform_4, window_bounds = array<i64: 1, 384>}, {pipeline_mode = #tpu.pipeline_mode<synchronous>, transform_indices = @transform_5, window_bounds = array<i64: 1, 384>}, {pipeline_mode = #tpu.pipeline_mode<synchronous>, transform_indices = @transform_6, window_bounds = array<i64: 256, 768>}, {pipeline_mode = #tpu.pipeline_mode<synchronous>, transform_indices = @transform_7, window_bounds = array<i64: 1, 768>}, {transform_indices = @transform_8, window_bounds = array<i64: 64, 128>}, {transform_indices = @transform_9, window_bounds = array<i64: 64, 128>}]} {
    %c0_i32 = arith.constant 0 : i32
    %0 = arith.cmpi eq, %arg0, %c0_i32 : i32
    %1 = arith.extui %0 : i1 to i32
    %c0_i32_0 = arith.constant 0 : i32
    %2 = arith.cmpi ne, %1, %c0_i32_0 : i32
    scf.if %2 {
      %cst_21 = arith.constant 0.000000e+00 : f32
      %21 = vector.broadcast %cst_21 : f32 to vector<8x128xf32>
      %c0_22 = arith.constant 0 : index
      %c0_23 = arith.constant 0 : index
      %22 = vector.load %arg11[%c0_22, %c0_23] : memref<8x128xf32, #tpu.memory_space<vmem>>, vector<8x128xf32>
      tpu.vector_store %arg11[%c0_22, %c0_23], %21 {strides = array<i32>} : memref<8x128xf32, #tpu.memory_space<vmem>>, vector<8x128xf32>,
      %cst_24 = arith.constant 0.000000e+00 : f32
      %23 = vector.broadcast %cst_24 : f32 to vector<8x128xf32>
      %c0_25 = arith.constant 0 : index
      %c0_26 = arith.constant 0 : index
      %24 = vector.load %arg12[%c0_25, %c0_26] : memref<8x128xf32, #tpu.memory_space<vmem>>, vector<8x128xf32>
      tpu.vector_store %arg12[%c0_25, %c0_26], %23 {strides = array<i32>} : memref<8x128xf32, #tpu.memory_space<vmem>>, vector<8x128xf32>,
    } else {
    }
    %c0 = arith.constant 0 : index
    %c0_1 = arith.constant 0 : index
    %3 = vector.load %arg1[%c0, %c0_1] : memref<64x20xf32, #tpu.memory_space<vmem>>, vector<64x20xf32>
    %c0_2 = arith.constant 0 : index
    %c0_3 = arith.constant 0 : index
    %4 = vector.load %arg3[%c0_2, %c0_3] : memref<20x384xf32, #tpu.memory_space<vmem>>, vector<20x384xf32>
    %cst = arith.constant dense<0.000000e+00> : vector<64x384xf32>
    %5 = tpu.matmul %3, %4, %cst {dimension_numbers = #tpu.dot_dimension_numbers<[1], [0], [0], [1], [0, 0, 1, 1], [], []>} : vector<64x20xf32>, vector<20x384xf32>, vector<64x384xf32> -> vector<64x384xf32>
    %c0_4 = arith.constant 0 : index
    %c0_5 = arith.constant 0 : index
    %6 = vector.load %arg5[%c0_4, %c0_5] : memref<1x384xf32, #tpu.memory_space<vmem>>, vector<1x384xf32>
    %7 = vector.broadcast %6 : vector<1x384xf32> to vector<64x384xf32>
    %8 = arith.addf %5, %7 : vector<64x384xf32>
    %c0_6 = arith.constant 0 : index
    %c0_7 = arith.constant 0 : index
    %9 = vector.load %arg13[%c0_6, %c0_7] : memref<64x384xf32, #tpu.memory_space<vmem>>, vector<64x384xf32>
    tpu.vector_store %arg13[%c0_6, %c0_7], %8 {strides = array<i32>} : memref<64x384xf32, #tpu.memory_space<vmem>>, vector<64x384xf32>,
    %c0_8 = arith.constant 0 : index
    %c0_9 = arith.constant 0 : index
    %10 = vector.load %arg2[%c0_8, %c0_9] : memref<64x20xf32, #tpu.memory_space<vmem>>, vector<64x20xf32>
    %c0_10 = arith.constant 0 : index
    %c0_11 = arith.constant 0 : index
    %11 = vector.load %arg4[%c0_10, %c0_11] : memref<20x384xf32, #tpu.memory_space<vmem>>, vector<20x384xf32>
    %cst_12 = arith.constant dense<0.000000e+00> : vector<64x384xf32>
    %12 = tpu.matmul %10, %11, %cst_12 {dimension_numbers = #tpu.dot_dimension_numbers<[1], [0], [0], [1], [0, 0, 1, 1], [], []>} : vector<64x20xf32>, vector<20x384xf32>, vector<64x384xf32> -> vector<64x384xf32>
    %c0_13 = arith.constant 0 : index
    %c0_14 = arith.constant 0 : index
    %13 = vector.load %arg6[%c0_13, %c0_14] : memref<1x384xf32, #tpu.memory_space<vmem>>, vector<1x384xf32>
    %14 = vector.broadcast %13 : vector<1x384xf32> to vector<64x384xf32>
    %15 = arith.addf %12, %14 : vector<64x384xf32>
    %c0_15 = arith.constant 0 : index
    %c0_16 = arith.constant 0 : index
    %16 = vector.load %arg14[%c0_15, %c0_16] : memref<64x384xf32, #tpu.memory_space<vmem>>, vector<64x384xf32>
    tpu.vector_store %arg14[%c0_15, %c0_16], %15 {strides = array<i32>} : memref<64x384xf32, #tpu.memory_space<vmem>>, vector<64x384xf32>,
    %c0_17 = arith.constant 0 : index
    %c0_18 = arith.constant 0 : index
    %17 = vector.load %arg8[%c0_17, %c0_18] : memref<1x768xf32, #tpu.memory_space<vmem>>, vector<1x768xf32>
    %18 = vector.shape_cast %17 : vector<1x768xf32> to vector<1x768xf32>
    %19 = vector.broadcast %18 : vector<1x768xf32> to vector<8x768xf32>
    %c0_i32_19 = arith.constant 0 : i32
    %c2_i32 = arith.constant 2 : i32
    %20 = arith.addi %c0_i32_19, %c2_i32 : i32
    %c1_i32 = arith.constant 1 : i32
    scf.for %arg15 = %c0_i32_19 to %20 step %c1_i32  : i32 {
      %c4_i32 = arith.constant 4 : i32
      %21 = arith.muli %arg15, %c4_i32 : i32
      %c0_i32_21 = arith.constant 0 : i32
      %22 = arith.addi %21, %c0_i32_21 : i32
      %c8_i32 = arith.constant 8 : i32
      %23 = arith.muli %22, %c8_i32 : i32
      %24 = tpu.assume_multiple %23, 8 : i32
      %c7_i32 = arith.constant 7 : i32
      %25 = arith.subi %c7_i32, %22 : i32
      %c8_i32_22 = arith.constant 8 : i32
      %26 = arith.muli %25, %c8_i32_22 : i32
      %27 = tpu.assume_multiple %26, 8 : i32
      %c0_23 = arith.constant 0 : index
      %c0_24 = arith.constant 0 : index
      %28 = vector.load %arg11[%c0_23, %c0_24] : memref<8x128xf32, #tpu.memory_space<vmem>>, vector<8x128xf32>
      %c0_25 = arith.constant 0 : index
      %c0_26 = arith.constant 0 : index
      %29 = vector.load %arg12[%c0_25, %c0_26] : memref<8x128xf32, #tpu.memory_space<vmem>>, vector<8x128xf32>
      %30 = tpu.concatenate %28, %29 in 1 : vector<8x128xf32>, vector<8x128xf32> -> vector<8x256xf32>
      %c0_27 = arith.constant 0 : index
      %c0_28 = arith.constant 0 : index
      %31 = vector.load %arg7[%c0_27, %c0_28] : memref<256x768xf32, #tpu.memory_space<vmem>>, vector<256x768xf32>
      %cst_29 = arith.constant dense<0.000000e+00> : vector<8x768xf32>
      %32 = tpu.matmul %30, %31, %cst_29 {dimension_numbers = #tpu.dot_dimension_numbers<[1], [0], [0], [1], [0, 0, 1, 1], [], []>} : vector<8x256xf32>, vector<256x768xf32>, vector<8x768xf32> -> vector<8x768xf32>
      %33 = arith.addf %32, %19 : vector<8x768xf32>
      %34 = arith.index_cast %24 : i32 to index
      %c0_30 = arith.constant 0 : index
      %35 = vector.load %arg13[%34, %c0_30] : memref<64x384xf32, #tpu.memory_space<vmem>>, vector<8x384xf32>
      %36 = vector.extract_strided_slice %33 {offsets = [0, 0], sizes = [8, 384], strides = [1, 1]} : vector<8x768xf32> to vector<8x384xf32>
      %37 = vector.extract_strided_slice %35 {offsets = [0, 0], sizes = [8, 128], strides = [1, 1]} : vector<8x384xf32> to vector<8x128xf32>
      %38 = vector.extract_strided_slice %36 {offsets = [0, 0], sizes = [8, 128], strides = [1, 1]} : vector<8x384xf32> to vector<8x128xf32>
      %39 = arith.addf %37, %38 : vector<8x128xf32>
      %40 = arith.negf %39 : vector<8x128xf32>
      %41 = math.exp %40 : vector<8x128xf32>
      %cst_31 = arith.constant 1.000000e+00 : f32
      %42 = vector.broadcast %cst_31 : f32 to vector<8x128xf32>
      %43 = arith.addf %42, %41 : vector<8x128xf32>
      %44 = arith.divf %42, %43 : vector<8x128xf32>
      %45 = vector.extract_strided_slice %35 {offsets = [0, 128], sizes = [8, 128], strides = [1, 1]} : vector<8x384xf32> to vector<8x128xf32>
      %46 = vector.extract_strided_slice %36 {offsets = [0, 128], sizes = [8, 128], strides = [1, 1]} : vector<8x384xf32> to vector<8x128xf32>
      %47 = arith.addf %45, %46 : vector<8x128xf32>
      %48 = arith.negf %47 : vector<8x128xf32>
      %49 = math.exp %48 : vector<8x128xf32>
      %cst_32 = arith.constant 1.000000e+00 : f32
      %50 = vector.broadcast %cst_32 : f32 to vector<8x128xf32>
      %51 = arith.addf %50, %49 : vector<8x128xf32>
      %52 = arith.divf %50, %51 : vector<8x128xf32>
      %53 = vector.extract_strided_slice %35 {offsets = [0, 256], sizes = [8, 128], strides = [1, 1]} : vector<8x384xf32> to vector<8x128xf32>
      %54 = vector.extract_strided_slice %36 {offsets = [0, 256], sizes = [8, 128], strides = [1, 1]} : vector<8x384xf32> to vector<8x128xf32>
      %55 = arith.mulf %44, %54 : vector<8x128xf32>
      %56 = arith.addf %53, %55 : vector<8x128xf32>
      %57 = math.tanh %56 : vector<8x128xf32>
      %58 = arith.subf %28, %57 : vector<8x128xf32>
      %59 = arith.mulf %52, %58 : vector<8x128xf32>
      %60 = arith.addf %57, %59 : vector<8x128xf32>
      %61 = arith.index_cast %27 : i32 to index
      %c0_33 = arith.constant 0 : index
      %62 = vector.load %arg14[%61, %c0_33] : memref<64x384xf32, #tpu.memory_space<vmem>>, vector<8x384xf32>
      %63 = vector.extract_strided_slice %33 {offsets = [0, 384], sizes = [8, 384], strides = [1, 1]} : vector<8x768xf32> to vector<8x384xf32>
      %64 = vector.extract_strided_slice %62 {offsets = [0, 0], sizes = [8, 128], strides = [1, 1]} : vector<8x384xf32> to vector<8x128xf32>
      %65 = vector.extract_strided_slice %63 {offsets = [0, 0], sizes = [8, 128], strides = [1, 1]} : vector<8x384xf32> to vector<8x128xf32>
      %66 = arith.addf %64, %65 : vector<8x128xf32>
      %67 = arith.negf %66 : vector<8x128xf32>
      %68 = math.exp %67 : vector<8x128xf32>
      %cst_34 = arith.constant 1.000000e+00 : f32
      %69 = vector.broadcast %cst_34 : f32 to vector<8x128xf32>
      %70 = arith.addf %69, %68 : vector<8x128xf32>
      %71 = arith.divf %69, %70 : vector<8x128xf32>
      %72 = vector.extract_strided_slice %62 {offsets = [0, 128], sizes = [8, 128], strides = [1, 1]} : vector<8x384xf32> to vector<8x128xf32>
      %73 = vector.extract_strided_slice %63 {offsets = [0, 128], sizes = [8, 128], strides = [1, 1]} : vector<8x384xf32> to vector<8x128xf32>
      %74 = arith.addf %72, %73 : vector<8x128xf32>
      %75 = arith.negf %74 : vector<8x128xf32>
      %76 = math.exp %75 : vector<8x128xf32>
      %cst_35 = arith.constant 1.000000e+00 : f32
      %77 = vector.broadcast %cst_35 : f32 to vector<8x128xf32>
      %78 = arith.addf %77, %76 : vector<8x128xf32>
      %79 = arith.divf %77, %78 : vector<8x128xf32>
      %80 = vector.extract_strided_slice %62 {offsets = [0, 256], sizes = [8, 128], strides = [1, 1]} : vector<8x384xf32> to vector<8x128xf32>
      %81 = vector.extract_strided_slice %63 {offsets = [0, 256], sizes = [8, 128], strides = [1, 1]} : vector<8x384xf32> to vector<8x128xf32>
      %82 = arith.mulf %71, %81 : vector<8x128xf32>
      %83 = arith.addf %80, %82 : vector<8x128xf32>
      %84 = math.tanh %83 : vector<8x128xf32>
      %85 = arith.subf %29, %84 : vector<8x128xf32>
      %86 = arith.mulf %79, %85 : vector<8x128xf32>
      %87 = arith.addf %84, %86 : vector<8x128xf32>
      %c0_36 = arith.constant 0 : index
      %c0_37 = arith.constant 0 : index
      %88 = vector.load %arg11[%c0_36, %c0_37] : memref<8x128xf32, #tpu.memory_space<vmem>>, vector<8x128xf32>
      tpu.vector_store %arg11[%c0_36, %c0_37], %60 {strides = array<i32>} : memref<8x128xf32, #tpu.memory_space<vmem>>, vector<8x128xf32>,
      %c0_38 = arith.constant 0 : index
      %c0_39 = arith.constant 0 : index
      %89 = vector.load %arg12[%c0_38, %c0_39] : memref<8x128xf32, #tpu.memory_space<vmem>>, vector<8x128xf32>
      tpu.vector_store %arg12[%c0_38, %c0_39], %87 {strides = array<i32>} : memref<8x128xf32, #tpu.memory_space<vmem>>, vector<8x128xf32>,
      %90 = arith.index_cast %24 : i32 to index
      %c0_40 = arith.constant 0 : index
      %91 = vector.load %arg9[%90, %c0_40] : memref<64x128xf32, #tpu.memory_space<vmem>>, vector<8x128xf32>
      tpu.vector_store %arg9[%90, %c0_40], %60 {strides = array<i32>} : memref<64x128xf32, #tpu.memory_space<vmem>>, vector<8x128xf32>,
      %92 = arith.index_cast %27 : i32 to index
      %c0_41 = arith.constant 0 : index
      %93 = vector.load %arg10[%92, %c0_41] : memref<64x128xf32, #tpu.memory_space<vmem>>, vector<8x128xf32>
      tpu.vector_store %arg10[%92, %c0_41], %87 {strides = array<i32>} : memref<64x128xf32, #tpu.memory_space<vmem>>, vector<8x128xf32>,
      %c4_i32_42 = arith.constant 4 : i32
      %94 = arith.muli %arg15, %c4_i32_42 : i32
      %c1_i32_43 = arith.constant 1 : i32
      %95 = arith.addi %94, %c1_i32_43 : i32
      %c8_i32_44 = arith.constant 8 : i32
      %96 = arith.muli %95, %c8_i32_44 : i32
      %97 = tpu.assume_multiple %96, 8 : i32
      %c7_i32_45 = arith.constant 7 : i32
      %98 = arith.subi %c7_i32_45, %95 : i32
      %c8_i32_46 = arith.constant 8 : i32
      %99 = arith.muli %98, %c8_i32_46 : i32
      %100 = tpu.assume_multiple %99, 8 : i32
      %c0_47 = arith.constant 0 : index
      %c0_48 = arith.constant 0 : index
      %101 = vector.load %arg11[%c0_47, %c0_48] : memref<8x128xf32, #tpu.memory_space<vmem>>, vector<8x128xf32>
      %c0_49 = arith.constant 0 : index
      %c0_50 = arith.constant 0 : index
      %102 = vector.load %arg12[%c0_49, %c0_50] : memref<8x128xf32, #tpu.memory_space<vmem>>, vector<8x128xf32>
      %103 = tpu.concatenate %101, %102 in 1 : vector<8x128xf32>, vector<8x128xf32> -> vector<8x256xf32>
      %c0_51 = arith.constant 0 : index
      %c0_52 = arith.constant 0 : index
      %104 = vector.load %arg7[%c0_51, %c0_52] : memref<256x768xf32, #tpu.memory_space<vmem>>, vector<256x768xf32>
      %cst_53 = arith.constant dense<0.000000e+00> : vector<8x768xf32>
      %105 = tpu.matmul %103, %104, %cst_53 {dimension_numbers = #tpu.dot_dimension_numbers<[1], [0], [0], [1], [0, 0, 1, 1], [], []>} : vector<8x256xf32>, vector<256x768xf32>, vector<8x768xf32> -> vector<8x768xf32>
      %106 = arith.addf %105, %19 : vector<8x768xf32>
      %107 = arith.index_cast %97 : i32 to index
      %c0_54 = arith.constant 0 : index
      %108 = vector.load %arg13[%107, %c0_54] : memref<64x384xf32, #tpu.memory_space<vmem>>, vector<8x384xf32>
      %109 = vector.extract_strided_slice %106 {offsets = [0, 0], sizes = [8, 384], strides = [1, 1]} : vector<8x768xf32> to vector<8x384xf32>
      %110 = vector.extract_strided_slice %108 {offsets = [0, 0], sizes = [8, 128], strides = [1, 1]} : vector<8x384xf32> to vector<8x128xf32>
      %111 = vector.extract_strided_slice %109 {offsets = [0, 0], sizes = [8, 128], strides = [1, 1]} : vector<8x384xf32> to vector<8x128xf32>
      %112 = arith.addf %110, %111 : vector<8x128xf32>
      %113 = arith.negf %112 : vector<8x128xf32>
      %114 = math.exp %113 : vector<8x128xf32>
      %cst_55 = arith.constant 1.000000e+00 : f32
      %115 = vector.broadcast %cst_55 : f32 to vector<8x128xf32>
      %116 = arith.addf %115, %114 : vector<8x128xf32>
      %117 = arith.divf %115, %116 : vector<8x128xf32>
      %118 = vector.extract_strided_slice %108 {offsets = [0, 128], sizes = [8, 128], strides = [1, 1]} : vector<8x384xf32> to vector<8x128xf32>
      %119 = vector.extract_strided_slice %109 {offsets = [0, 128], sizes = [8, 128], strides = [1, 1]} : vector<8x384xf32> to vector<8x128xf32>
      %120 = arith.addf %118, %119 : vector<8x128xf32>
      %121 = arith.negf %120 : vector<8x128xf32>
      %122 = math.exp %121 : vector<8x128xf32>
      %cst_56 = arith.constant 1.000000e+00 : f32
      %123 = vector.broadcast %cst_56 : f32 to vector<8x128xf32>
      %124 = arith.addf %123, %122 : vector<8x128xf32>
      %125 = arith.divf %123, %124 : vector<8x128xf32>
      %126 = vector.extract_strided_slice %108 {offsets = [0, 256], sizes = [8, 128], strides = [1, 1]} : vector<8x384xf32> to vector<8x128xf32>
      %127 = vector.extract_strided_slice %109 {offsets = [0, 256], sizes = [8, 128], strides = [1, 1]} : vector<8x384xf32> to vector<8x128xf32>
      %128 = arith.mulf %117, %127 : vector<8x128xf32>
      %129 = arith.addf %126, %128 : vector<8x128xf32>
      %130 = math.tanh %129 : vector<8x128xf32>
      %131 = arith.subf %101, %130 : vector<8x128xf32>
      %132 = arith.mulf %125, %131 : vector<8x128xf32>
      %133 = arith.addf %130, %132 : vector<8x128xf32>
      %134 = arith.index_cast %100 : i32 to index
      %c0_57 = arith.constant 0 : index
      %135 = vector.load %arg14[%134, %c0_57] : memref<64x384xf32, #tpu.memory_space<vmem>>, vector<8x384xf32>
      %136 = vector.extract_strided_slice %106 {offsets = [0, 384], sizes = [8, 384], strides = [1, 1]} : vector<8x768xf32> to vector<8x384xf32>
      %137 = vector.extract_strided_slice %135 {offsets = [0, 0], sizes = [8, 128], strides = [1, 1]} : vector<8x384xf32> to vector<8x128xf32>
      %138 = vector.extract_strided_slice %136 {offsets = [0, 0], sizes = [8, 128], strides = [1, 1]} : vector<8x384xf32> to vector<8x128xf32>
      %139 = arith.addf %137, %138 : vector<8x128xf32>
      %140 = arith.negf %139 : vector<8x128xf32>
      %141 = math.exp %140 : vector<8x128xf32>
      %cst_58 = arith.constant 1.000000e+00 : f32
      %142 = vector.broadcast %cst_58 : f32 to vector<8x128xf32>
      %143 = arith.addf %142, %141 : vector<8x128xf32>
      %144 = arith.divf %142, %143 : vector<8x128xf32>
      %145 = vector.extract_strided_slice %135 {offsets = [0, 128], sizes = [8, 128], strides = [1, 1]} : vector<8x384xf32> to vector<8x128xf32>
      %146 = vector.extract_strided_slice %136 {offsets = [0, 128], sizes = [8, 128], strides = [1, 1]} : vector<8x384xf32> to vector<8x128xf32>
      %147 = arith.addf %145, %146 : vector<8x128xf32>
      %148 = arith.negf %147 : vector<8x128xf32>
      %149 = math.exp %148 : vector<8x128xf32>
      %cst_59 = arith.constant 1.000000e+00 : f32
      %150 = vector.broadcast %cst_59 : f32 to vector<8x128xf32>
      %151 = arith.addf %150, %149 : vector<8x128xf32>
      %152 = arith.divf %150, %151 : vector<8x128xf32>
      %153 = vector.extract_strided_slice %135 {offsets = [0, 256], sizes = [8, 128], strides = [1, 1]} : vector<8x384xf32> to vector<8x128xf32>
      %154 = vector.extract_strided_slice %136 {offsets = [0, 256], sizes = [8, 128], strides = [1, 1]} : vector<8x384xf32> to vector<8x128xf32>
      %155 = arith.mulf %144, %154 : vector<8x128xf32>
      %156 = arith.addf %153, %155 : vector<8x128xf32>
      %157 = math.tanh %156 : vector<8x128xf32>
      %158 = arith.subf %102, %157 : vector<8x128xf32>
      %159 = arith.mulf %152, %158 : vector<8x128xf32>
      %160 = arith.addf %157, %159 : vector<8x128xf32>
      %c0_60 = arith.constant 0 : index
      %c0_61 = arith.constant 0 : index
      %161 = vector.load %arg11[%c0_60, %c0_61] : memref<8x128xf32, #tpu.memory_space<vmem>>, vector<8x128xf32>
      tpu.vector_store %arg11[%c0_60, %c0_61], %133 {strides = array<i32>} : memref<8x128xf32, #tpu.memory_space<vmem>>, vector<8x128xf32>,
      %c0_62 = arith.constant 0 : index
      %c0_63 = arith.constant 0 : index
      %162 = vector.load %arg12[%c0_62, %c0_63] : memref<8x128xf32, #tpu.memory_space<vmem>>, vector<8x128xf32>
      tpu.vector_store %arg12[%c0_62, %c0_63], %160 {strides = array<i32>} : memref<8x128xf32, #tpu.memory_space<vmem>>, vector<8x128xf32>,
      %163 = arith.index_cast %97 : i32 to index
      %c0_64 = arith.constant 0 : index
      %164 = vector.load %arg9[%163, %c0_64] : memref<64x128xf32, #tpu.memory_space<vmem>>, vector<8x128xf32>
      tpu.vector_store %arg9[%163, %c0_64], %133 {strides = array<i32>} : memref<64x128xf32, #tpu.memory_space<vmem>>, vector<8x128xf32>,
      %165 = arith.index_cast %100 : i32 to index
      %c0_65 = arith.constant 0 : index
      %166 = vector.load %arg10[%165, %c0_65] : memref<64x128xf32, #tpu.memory_space<vmem>>, vector<8x128xf32>
      tpu.vector_store %arg10[%165, %c0_65], %160 {strides = array<i32>} : memref<64x128xf32, #tpu.memory_space<vmem>>, vector<8x128xf32>,
      %c4_i32_66 = arith.constant 4 : i32
      %167 = arith.muli %arg15, %c4_i32_66 : i32
      %c2_i32_67 = arith.constant 2 : i32
      %168 = arith.addi %167, %c2_i32_67 : i32
      %c8_i32_68 = arith.constant 8 : i32
      %169 = arith.muli %168, %c8_i32_68 : i32
      %170 = tpu.assume_multiple %169, 8 : i32
      %c7_i32_69 = arith.constant 7 : i32
      %171 = arith.subi %c7_i32_69, %168 : i32
      %c8_i32_70 = arith.constant 8 : i32
      %172 = arith.muli %171, %c8_i32_70 : i32
      %173 = tpu.assume_multiple %172, 8 : i32
      %c0_71 = arith.constant 0 : index
      %c0_72 = arith.constant 0 : index
      %174 = vector.load %arg11[%c0_71, %c0_72] : memref<8x128xf32, #tpu.memory_space<vmem>>, vector<8x128xf32>
      %c0_73 = arith.constant 0 : index
      %c0_74 = arith.constant 0 : index
      %175 = vector.load %arg12[%c0_73, %c0_74] : memref<8x128xf32, #tpu.memory_space<vmem>>, vector<8x128xf32>
      %176 = tpu.concatenate %174, %175 in 1 : vector<8x128xf32>, vector<8x128xf32> -> vector<8x256xf32>
      %c0_75 = arith.constant 0 : index
      %c0_76 = arith.constant 0 : index
      %177 = vector.load %arg7[%c0_75, %c0_76] : memref<256x768xf32, #tpu.memory_space<vmem>>, vector<256x768xf32>
      %cst_77 = arith.constant dense<0.000000e+00> : vector<8x768xf32>
      %178 = tpu.matmul %176, %177, %cst_77 {dimension_numbers = #tpu.dot_dimension_numbers<[1], [0], [0], [1], [0, 0, 1, 1], [], []>} : vector<8x256xf32>, vector<256x768xf32>, vector<8x768xf32> -> vector<8x768xf32>
      %179 = arith.addf %178, %19 : vector<8x768xf32>
      %180 = arith.index_cast %170 : i32 to index
      %c0_78 = arith.constant 0 : index
      %181 = vector.load %arg13[%180, %c0_78] : memref<64x384xf32, #tpu.memory_space<vmem>>, vector<8x384xf32>
      %182 = vector.extract_strided_slice %179 {offsets = [0, 0], sizes = [8, 384], strides = [1, 1]} : vector<8x768xf32> to vector<8x384xf32>
      %183 = vector.extract_strided_slice %181 {offsets = [0, 0], sizes = [8, 128], strides = [1, 1]} : vector<8x384xf32> to vector<8x128xf32>
      %184 = vector.extract_strided_slice %182 {offsets = [0, 0], sizes = [8, 128], strides = [1, 1]} : vector<8x384xf32> to vector<8x128xf32>
      %185 = arith.addf %183, %184 : vector<8x128xf32>
      %186 = arith.negf %185 : vector<8x128xf32>
      %187 = math.exp %186 : vector<8x128xf32>
      %cst_79 = arith.constant 1.000000e+00 : f32
      %188 = vector.broadcast %cst_79 : f32 to vector<8x128xf32>
      %189 = arith.addf %188, %187 : vector<8x128xf32>
      %190 = arith.divf %188, %189 : vector<8x128xf32>
      %191 = vector.extract_strided_slice %181 {offsets = [0, 128], sizes = [8, 128], strides = [1, 1]} : vector<8x384xf32> to vector<8x128xf32>
      %192 = vector.extract_strided_slice %182 {offsets = [0, 128], sizes = [8, 128], strides = [1, 1]} : vector<8x384xf32> to vector<8x128xf32>
      %193 = arith.addf %191, %192 : vector<8x128xf32>
      %194 = arith.negf %193 : vector<8x128xf32>
      %195 = math.exp %194 : vector<8x128xf32>
      %cst_80 = arith.constant 1.000000e+00 : f32
      %196 = vector.broadcast %cst_80 : f32 to vector<8x128xf32>
      %197 = arith.addf %196, %195 : vector<8x128xf32>
      %198 = arith.divf %196, %197 : vector<8x128xf32>
      %199 = vector.extract_strided_slice %181 {offsets = [0, 256], sizes = [8, 128], strides = [1, 1]} : vector<8x384xf32> to vector<8x128xf32>
      %200 = vector.extract_strided_slice %182 {offsets = [0, 256], sizes = [8, 128], strides = [1, 1]} : vector<8x384xf32> to vector<8x128xf32>
      %201 = arith.mulf %190, %200 : vector<8x128xf32>
      %202 = arith.addf %199, %201 : vector<8x128xf32>
      %203 = math.tanh %202 : vector<8x128xf32>
      %204 = arith.subf %174, %203 : vector<8x128xf32>
      %205 = arith.mulf %198, %204 : vector<8x128xf32>
      %206 = arith.addf %203, %205 : vector<8x128xf32>
      %207 = arith.index_cast %173 : i32 to index
      %c0_81 = arith.constant 0 : index
      %208 = vector.load %arg14[%207, %c0_81] : memref<64x384xf32, #tpu.memory_space<vmem>>, vector<8x384xf32>
      %209 = vector.extract_strided_slice %179 {offsets = [0, 384], sizes = [8, 384], strides = [1, 1]} : vector<8x768xf32> to vector<8x384xf32>
      %210 = vector.extract_strided_slice %208 {offsets = [0, 0], sizes = [8, 128], strides = [1, 1]} : vector<8x384xf32> to vector<8x128xf32>
      %211 = vector.extract_strided_slice %209 {offsets = [0, 0], sizes = [8, 128], strides = [1, 1]} : vector<8x384xf32> to vector<8x128xf32>
      %212 = arith.addf %210, %211 : vector<8x128xf32>
      %213 = arith.negf %212 : vector<8x128xf32>
      %214 = math.exp %213 : vector<8x128xf32>
      %cst_82 = arith.constant 1.000000e+00 : f32
      %215 = vector.broadcast %cst_82 : f32 to vector<8x128xf32>
      %216 = arith.addf %215, %214 : vector<8x128xf32>
      %217 = arith.divf %215, %216 : vector<8x128xf32>
      %218 = vector.extract_strided_slice %208 {offsets = [0, 128], sizes = [8, 128], strides = [1, 1]} : vector<8x384xf32> to vector<8x128xf32>
      %219 = vector.extract_strided_slice %209 {offsets = [0, 128], sizes = [8, 128], strides = [1, 1]} : vector<8x384xf32> to vector<8x128xf32>
      %220 = arith.addf %218, %219 : vector<8x128xf32>
      %221 = arith.negf %220 : vector<8x128xf32>
      %222 = math.exp %221 : vector<8x128xf32>
      %cst_83 = arith.constant 1.000000e+00 : f32
      %223 = vector.broadcast %cst_83 : f32 to vector<8x128xf32>
      %224 = arith.addf %223, %222 : vector<8x128xf32>
      %225 = arith.divf %223, %224 : vector<8x128xf32>
      %226 = vector.extract_strided_slice %208 {offsets = [0, 256], sizes = [8, 128], strides = [1, 1]} : vector<8x384xf32> to vector<8x128xf32>
      %227 = vector.extract_strided_slice %209 {offsets = [0, 256], sizes = [8, 128], strides = [1, 1]} : vector<8x384xf32> to vector<8x128xf32>
      %228 = arith.mulf %217, %227 : vector<8x128xf32>
      %229 = arith.addf %226, %228 : vector<8x128xf32>
      %230 = math.tanh %229 : vector<8x128xf32>
      %231 = arith.subf %175, %230 : vector<8x128xf32>
      %232 = arith.mulf %225, %231 : vector<8x128xf32>
      %233 = arith.addf %230, %232 : vector<8x128xf32>
      %c0_84 = arith.constant 0 : index
      %c0_85 = arith.constant 0 : index
      %234 = vector.load %arg11[%c0_84, %c0_85] : memref<8x128xf32, #tpu.memory_space<vmem>>, vector<8x128xf32>
      tpu.vector_store %arg11[%c0_84, %c0_85], %206 {strides = array<i32>} : memref<8x128xf32, #tpu.memory_space<vmem>>, vector<8x128xf32>,
      %c0_86 = arith.constant 0 : index
      %c0_87 = arith.constant 0 : index
      %235 = vector.load %arg12[%c0_86, %c0_87] : memref<8x128xf32, #tpu.memory_space<vmem>>, vector<8x128xf32>
      tpu.vector_store %arg12[%c0_86, %c0_87], %233 {strides = array<i32>} : memref<8x128xf32, #tpu.memory_space<vmem>>, vector<8x128xf32>,
      %236 = arith.index_cast %170 : i32 to index
      %c0_88 = arith.constant 0 : index
      %237 = vector.load %arg9[%236, %c0_88] : memref<64x128xf32, #tpu.memory_space<vmem>>, vector<8x128xf32>
      tpu.vector_store %arg9[%236, %c0_88], %206 {strides = array<i32>} : memref<64x128xf32, #tpu.memory_space<vmem>>, vector<8x128xf32>,
      %238 = arith.index_cast %173 : i32 to index
      %c0_89 = arith.constant 0 : index
      %239 = vector.load %arg10[%238, %c0_89] : memref<64x128xf32, #tpu.memory_space<vmem>>, vector<8x128xf32>
      tpu.vector_store %arg10[%238, %c0_89], %233 {strides = array<i32>} : memref<64x128xf32, #tpu.memory_space<vmem>>, vector<8x128xf32>,
      %c4_i32_90 = arith.constant 4 : i32
      %240 = arith.muli %arg15, %c4_i32_90 : i32
      %c3_i32 = arith.constant 3 : i32
      %241 = arith.addi %240, %c3_i32 : i32
      %c8_i32_91 = arith.constant 8 : i32
      %242 = arith.muli %241, %c8_i32_91 : i32
      %243 = tpu.assume_multiple %242, 8 : i32
      %c7_i32_92 = arith.constant 7 : i32
      %244 = arith.subi %c7_i32_92, %241 : i32
      %c8_i32_93 = arith.constant 8 : i32
      %245 = arith.muli %244, %c8_i32_93 : i32
      %246 = tpu.assume_multiple %245, 8 : i32
      %c0_94 = arith.constant 0 : index
      %c0_95 = arith.constant 0 : index
      %247 = vector.load %arg11[%c0_94, %c0_95] : memref<8x128xf32, #tpu.memory_space<vmem>>, vector<8x128xf32>
      %c0_96 = arith.constant 0 : index
      %c0_97 = arith.constant 0 : index
      %248 = vector.load %arg12[%c0_96, %c0_97] : memref<8x128xf32, #tpu.memory_space<vmem>>, vector<8x128xf32>
      %249 = tpu.concatenate %247, %248 in 1 : vector<8x128xf32>, vector<8x128xf32> -> vector<8x256xf32>
      %c0_98 = arith.constant 0 : index
      %c0_99 = arith.constant 0 : index
      %250 = vector.load %arg7[%c0_98, %c0_99] : memref<256x768xf32, #tpu.memory_space<vmem>>, vector<256x768xf32>
      %cst_100 = arith.constant dense<0.000000e+00> : vector<8x768xf32>
      %251 = tpu.matmul %249, %250, %cst_100 {dimension_numbers = #tpu.dot_dimension_numbers<[1], [0], [0], [1], [0, 0, 1, 1], [], []>} : vector<8x256xf32>, vector<256x768xf32>, vector<8x768xf32> -> vector<8x768xf32>
      %252 = arith.addf %251, %19 : vector<8x768xf32>
      %253 = arith.index_cast %243 : i32 to index
      %c0_101 = arith.constant 0 : index
      %254 = vector.load %arg13[%253, %c0_101] : memref<64x384xf32, #tpu.memory_space<vmem>>, vector<8x384xf32>
      %255 = vector.extract_strided_slice %252 {offsets = [0, 0], sizes = [8, 384], strides = [1, 1]} : vector<8x768xf32> to vector<8x384xf32>
      %256 = vector.extract_strided_slice %254 {offsets = [0, 0], sizes = [8, 128], strides = [1, 1]} : vector<8x384xf32> to vector<8x128xf32>
      %257 = vector.extract_strided_slice %255 {offsets = [0, 0], sizes = [8, 128], strides = [1, 1]} : vector<8x384xf32> to vector<8x128xf32>
      %258 = arith.addf %256, %257 : vector<8x128xf32>
      %259 = arith.negf %258 : vector<8x128xf32>
      %260 = math.exp %259 : vector<8x128xf32>
      %cst_102 = arith.constant 1.000000e+00 : f32
      %261 = vector.broadcast %cst_102 : f32 to vector<8x128xf32>
      %262 = arith.addf %261, %260 : vector<8x128xf32>
      %263 = arith.divf %261, %262 : vector<8x128xf32>
      %264 = vector.extract_strided_slice %254 {offsets = [0, 128], sizes = [8, 128], strides = [1, 1]} : vector<8x384xf32> to vector<8x128xf32>
      %265 = vector.extract_strided_slice %255 {offsets = [0, 128], sizes = [8, 128], strides = [1, 1]} : vector<8x384xf32> to vector<8x128xf32>
      %266 = arith.addf %264, %265 : vector<8x128xf32>
      %267 = arith.negf %266 : vector<8x128xf32>
      %268 = math.exp %267 : vector<8x128xf32>
      %cst_103 = arith.constant 1.000000e+00 : f32
      %269 = vector.broadcast %cst_103 : f32 to vector<8x128xf32>
      %270 = arith.addf %269, %268 : vector<8x128xf32>
      %271 = arith.divf %269, %270 : vector<8x128xf32>
      %272 = vector.extract_strided_slice %254 {offsets = [0, 256], sizes = [8, 128], strides = [1, 1]} : vector<8x384xf32> to vector<8x128xf32>
      %273 = vector.extract_strided_slice %255 {offsets = [0, 256], sizes = [8, 128], strides = [1, 1]} : vector<8x384xf32> to vector<8x128xf32>
      %274 = arith.mulf %263, %273 : vector<8x128xf32>
      %275 = arith.addf %272, %274 : vector<8x128xf32>
      %276 = math.tanh %275 : vector<8x128xf32>
      %277 = arith.subf %247, %276 : vector<8x128xf32>
      %278 = arith.mulf %271, %277 : vector<8x128xf32>
      %279 = arith.addf %276, %278 : vector<8x128xf32>
      %280 = arith.index_cast %246 : i32 to index
      %c0_104 = arith.constant 0 : index
      %281 = vector.load %arg14[%280, %c0_104] : memref<64x384xf32, #tpu.memory_space<vmem>>, vector<8x384xf32>
      %282 = vector.extract_strided_slice %252 {offsets = [0, 384], sizes = [8, 384], strides = [1, 1]} : vector<8x768xf32> to vector<8x384xf32>
      %283 = vector.extract_strided_slice %281 {offsets = [0, 0], sizes = [8, 128], strides = [1, 1]} : vector<8x384xf32> to vector<8x128xf32>
      %284 = vector.extract_strided_slice %282 {offsets = [0, 0], sizes = [8, 128], strides = [1, 1]} : vector<8x384xf32> to vector<8x128xf32>
      %285 = arith.addf %283, %284 : vector<8x128xf32>
      %286 = arith.negf %285 : vector<8x128xf32>
      %287 = math.exp %286 : vector<8x128xf32>
      %cst_105 = arith.constant 1.000000e+00 : f32
      %288 = vector.broadcast %cst_105 : f32 to vector<8x128xf32>
      %289 = arith.addf %288, %287 : vector<8x128xf32>
      %290 = arith.divf %288, %289 : vector<8x128xf32>
      %291 = vector.extract_strided_slice %281 {offsets = [0, 128], sizes = [8, 128], strides = [1, 1]} : vector<8x384xf32> to vector<8x128xf32>
      %292 = vector.extract_strided_slice %282 {offsets = [0, 128], sizes = [8, 128], strides = [1, 1]} : vector<8x384xf32> to vector<8x128xf32>
      %293 = arith.addf %291, %292 : vector<8x128xf32>
      %294 = arith.negf %293 : vector<8x128xf32>
      %295 = math.exp %294 : vector<8x128xf32>
      %cst_106 = arith.constant 1.000000e+00 : f32
      %296 = vector.broadcast %cst_106 : f32 to vector<8x128xf32>
      %297 = arith.addf %296, %295 : vector<8x128xf32>
      %298 = arith.divf %296, %297 : vector<8x128xf32>
      %299 = vector.extract_strided_slice %281 {offsets = [0, 256], sizes = [8, 128], strides = [1, 1]} : vector<8x384xf32> to vector<8x128xf32>
      %300 = vector.extract_strided_slice %282 {offsets = [0, 256], sizes = [8, 128], strides = [1, 1]} : vector<8x384xf32> to vector<8x128xf32>
      %301 = arith.mulf %290, %300 : vector<8x128xf32>
      %302 = arith.addf %299, %301 : vector<8x128xf32>
      %303 = math.tanh %302 : vector<8x128xf32>
      %304 = arith.subf %248, %303 : vector<8x128xf32>
      %305 = arith.mulf %298, %304 : vector<8x128xf32>
      %306 = arith.addf %303, %305 : vector<8x128xf32>
      %c0_107 = arith.constant 0 : index
      %c0_108 = arith.constant 0 : index
      %307 = vector.load %arg11[%c0_107, %c0_108] : memref<8x128xf32, #tpu.memory_space<vmem>>, vector<8x128xf32>
      tpu.vector_store %arg11[%c0_107, %c0_108], %279 {strides = array<i32>} : memref<8x128xf32, #tpu.memory_space<vmem>>, vector<8x128xf32>,
      %c0_109 = arith.constant 0 : index
      %c0_110 = arith.constant 0 : index
      %308 = vector.load %arg12[%c0_109, %c0_110] : memref<8x128xf32, #tpu.memory_space<vmem>>, vector<8x128xf32>
      tpu.vector_store %arg12[%c0_109, %c0_110], %306 {strides = array<i32>} : memref<8x128xf32, #tpu.memory_space<vmem>>, vector<8x128xf32>,
      %309 = arith.index_cast %243 : i32 to index
      %c0_111 = arith.constant 0 : index
      %310 = vector.load %arg9[%309, %c0_111] : memref<64x128xf32, #tpu.memory_space<vmem>>, vector<8x128xf32>
      tpu.vector_store %arg9[%309, %c0_111], %279 {strides = array<i32>} : memref<64x128xf32, #tpu.memory_space<vmem>>, vector<8x128xf32>,
      %311 = arith.index_cast %246 : i32 to index
      %c0_112 = arith.constant 0 : index
      %312 = vector.load %arg10[%311, %c0_112] : memref<64x128xf32, #tpu.memory_space<vmem>>, vector<8x128xf32>
      tpu.vector_store %arg10[%311, %c0_112], %306 {strides = array<i32>} : memref<64x128xf32, #tpu.memory_space<vmem>>, vector<8x128xf32>,
    }
    %c2_i32_20 = arith.constant 2 : i32
    return
  }
  func.func @transform_0(%arg0: i32) -> (i32, i32) {
    %c0_i32 = arith.constant 0 : i32
    %c0_i32_0 = arith.constant 0 : i32
    return %arg0, %c0_i32 : i32, i32
  }
  func.func @transform_1(%arg0: i32) -> (i32, i32) {
    %c0_i32 = arith.constant 0 : i32
    %0 = arith.subi %c0_i32, %arg0 : i32
    %c0_i32_0 = arith.constant 0 : i32
    %c0_i32_1 = arith.constant 0 : i32
    return %0, %c0_i32_0 : i32, i32
  }
  func.func @transform_2(%arg0: i32) -> (i32, i32) {
    %c0_i32 = arith.constant 0 : i32
    %c0_i32_0 = arith.constant 0 : i32
    %c0_i32_1 = arith.constant 0 : i32
    return %c0_i32, %c0_i32_0 : i32, i32
  }
  func.func @transform_3(%arg0: i32) -> (i32, i32) {
    %c0_i32 = arith.constant 0 : i32
    %c0_i32_0 = arith.constant 0 : i32
    %c0_i32_1 = arith.constant 0 : i32
    return %c0_i32, %c0_i32_0 : i32, i32
  }
  func.func @transform_4(%arg0: i32) -> (i32, i32) {
    %c0_i32 = arith.constant 0 : i32
    %c0_i32_0 = arith.constant 0 : i32
    %c0_i32_1 = arith.constant 0 : i32
    return %c0_i32, %c0_i32_0 : i32, i32
  }
  func.func @transform_5(%arg0: i32) -> (i32, i32) {
    %c0_i32 = arith.constant 0 : i32
    %c0_i32_0 = arith.constant 0 : i32
    %c0_i32_1 = arith.constant 0 : i32
    return %c0_i32, %c0_i32_0 : i32, i32
  }
  func.func @transform_6(%arg0: i32) -> (i32, i32) {
    %c0_i32 = arith.constant 0 : i32
    %c0_i32_0 = arith.constant 0 : i32
    %c0_i32_1 = arith.constant 0 : i32
    return %c0_i32, %c0_i32_0 : i32, i32
  }
  func.func @transform_7(%arg0: i32) -> (i32, i32) {
    %c0_i32 = arith.constant 0 : i32
    %c0_i32_0 = arith.constant 0 : i32
    %c0_i32_1 = arith.constant 0 : i32
    return %c0_i32, %c0_i32_0 : i32, i32
  }
  func.func @transform_8(%arg0: i32) -> (i32, i32) {
    %c0_i32 = arith.constant 0 : i32
    %c0_i32_0 = arith.constant 0 : i32
    return %arg0, %c0_i32 : i32, i32
  }
  func.func @transform_9(%arg0: i32) -> (i32, i32) {
    %c0_i32 = arith.constant 0 : i32
    %0 = arith.subi %c0_i32, %arg0 : i32
    %c0_i32_0 = arith.constant 0 : i32
    %c0_i32_1 = arith.constant 0 : i32
    return %0, %c0_i32_0 : i32, i32
  }
}

</mosaic_0001>

<llo_original>
// kernel: tpu_custom_call.1
$region0: #{tpu_custom_call.1}
  #allocation0 [shape = 'u32[]', space=smem, size = 0x4, offset = 0x4, fixed_abs, tag = 'smem constant byte address 0x4 - core index']
  #allocation1 [shape = 'u32[144,128]{1,0:T(1,128)}', space=vmem, size = 0x12000, scoped, tag = 'internal scratch']
  #allocation2 [shape = 'f32[8,128]{1,0:T(8,128)}', space=vmem, size = 0x1000, scoped, tag = 'scratch operand']
  #allocation3 [shape = 'f32[8,128]{1,0:T(8,128)}', space=vmem, size = 0x1000, scoped, tag = 'scratch operand']
  #allocation4 [shape = 'f32[64,384]{1,0:T(8,128)}', space=vmem, size = 0x18000, scoped, tag = 'scratch operand']
  #allocation5 [shape = 'f32[64,384]{1,0:T(8,128)}', space=vmem, size = 0x18000, scoped, tag = 'scratch operand']
  %s0 = inlined_call_operand.vmem [shape: f32[64,20], index: 0, kind: input, shape index: {}]
  %s1 = inlined_call_operand.vmem [shape: f32[64,20], index: 1, kind: input, shape index: {}]
  %s2 = inlined_call_operand.vmem [shape: f32[20,384], index: 2, kind: input, shape index: {}]
  %s3 = inlined_call_operand.vmem [shape: f32[20,384], index: 3, kind: input, shape index: {}]
  %s4 = inlined_call_operand.vmem [shape: f32[1,384], index: 4, kind: input, shape index: {}]
  %s5 = inlined_call_operand.vmem [shape: f32[1,384], index: 5, kind: input, shape index: {}]
  %s6 = inlined_call_operand.hbm [shape: f32[256,768], index: 6, kind: input, shape index: {}]
  %s7 = inlined_call_operand.vmem [shape: f32[1,768], index: 7, kind: input, shape index: {}]
  %s8 = inlined_call_operand.hbm [shape: f32[64,128], index: 8, kind: output, shape index: {0}]
  %s9 = inlined_call_operand.hbm [shape: f32[64,128], index: 9, kind: output, shape index: {1}]
  %10 = xla_tuple %s8, %s9
  %s11 = sld [smem:[#allocation0]]
  $region65: #{tpu_custom_call.1} parent=0
    _
  %s13 = ssub.s32 1, %s11
  %s14 = scalar_select 0, %s13, %s11
  $region1: #{tpu_custom_call.1} parent=0
    #allocation6 [shape = 'u8[786432]{0}', space=vmem, size = 0xc0000, scoped, tag = 'input window, operand 6, single buffered']
    #allocation7 [shape = 's32[1]{0}', space=sflag, size = 0x4, scoped, tag = 'scoped memory for tpu_custom_call.1']
    #allocation8 [shape = 's32[1]{0}', space=sflag, size = 0x4, scoped, tag = 'scoped memory for tpu_custom_call.1']
    #allocation9 [shape = 'u8[32768]{0}', space=vmem, size = 0x8000, scoped, tag = 'output window, operand 0, single buffered']
    #allocation10 [shape = 'u8[32768]{0}', space=vmem, size = 0x8000, scoped, tag = 'output window, operand 1, single buffered']
    #allocation11 [shape = 's32[1]{0}', space=sflag, size = 0x4, scoped, tag = 'scoped memory for tpu_custom_call.1']
    %15 = vsyncpa [#allocation7], 0
    %16 = vsyncpa [#allocation8], 0
    %17 = vsyncpa [#allocation11], 0
    // Predicated region
    $region2: #{tpu_custom_call.1} parent=1 // pred_check
      _
    $region3: #{tpu_custom_call.1} parent=1 // pred_check_branch
      %19 = sbr.rel (0) target = $region5
    $region4: #{tpu_custom_call.1} parent=1 // pred_region
      _
    $region5: #{tpu_custom_call.1} parent=1 // pred_fallthru
      _
    // Predicated region
    $region6: #{tpu_custom_call.1} parent=1 // pred_check
      _
    $region7: #{tpu_custom_call.1} parent=1 // pred_check_branch
      %21 = sbr.rel (0) target = $region9
    $region8: #{tpu_custom_call.1} parent=1 // pred_region
      %s22 = ssub.s32 0, 0
      %s23 = smul.u32 8, %s22
      %p24 = scmp.lt.s32.totalorder %s23, 7
      %s25 = scalar_select %p24, %s23, 7
      %s26 = smul.addr %s25, 8
      %s27 = scalar_lea.vmem %s1, %s26
      %s28 = ssub.s32 0, 0
      %s29 = smul.u32 8, %s28
    $region9: #{tpu_custom_call.1} parent=1 // pred_fallthru
      _
    // Predicated region
    $region10: #{tpu_custom_call.1} parent=1 // pred_check
      _
    $region11: #{tpu_custom_call.1} parent=1 // pred_check_branch
      %31 = sbr.rel (0) target = $region13
    $region12: #{tpu_custom_call.1} parent=1 // pred_region
      _
    $region13: #{tpu_custom_call.1} parent=1 // pred_fallthru
      _
    // Predicated region
    $region14: #{tpu_custom_call.1} parent=1 // pred_check
      _
    $region15: #{tpu_custom_call.1} parent=1 // pred_check_branch
      %33 = sbr.rel (0) target = $region17
    $region16: #{tpu_custom_call.1} parent=1 // pred_region
      _
    $region17: #{tpu_custom_call.1} parent=1 // pred_fallthru
      _
    // Predicated region
    $region18: #{tpu_custom_call.1} parent=1 // pred_check
      _
    $region19: #{tpu_custom_call.1} parent=1 // pred_check_branch
      %35 = sbr.rel (0) target = $region21
    $region20: #{tpu_custom_call.1} parent=1 // pred_region
      _
    $region21: #{tpu_custom_call.1} parent=1 // pred_fallthru
      _
    // Predicated region
    $region22: #{tpu_custom_call.1} parent=1 // pred_check
      _
    $region23: #{tpu_custom_call.1} parent=1 // pred_check_branch
      %37 = sbr.rel (0) target = $region25
    $region24: #{tpu_custom_call.1} parent=1 // pred_region
      _
    $region25: #{tpu_custom_call.1} parent=1 // pred_fallthru
      _
    // Predicated region
    $region26: #{tpu_custom_call.1} parent=1 // pred_check
      _
    $region27: #{tpu_custom_call.1} parent=1 // pred_check_branch
      %39 = sbr.rel (0) target = $region29
    $region28: #{tpu_custom_call.1} parent=1 // pred_region
      %s41 = ssub.s32 24576, 24576
      %42 = vsyncadd [#allocation7], %s41
      %s43 = sshll.u32 [#allocation6], 4
      %s44 = int_to_ptr.vmem [resolvable:$true] %s43
      %49 = dma.hbm_to_vmem [thread:$0]  %s6, 24576, %s44, [#allocation7], 768, 768, 48
    $region29: #{tpu_custom_call.1} parent=1 // pred_fallthru
      _
    // Predicated region
    $region30: #{tpu_custom_call.1} parent=1 // pred_check
      _
    $region31: #{tpu_custom_call.1} parent=1 // pred_check_branch
      %51 = sbr.rel (0) target = $region33
    $region32: #{tpu_custom_call.1} parent=1 // pred_region
      _
    $region33: #{tpu_custom_call.1} parent=1 // pred_fallthru
      _
    // Predicated region
    $region34: #{tpu_custom_call.1} parent=1 // pred_check
      _
    $region35: #{tpu_custom_call.1} parent=1 // pred_check_branch
      %53 = sbr.rel (0) target = $region37
    $region36: #{tpu_custom_call.1} parent=1 // pred_region
      %54 = dma.done [#allocation7], 24576
    $region37: #{tpu_custom_call.1} parent=1 // pred_fallthru
      _
    %s55 = ssub.s32 0, 0
    %s56 = smul.u32 8, %s55
    %p57 = scmp.lt.s32.totalorder %s56, 7
    %s58 = scalar_select %p57, %s56, 7
    %s59 = smul.addr %s58, 8
    %s60 = scalar_lea.vmem %s1, %s59
    %s61 = ssub.s32 0, 0
    %s62 = smul.u32 8, %s61
    %p63 = scmp.lt.s32.totalorder %s62, 7
    %s64 = scalar_select %p63, %s62, 7
    %s65 = smul.addr %s64, 8
    %s66 = scalar_lea.vmem %s1, %s65
    %s67 = ssub.s32 0, 0
    %s68 = smul.u32 8, %s67
    %s69 = ssub.s32 0, 0
    %s70 = smul.u32 8, %s69
    %p71 = scmp.eq.s32.totalorder 0, 0
    // Predicated region
    $region38: #{tpu_custom_call.1} parent=1 // pred_check
      %p72 = pneg %p71
    $region39: #{tpu_custom_call.1} parent=1 // pred_check_branch
      %74 = sbr.rel (%p72) target = $region41
    $region40: #{tpu_custom_call.1} parent=1 // pred_region
      %75 = vst [vmem:[#allocation2] sm:$0xff] 0.0
      %76 = vst [vmem:[#allocation3] sm:$0xff] 0.0
    $region41: #{tpu_custom_call.1} parent=1 // pred_fallthru
      _
    %v77 = vld [vmem:[%s0] sm:$0xff]
    %v78 = vld [vmem:[%s0 + $0x8] sm:$0xff]
    %v79 = vld [vmem:[%s0 + $0x10] sm:$0xff]
    %v80 = vld [vmem:[%s0 + $0x18] sm:$0xff]
    %v81 = vld [vmem:[%s0 + $0x20] sm:$0xff]
    %v82 = vld [vmem:[%s0 + $0x28] sm:$0xff]
    %v83 = vld [vmem:[%s0 + $0x30] sm:$0xff]
    %v84 = vld [vmem:[%s0 + $0x38] sm:$0xff]
    %v85 = vld [vmem:[%s2] sm:$0xff]
    %v86 = vld [vmem:[%s2 + $0x8] sm:$0xff]
    %v87 = vld [vmem:[%s2 + $0x10] sm:$0xff]
    %v88 = vld [vmem:[%s2 + $0x18] sm:$0xff]
    %v89 = vld [vmem:[%s2 + $0x20] sm:$0xff]
    %v90 = vld [vmem:[%s2 + $0x28] sm:$0xff]
    %v91 = vld [vmem:[%s2 + $0x30] sm:$0xf]
    %v92 = vld [vmem:[%s2 + $0x38] sm:$0xf]
    %v93 = vld [vmem:[%s2 + $0x40] sm:$0xf]
    %v94 = vld [vmem:[%s4] sm:$0x7]
    %v96 = vlaneseq
    %v97 = vshrl.u32 %v96, 7
    %v98 = vsub.s32 0, %v97
    %v99 = vrot.slane %v94, %v98
    %v100 = vlaneseq
    %v101 = vshrl.u32 %v100, 7
    %v102 = vsub.s32 1, %v101
    %v103 = vrot.slane %v94, %v102
    %v104 = vlaneseq
    %v105 = vshrl.u32 %v104, 7
    %v106 = vsub.s32 2, %v105
    %v107 = vrot.slane %v94, %v106
    %vm111 = vcmask 162816
    %v113 = vsel %vm111, %v77, 0
    %v116 = vsel %vm111, %v78, 0
    %v119 = vsel %vm111, %v79, 0
    %v122 = vsel %vm111, %v80, 0
    %v125 = vsel %vm111, %v81, 0
    %v128 = vsel %vm111, %v82, 0
    %v131 = vsel %vm111, %v83, 0
    %v134 = vsel %vm111, %v84, 0
    %vm136 = vcmask 1043456
    %v138 = vsel %vm136, %v91, 0
    %v141 = vsel %vm136, %v92, 0
    %v144 = vsel %vm136, %v93, 0
    %146 = vmatprep.subr.mxu0 0.0
    %147 = vmatpush1.msra.mxu0 0.0
    %148 = vmatprep.subr.mxu0 0.0
    %149 = vmatpush1.msra.mxu0 0.0
    %150 = vmatprep.subr.mxu0 0.0
    %151 = vmatpush1.msra.mxu0 0.0
    %152 = vmatprep.subr.mxu0 0.0
    %153 = vmatpush1.msra.mxu0 0.0
    %154 = vmatprep.subr.mxu0 0.0
    %155 = vmatpush1.msra.mxu0 0.0
    %156 = vmatprep.subr.mxu0 0.0
    %157 = vmatpush1.msra.mxu0 0.0
    %158 = vmatprep.subr.mxu0 0.0
    %159 = vmatpush1.msra.mxu0 0.0
    %160 = vmatprep.subr.mxu0 0.0
    %161 = vmatpush1.msra.mxu0 0.0
    %162 = vmatprep.subr.mxu0 0.0
    %163 = vmatpush1.msra.mxu0 0.0
    %164 = vmatprep.subr.mxu0 0.0
    %165 = vmatpush1.msra.mxu0 0.0
    %166 = vmatprep.subr.mxu0 0.0
    %167 = vmatpush1.msra.mxu0 0.0
    %168 = vmatprep.subr.mxu0 0.0
    %169 = vmatpush1.msra.mxu0 0.0
    %170 = vmatprep.subr.mxu0 0.0
    %171 = vmatpush1.msra.mxu0 0.0
    %172 = vmatprep.subr.mxu0 %v141
    %173 = vmatpush1.msra.mxu0 %v138
    %174 = vmatprep.subr.mxu0 %v89
    %175 = vmatpush1.msra.mxu0 %v88
    %176 = vmatprep.subr.mxu0 %v86
    %177 = vmatpush1.msra.mxu0 %v85
    %178 = vmatprep.subr.mxu0 0.0
    %179 = vmatpush2.msra.mxu0 0.0
    %180 = vmatprep.subr.mxu0 0.0
    %181 = vmatpush2.msra.mxu0 0.0
    %182 = vmatprep.subr.mxu0 0.0
    %183 = vmatpush2.msra.mxu0 0.0
    %184 = vmatprep.subr.mxu0 0.0
    %185 = vmatpush2.msra.mxu0 0.0
    %186 = vmatprep.subr.mxu0 0.0
    %187 = vmatpush2.msra.mxu0 0.0
    %188 = vmatprep.subr.mxu0 0.0
    %189 = vmatpush2.msra.mxu0 0.0
    %190 = vmatprep.subr.mxu0 0.0
    %191 = vmatpush2.msra.mxu0 0.0
    %192 = vmatprep.subr.mxu0 0.0
    %193 = vmatpush2.msra.mxu0 0.0
    %194 = vmatprep.subr.mxu0 0.0
    %195 = vmatpush2.msra.mxu0 0.0
    %196 = vmatprep.subr.mxu0 0.0
    %197 = vmatpush2.msra.mxu0 0.0
    %198 = vmatprep.subr.mxu0 0.0
    %199 = vmatpush2.msra.mxu0 0.0
    %200 = vmatprep.subr.mxu0 0.0
    %201 = vmatpush2.msra.mxu0 0.0
    %202 = vmatprep.subr.mxu0 0.0
    %203 = vmatpush2.msra.mxu0 0.0
    %204 = vmatprep.subr.mxu0 0.0
    %205 = vmatpush2.msra.mxu0 0.0
    %206 = vmatprep.subr.mxu0 0.0
    %207 = vmatpush2.msra.mxu0 0.0
    %208 = vmatprep.subr.mxu0 0.0
    %209 = vmatpush2.msra.mxu0 0.0
    %210 = vmatprep.mubr.f32.mxu0 0.0
    %211 = vmatmul.mubr.f32.gmra.mxu0 %v113
    %v212 = vpop.f32.mrf.mxu0
    %v213 = vadd.f32 %v99, %v212
    %v214 = vpop.f32.mrf.mxu0
    %v215 = vadd.f32 %v103, %v214
    %216 = vmatprep.mubr.f32.mxu0 0.0
    %217 = vmatmul.mubr.f32.gmra.mxu0 %v116
    %v218 = vpop.f32.mrf.mxu0
    %v219 = vadd.f32 %v99, %v218
    %v220 = vpop.f32.mrf.mxu0
    %v221 = vadd.f32 %v103, %v220
    %222 = vmatprep.mubr.f32.mxu0 0.0
    %223 = vmatmul.mubr.f32.gmra.mxu0 %v119
    %v224 = vpop.f32.mrf.mxu0
    %v225 = vadd.f32 %v99, %v224
    %v226 = vpop.f32.mrf.mxu0
    %v227 = vadd.f32 %v103, %v226
    %228 = vmatprep.mubr.f32.mxu0 0.0
    %229 = vmatmul.mubr.f32.gmra.mxu0 %v122
    %v230 = vpop.f32.mrf.mxu0
    %v231 = vadd.f32 %v99, %v230
    %v232 = vpop.f32.mrf.mxu0
    %v233 = vadd.f32 %v103, %v232
    %234 = vmatprep.mubr.f32.mxu0 0.0
    %235 = vmatmul.mubr.f32.gmra.mxu0 %v125
    %v236 = vpop.f32.mrf.mxu0
    %v237 = vadd.f32 %v99, %v236
    %v238 = vpop.f32.mrf.mxu0
    %v239 = vadd.f32 %v103, %v238
    %240 = vmatprep.mubr.f32.mxu0 0.0
    %241 = vmatmul.mubr.f32.gmra.mxu0 %v128
    %v242 = vpop.f32.mrf.mxu0
    %v243 = vadd.f32 %v99, %v242
    %v244 = vpop.f32.mrf.mxu0
    %v245 = vadd.f32 %v103, %v244
    %246 = vmatprep.mubr.f32.mxu0 0.0
    %247 = vmatmul.mubr.f32.gmra.mxu0 %v131
    %v248 = vpop.f32.mrf.mxu0
    %v249 = vadd.f32 %v99, %v248
    %v250 = vpop.f32.mrf.mxu0
    %v251 = vadd.f32 %v103, %v250
    %252 = vmatprep.mubr.f32.mxu0 0.0
    %253 = vmatmul.mubr.f32.gmra.mxu0 %v134
    %v254 = vpop.f32.mrf.mxu0
    %v255 = vadd.f32 %v99, %v254
    %v256 = vpop.f32.mrf.mxu0
    %v257 = vadd.f32 %v103, %v256
    %258 = vdwg.mxu0
    %259 = vmatprep.subr.mxu0 0.0
    %260 = vmatpush1.msra.mxu0 0.0
    %261 = vmatprep.subr.mxu0 0.0
    %262 = vmatpush1.msra.mxu0 0.0
    %263 = vmatprep.subr.mxu0 0.0
    %264 = vmatpush1.msra.mxu0 0.0
    %265 = vmatprep.subr.mxu0 0.0
    %266 = vmatpush1.msra.mxu0 0.0
    %267 = vmatprep.subr.mxu0 0.0
    %268 = vmatpush1.msra.mxu0 0.0
    %269 = vmatprep.subr.mxu0 0.0
    %270 = vmatpush1.msra.mxu0 0.0
    %271 = vmatprep.subr.mxu0 0.0
    %272 = vmatpush1.msra.mxu0 0.0
    %273 = vmatprep.subr.mxu0 0.0
    %274 = vmatpush1.msra.mxu0 0.0
    %275 = vmatprep.subr.mxu0 0.0
    %276 = vmatpush1.msra.mxu0 0.0
    %277 = vmatprep.subr.mxu0 0.0
    %278 = vmatpush1.msra.mxu0 0.0
    %279 = vmatprep.subr.mxu0 0.0
    %280 = vmatpush1.msra.mxu0 0.0
    %281 = vmatprep.subr.mxu0 0.0
    %282 = vmatpush1.msra.mxu0 0.0
    %283 = vmatprep.subr.mxu0 0.0
    %284 = vmatpush1.msra.mxu0 0.0
    %285 = vmatprep.subr.mxu0 0.0
    %286 = vmatpush1.msra.mxu0 %v144
    %287 = vmatprep.subr.mxu0 0.0
    %288 = vmatpush1.msra.mxu0 %v90
    %289 = vmatprep.subr.mxu0 0.0
    %290 = vmatpush1.msra.mxu0 %v87
    %291 = vmatprep.subr.mxu0 0.0
    %292 = vmatpush2.msra.mxu0 0.0
    %293 = vmatprep.subr.mxu0 0.0
    %294 = vmatpush2.msra.mxu0 0.0
    %295 = vmatprep.subr.mxu0 0.0
    %296 = vmatpush2.msra.mxu0 0.0
    %297 = vmatprep.subr.mxu0 0.0
    %298 = vmatpush2.msra.mxu0 0.0
    %299 = vmatprep.subr.mxu0 0.0
    %300 = vmatpush2.msra.mxu0 0.0
    %301 = vmatprep.subr.mxu0 0.0
    %302 = vmatpush2.msra.mxu0 0.0
    %303 = vmatprep.subr.mxu0 0.0
    %304 = vmatpush2.msra.mxu0 0.0
    %305 = vmatprep.subr.mxu0 0.0
    %306 = vmatpush2.msra.mxu0 0.0
    %307 = vmatprep.subr.mxu0 0.0
    %308 = vmatpush2.msra.mxu0 0.0
    %309 = vmatprep.subr.mxu0 0.0
    %310 = vmatpush2.msra.mxu0 0.0
    %311 = vmatprep.subr.mxu0 0.0
    %312 = vmatpush2.msra.mxu0 0.0
    %313 = vmatprep.subr.mxu0 0.0
    %314 = vmatpush2.msra.mxu0 0.0
    %315 = vmatprep.subr.mxu0 0.0
    %316 = vmatpush2.msra.mxu0 0.0
    %317 = vmatprep.subr.mxu0 0.0
    %318 = vmatpush2.msra.mxu0 0.0
    %319 = vmatprep.subr.mxu0 0.0
    %320 = vmatpush2.msra.mxu0 0.0
    %321 = vmatprep.subr.mxu0 0.0
    %322 = vmatpush2.msra.mxu0 0.0
    %323 = vmatprep.mubr.f32.mxu0 0.0
    %324 = vmatmul.mubr.f32.gmra.mxu0 %v113
    %v325 = vpop.f32.mrf.mxu0
    %v326 = vadd.f32 %v107, %v325
    %v327 = vpop.f32.mrf.mxu0
    %328 = vmatprep.mubr.f32.mxu0 0.0
    %329 = vmatmul.mubr.f32.gmra.mxu0 %v116
    %v330 = vpop.f32.mrf.mxu0
    %v331 = vadd.f32 %v107, %v330
    %v332 = vpop.f32.mrf.mxu0
    %333 = vmatprep.mubr.f32.mxu0 0.0
    %334 = vmatmul.mubr.f32.gmra.mxu0 %v119
    %v335 = vpop.f32.mrf.mxu0
    %v336 = vadd.f32 %v107, %v335
    %v337 = vpop.f32.mrf.mxu0
    %338 = vmatprep.mubr.f32.mxu0 0.0
    %339 = vmatmul.mubr.f32.gmra.mxu0 %v122
    %v340 = vpop.f32.mrf.mxu0
    %v341 = vadd.f32 %v107, %v340
    %v342 = vpop.f32.mrf.mxu0
    %343 = vmatprep.mubr.f32.mxu0 0.0
    %344 = vmatmul.mubr.f32.gmra.mxu0 %v125
    %v345 = vpop.f32.mrf.mxu0
    %v346 = vadd.f32 %v107, %v345
    %v347 = vpop.f32.mrf.mxu0
    %348 = vmatprep.mubr.f32.mxu0 0.0
    %349 = vmatmul.mubr.f32.gmra.mxu0 %v128
    %v350 = vpop.f32.mrf.mxu0
    %v351 = vadd.f32 %v107, %v350
    %v352 = vpop.f32.mrf.mxu0
    %353 = vmatprep.mubr.f32.mxu0 0.0
    %354 = vmatmul.mubr.f32.gmra.mxu0 %v131
    %v355 = vpop.f32.mrf.mxu0
    %v356 = vadd.f32 %v107, %v355
    %v357 = vpop.f32.mrf.mxu0
    %358 = vmatprep.mubr.f32.mxu0 0.0
    %359 = vmatmul.mubr.f32.gmra.mxu0 %v134
    %v360 = vpop.f32.mrf.mxu0
    %v361 = vadd.f32 %v107, %v360
    %v362 = vpop.f32.mrf.mxu0
    %363 = vdwg.mxu0
    %364 = vst [vmem:[#allocation4] sm:$0xff] %v213
    %365 = vst [vmem:[#allocation4 + $0x8] sm:$0xff] %v215
    %366 = vst [vmem:[#allocation4 + $0x10] sm:$0xff] %v326
    %367 = vst [vmem:[#allocation4 + $0x18] sm:$0xff] %v219
    %368 = vst [vmem:[#allocation4 + $0x20] sm:$0xff] %v221
    %369 = vst [vmem:[#allocation4 + $0x28] sm:$0xff] %v331
    %370 = vst [vmem:[#allocation4 + $0x30] sm:$0xff] %v225
    %371 = vst [vmem:[#allocation4 + $0x38] sm:$0xff] %v227
    %372 = vst [vmem:[#allocation4 + $0x40] sm:$0xff] %v336
    %373 = vst [vmem:[#allocation4 + $0x48] sm:$0xff] %v231
    %374 = vst [vmem:[#allocation4 + $0x50] sm:$0xff] %v233
    %375 = vst [vmem:[#allocation4 + $0x58] sm:$0xff] %v341
    %376 = vst [vmem:[#allocation4 + $0x60] sm:$0xff] %v237
    %377 = vst [vmem:[#allocation4 + $0x68] sm:$0xff] %v239
    %378 = vst [vmem:[#allocation4 + $0x70] sm:$0xff] %v346
    %379 = vst [vmem:[#allocation4 + $0x78] sm:$0xff] %v243
    %380 = vst [vmem:[#allocation4 + $0x80] sm:$0xff] %v245
    %381 = vst [vmem:[#allocation4 + $0x88] sm:$0xff] %v351
    %382 = vst [vmem:[#allocation4 + $0x90] sm:$0xff] %v249
    %383 = vst [vmem:[#allocation4 + $0x98] sm:$0xff] %v251
    %384 = vst [vmem:[#allocation4 + $0xa0] sm:$0xff] %v356
    %385 = vst [vmem:[#allocation4 + $0xa8] sm:$0xff] %v255
    %386 = vst [vmem:[#allocation4 + $0xb0] sm:$0xff] %v257
    %387 = vst [vmem:[#allocation4 + $0xb8] sm:$0xff] %v361
    %v388 = vld [vmem:[%s66] sm:$0xff]
    %v389 = vld [vmem:[%s66 + $0x8] sm:$0xff]
    %v390 = vld [vmem:[%s66 + $0x10] sm:$0xff]
    %v391 = vld [vmem:[%s66 + $0x18] sm:$0xff]
    %v392 = vld [vmem:[%s66 + $0x20] sm:$0xff]
    %v393 = vld [vmem:[%s66 + $0x28] sm:$0xff]
    %v394 = vld [vmem:[%s66 + $0x30] sm:$0xff]
    %v395 = vld [vmem:[%s66 + $0x38] sm:$0xff]
    %v396 = vld [vmem:[%s3] sm:$0xff]
    %v397 = vld [vmem:[%s3 + $0x8] sm:$0xff]
    %v398 = vld [vmem:[%s3 + $0x10] sm:$0xff]
    %v399 = vld [vmem:[%s3 + $0x18] sm:$0xff]
    %v400 = vld [vmem:[%s3 + $0x20] sm:$0xff]
    %v401 = vld [vmem:[%s3 + $0x28] sm:$0xff]
    %v402 = vld [vmem:[%s3 + $0x30] sm:$0xf]
    %v403 = vld [vmem:[%s3 + $0x38] sm:$0xf]
    %v404 = vld [vmem:[%s3 + $0x40] sm:$0xf]
    %v405 = vld [vmem:[%s5] sm:$0x7]
    %v407 = vlaneseq
    %v408 = vshrl.u32 %v407, 7
    %v409 = vsub.s32 0, %v408
    %v410 = vrot.slane %v405, %v409
    %v411 = vlaneseq
    %v412 = vshrl.u32 %v411, 7
    %v413 = vsub.s32 1, %v412
    %v414 = vrot.slane %v405, %v413
    %v415 = vlaneseq
    %v416 = vshrl.u32 %v415, 7
    %v417 = vsub.s32 2, %v416
    %v418 = vrot.slane %v405, %v417
    %v423 = vsel %vm111, %v388, 0
    %v426 = vsel %vm111, %v389, 0
    %v429 = vsel %vm111, %v390, 0
    %v432 = vsel %vm111, %v391, 0
    %v435 = vsel %vm111, %v392, 0
    %v438 = vsel %vm111, %v393, 0
    %v441 = vsel %vm111, %v394, 0
    %v444 = vsel %vm111, %v395, 0
    %v447 = vsel %vm136, %v402, 0
    %v450 = vsel %vm136, %v403, 0
    %v453 = vsel %vm136, %v404, 0
    %455 = vmatprep.subr.mxu0 0.0
    %456 = vmatpush1.msra.mxu0 0.0
    %457 = vmatprep.subr.mxu0 0.0
    %458 = vmatpush1.msra.mxu0 0.0
    %459 = vmatprep.subr.mxu0 0.0
    %460 = vmatpush1.msra.mxu0 0.0
    %461 = vmatprep.subr.mxu0 0.0
    %462 = vmatpush1.msra.mxu0 0.0
    %463 = vmatprep.subr.mxu0 0.0
    %464 = vmatpush1.msra.mxu0 0.0
    %465 = vmatprep.subr.mxu0 0.0
    %466 = vmatpush1.msra.mxu0 0.0
    %467 = vmatprep.subr.mxu0 0.0
    %468 = vmatpush1.msra.mxu0 0.0
    %469 = vmatprep.subr.mxu0 0.0
    %470 = vmatpush1.msra.mxu0 0.0
    %471 = vmatprep.subr.mxu0 0.0
    %472 = vmatpush1.msra.mxu0 0.0
    %473 = vmatprep.subr.mxu0 0.0
    %474 = vmatpush1.msra.mxu0 0.0
    %475 = vmatprep.subr.mxu0 0.0
    %476 = vmatpush1.msra.mxu0 0.0
    %477 = vmatprep.subr.mxu0 0.0
    %478 = vmatpush1.msra.mxu0 0.0
    %479 = vmatprep.subr.mxu0 0.0
    %480 = vmatpush1.msra.mxu0 0.0
    %481 = vmatprep.subr.mxu0 %v450
    %482 = vmatpush1.msra.mxu0 %v447
    %483 = vmatprep.subr.mxu0 %v400
    %484 = vmatpush1.msra.mxu0 %v399
    %485 = vmatprep.subr.mxu0 %v397
    %486 = vmatpush1.msra.mxu0 %v396
    %487 = vmatprep.subr.mxu0 0.0
    %488 = vmatpush2.msra.mxu0 0.0
    %489 = vmatprep.subr.mxu0 0.0
    %490 = vmatpush2.msra.mxu0 0.0
    %491 = vmatprep.subr.mxu0 0.0
    %492 = vmatpush2.msra.mxu0 0.0
    %493 = vmatprep.subr.mxu0 0.0
    %494 = vmatpush2.msra.mxu0 0.0
    %495 = vmatprep.subr.mxu0 0.0
    %496 = vmatpush2.msra.mxu0 0.0
    %497 = vmatprep.subr.mxu0 0.0
    %498 = vmatpush2.msra.mxu0 0.0
    %499 = vmatprep.subr.mxu0 0.0
    %500 = vmatpush2.msra.mxu0 0.0
    %501 = vmatprep.subr.mxu0 0.0
    %502 = vmatpush2.msra.mxu0 0.0
    %503 = vmatprep.subr.mxu0 0.0
    %504 = vmatpush2.msra.mxu0 0.0
    %505 = vmatprep.subr.mxu0 0.0
    %506 = vmatpush2.msra.mxu0 0.0
    %507 = vmatprep.subr.mxu0 0.0
    %508 = vmatpush2.msra.mxu0 0.0
    %509 = vmatprep.subr.mxu0 0.0
    %510 = vmatpush2.msra.mxu0 0.0
    %511 = vmatprep.subr.mxu0 0.0
    %512 = vmatpush2.msra.mxu0 0.0
    %513 = vmatprep.subr.mxu0 0.0
    %514 = vmatpush2.msra.mxu0 0.0
    %515 = vmatprep.subr.mxu0 0.0
    %516 = vmatpush2.msra.mxu0 0.0
    %517 = vmatprep.subr.mxu0 0.0
    %518 = vmatpush2.msra.mxu0 0.0
    %519 = vmatprep.mubr.f32.mxu0 0.0
    %520 = vmatmul.mubr.f32.gmra.mxu0 %v423
    %v521 = vpop.f32.mrf.mxu0
    %v522 = vadd.f32 %v410, %v521
    %v523 = vpop.f32.mrf.mxu0
    %v524 = vadd.f32 %v414, %v523
    %525 = vmatprep.mubr.f32.mxu0 0.0
    %526 = vmatmul.mubr.f32.gmra.mxu0 %v426
    %v527 = vpop.f32.mrf.mxu0
    %v528 = vadd.f32 %v410, %v527
    %v529 = vpop.f32.mrf.mxu0
    %v530 = vadd.f32 %v414, %v529
    %531 = vmatprep.mubr.f32.mxu0 0.0
    %532 = vmatmul.mubr.f32.gmra.mxu0 %v429
    %v533 = vpop.f32.mrf.mxu0
    %v534 = vadd.f32 %v410, %v533
    %v535 = vpop.f32.mrf.mxu0
    %v536 = vadd.f32 %v414, %v535
    %537 = vmatprep.mubr.f32.mxu0 0.0
    %538 = vmatmul.mubr.f32.gmra.mxu0 %v432
    %v539 = vpop.f32.mrf.mxu0
    %v540 = vadd.f32 %v410, %v539
    %v541 = vpop.f32.mrf.mxu0
    %v542 = vadd.f32 %v414, %v541
    %543 = vmatprep.mubr.f32.mxu0 0.0
    %544 = vmatmul.mubr.f32.gmra.mxu0 %v435
    %v545 = vpop.f32.mrf.mxu0
    %v546 = vadd.f32 %v410, %v545
    %v547 = vpop.f32.mrf.mxu0
    %v548 = vadd.f32 %v414, %v547
    %549 = vmatprep.mubr.f32.mxu0 0.0
    %550 = vmatmul.mubr.f32.gmra.mxu0 %v438
    %v551 = vpop.f32.mrf.mxu0
    %v552 = vadd.f32 %v410, %v551
    %v553 = vpop.f32.mrf.mxu0
    %v554 = vadd.f32 %v414, %v553
    %555 = vmatprep.mubr.f32.mxu0 0.0
    %556 = vmatmul.mubr.f32.gmra.mxu0 %v441
    %v557 = vpop.f32.mrf.mxu0
    %v558 = vadd.f32 %v410, %v557
    %v559 = vpop.f32.mrf.mxu0
    %v560 = vadd.f32 %v414, %v559
    %561 = vmatprep.mubr.f32.mxu0 0.0
    %562 = vmatmul.mubr.f32.gmra.mxu0 %v444
    %v563 = vpop.f32.mrf.mxu0
    %v564 = vadd.f32 %v410, %v563
    %v565 = vpop.f32.mrf.mxu0
    %v566 = vadd.f32 %v414, %v565
    %567 = vdwg.mxu0
    %568 = vmatprep.subr.mxu0 0.0
    %569 = vmatpush1.msra.mxu0 0.0
    %570 = vmatprep.subr.mxu0 0.0
    %571 = vmatpush1.msra.mxu0 0.0
    %572 = vmatprep.subr.mxu0 0.0
    %573 = vmatpush1.msra.mxu0 0.0
    %574 = vmatprep.subr.mxu0 0.0
    %575 = vmatpush1.msra.mxu0 0.0
    %576 = vmatprep.subr.mxu0 0.0
    %577 = vmatpush1.msra.mxu0 0.0
    %578 = vmatprep.subr.mxu0 0.0
    %579 = vmatpush1.msra.mxu0 0.0
    %580 = vmatprep.subr.mxu0 0.0
    %581 = vmatpush1.msra.mxu0 0.0
    %582 = vmatprep.subr.mxu0 0.0
    %583 = vmatpush1.msra.mxu0 0.0
    %584 = vmatprep.subr.mxu0 0.0
    %585 = vmatpush1.msra.mxu0 0.0
    %586 = vmatprep.subr.mxu0 0.0
    %587 = vmatpush1.msra.mxu0 0.0
    %588 = vmatprep.subr.mxu0 0.0
    %589 = vmatpush1.msra.mxu0 0.0
    %590 = vmatprep.subr.mxu0 0.0
    %591 = vmatpush1.msra.mxu0 0.0
    %592 = vmatprep.subr.mxu0 0.0
    %593 = vmatpush1.msra.mxu0 0.0
    %594 = vmatprep.subr.mxu0 0.0
    %595 = vmatpush1.msra.mxu0 %v453
    %596 = vmatprep.subr.mxu0 0.0
    %597 = vmatpush1.msra.mxu0 %v401
    %598 = vmatprep.subr.mxu0 0.0
    %599 = vmatpush1.msra.mxu0 %v398
    %600 = vmatprep.subr.mxu0 0.0
    %601 = vmatpush2.msra.mxu0 0.0
    %602 = vmatprep.subr.mxu0 0.0
    %603 = vmatpush2.msra.mxu0 0.0
    %604 = vmatprep.subr.mxu0 0.0
    %605 = vmatpush2.msra.mxu0 0.0
    %606 = vmatprep.subr.mxu0 0.0
    %607 = vmatpush2.msra.mxu0 0.0
    %608 = vmatprep.subr.mxu0 0.0
    %609 = vmatpush2.msra.mxu0 0.0
    %610 = vmatprep.subr.mxu0 0.0
    %611 = vmatpush2.msra.mxu0 0.0
    %612 = vmatprep.subr.mxu0 0.0
    %613 = vmatpush2.msra.mxu0 0.0
    %614 = vmatprep.subr.mxu0 0.0
    %615 = vmatpush2.msra.mxu0 0.0
    %616 = vmatprep.subr.mxu0 0.0
    %617 = vmatpush2.msra.mxu0 0.0
    %618 = vmatprep.subr.mxu0 0.0
    %619 = vmatpush2.msra.mxu0 0.0
    %620 = vmatprep.subr.mxu0 0.0
    %621 = vmatpush2.msra.mxu0 0.0
    %622 = vmatprep.subr.mxu0 0.0
    %623 = vmatpush2.msra.mxu0 0.0
    %624 = vmatprep.subr.mxu0 0.0
    %625 = vmatpush2.msra.mxu0 0.0
    %626 = vmatprep.subr.mxu0 0.0
    %627 = vmatpush2.msra.mxu0 0.0
    %628 = vmatprep.subr.mxu0 0.0
    %629 = vmatpush2.msra.mxu0 0.0
    %630 = vmatprep.subr.mxu0 0.0
    %631 = vmatpush2.msra.mxu0 0.0
    %632 = vmatprep.mubr.f32.mxu0 0.0
    %633 = vmatmul.mubr.f32.gmra.mxu0 %v423
    %v634 = vpop.f32.mrf.mxu0
    %v635 = vadd.f32 %v418, %v634
    %v636 = vpop.f32.mrf.mxu0
    %637 = vmatprep.mubr.f32.mxu0 0.0
    %638 = vmatmul.mubr.f32.gmra.mxu0 %v426
    %v639 = vpop.f32.mrf.mxu0
    %v640 = vadd.f32 %v418, %v639
    %v641 = vpop.f32.mrf.mxu0
    %642 = vmatprep.mubr.f32.mxu0 0.0
    %643 = vmatmul.mubr.f32.gmra.mxu0 %v429
    %v644 = vpop.f32.mrf.mxu0
    %v645 = vadd.f32 %v418, %v644
    %v646 = vpop.f32.mrf.mxu0
    %647 = vmatprep.mubr.f32.mxu0 0.0
    %648 = vmatmul.mubr.f32.gmra.mxu0 %v432
    %v649 = vpop.f32.mrf.mxu0
    %v650 = vadd.f32 %v418, %v649
    %v651 = vpop.f32.mrf.mxu0
    %652 = vmatprep.mubr.f32.mxu0 0.0
    %653 = vmatmul.mubr.f32.gmra.mxu0 %v435
    %v654 = vpop.f32.mrf.mxu0
    %v655 = vadd.f32 %v418, %v654
    %v656 = vpop.f32.mrf.mxu0
    %657 = vmatprep.mubr.f32.mxu0 0.0
    %658 = vmatmul.mubr.f32.gmra.mxu0 %v438
    %v659 = vpop.f32.mrf.mxu0
    %v660 = vadd.f32 %v418, %v659
    %v661 = vpop.f32.mrf.mxu0
    %662 = vmatprep.mubr.f32.mxu0 0.0
    %663 = vmatmul.mubr.f32.gmra.mxu0 %v441
    %v664 = vpop.f32.mrf.mxu0
    %v665 = vadd.f32 %v418, %v664
    %v666 = vpop.f32.mrf.mxu0
    %667 = vmatprep.mubr.f32.mxu0 0.0
    %668 = vmatmul.mubr.f32.gmra.mxu0 %v444
    %v669 = vpop.f32.mrf.mxu0
    %v670 = vadd.f32 %v418, %v669
    %v671 = vpop.f32.mrf.mxu0
    %672 = vdwg.mxu0
    %673 = vst [vmem:[#allocation5] sm:$0xff] %v522
    %674 = vst [vmem:[#allocation5 + $0x8] sm:$0xff] %v524
    %675 = vst [vmem:[#allocation5 + $0x10] sm:$0xff] %v635
    %676 = vst [vmem:[#allocation5 + $0x18] sm:$0xff] %v528
    %677 = vst [vmem:[#allocation5 + $0x20] sm:$0xff] %v530
    %678 = vst [vmem:[#allocation5 + $0x28] sm:$0xff] %v640
    %679 = vst [vmem:[#allocation5 + $0x30] sm:$0xff] %v534
    %680 = vst [vmem:[#allocation5 + $0x38] sm:$0xff] %v536
    %681 = vst [vmem:[#allocation5 + $0x40] sm:$0xff] %v645
    %682 = vst [vmem:[#allocation5 + $0x48] sm:$0xff] %v540
    %683 = vst [vmem:[#allocation5 + $0x50] sm:$0xff] %v542
    %684 = vst [vmem:[#allocation5 + $0x58] sm:$0xff] %v650
    %685 = vst [vmem:[#allocation5 + $0x60] sm:$0xff] %v546
    %686 = vst [vmem:[#allocation5 + $0x68] sm:$0xff] %v548
    %687 = vst [vmem:[#allocation5 + $0x70] sm:$0xff] %v655
    %688 = vst [vmem:[#allocation5 + $0x78] sm:$0xff] %v552
    %689 = vst [vmem:[#allocation5 + $0x80] sm:$0xff] %v554
    %690 = vst [vmem:[#allocation5 + $0x88] sm:$0xff] %v660
    %691 = vst [vmem:[#allocation5 + $0x90] sm:$0xff] %v558
    %692 = vst [vmem:[#allocation5 + $0x98] sm:$0xff] %v560
    %693 = vst [vmem:[#allocation5 + $0xa0] sm:$0xff] %v665
    %694 = vst [vmem:[#allocation5 + $0xa8] sm:$0xff] %v564
    %695 = vst [vmem:[#allocation5 + $0xb0] sm:$0xff] %v566
    %696 = vst [vmem:[#allocation5 + $0xb8] sm:$0xff] %v670
    %v697 = vld [vmem:[%s7] sm:$0x3f]
    %v699 = vlaneseq
    %v700 = vshrl.u32 %v699, 7
    %v701 = vsub.s32 0, %v700
    %v702 = vrot.slane %v697, %v701
    %v703 = vlaneseq
    %v704 = vshrl.u32 %v703, 7
    %v705 = vsub.s32 1, %v704
    %v706 = vrot.slane %v697, %v705
    %v707 = vlaneseq
    %v708 = vshrl.u32 %v707, 7
    %v709 = vsub.s32 2, %v708
    %v710 = vrot.slane %v697, %v709
    %v711 = vlaneseq
    %v712 = vshrl.u32 %v711, 7
    %v713 = vsub.s32 3, %v712
    %v714 = vrot.slane %v697, %v713
    %v715 = vlaneseq
    %v716 = vshrl.u32 %v715, 7
    %v717 = vsub.s32 4, %v716
    %v718 = vrot.slane %v697, %v717
    %v719 = vlaneseq
    %v720 = vshrl.u32 %v719, 7
    %v721 = vsub.s32 5, %v720
    %v722 = vrot.slane %v697, %v721
    loop: start=0, step=1, limit=2
    $region42: #{tpu_custom_call.1} parent=1 // loop_pre_header
      _
    $region43: #{tpu_custom_call.1} parent=1 // loop_header
      %s730 = sphi 0, %s734
      %p731 = scmp.ge.s32.totalorder %s730, 2
    $region44: #{tpu_custom_call.1} parent=1 // loop_header_branch
      %733 = sbr.rel (%p731) target = $region48
    $region45: #{tpu_custom_call.1} parent=1 // loop_body
      %s735 = smul.u32 %s730, 4
      %s736 = smul.u32 %s730, 32
      %s737 = ssub.s32 7, %s735
      %s738 = smul.u32 %s737, 8
      %v739 = vld [vmem:[#allocation2] sm:$0xff]
      %v740 = vld [vmem:[#allocation3] sm:$0xff]
      %v741 = vld [vmem:[#allocation6] sm:$0xff]
      %v742 = vld [vmem:[#allocation6 + $0x8] sm:$0xff]
      %v743 = vld [vmem:[#allocation6 + $0x10] sm:$0xff]
      %v744 = vld [vmem:[#allocation6 + $0x18] sm:$0xff]
      %v745 = vld [vmem:[#allocation6 + $0x20] sm:$0xff]
      %v746 = vld [vmem:[#allocation6 + $0x28] sm:$0xff]
      %v747 = vld [vmem:[#allocation6 + $0x30] sm:$0xff]
      %v748 = vld [vmem:[#allocation6 + $0x38] sm:$0xff]
      %v749 = vld [vmem:[#allocation6 + $0x40] sm:$0xff]
      %v750 = vld [vmem:[#allocation6 + $0x48] sm:$0xff]
      %v751 = vld [vmem:[#allocation6 + $0x50] sm:$0xff]
      %v752 = vld [vmem:[#allocation6 + $0x58] sm:$0xff]
      %v753 = vld [vmem:[#allocation6 + $0x60] sm:$0xff]
      %v754 = vld [vmem:[#allocation6 + $0x68] sm:$0xff]
      %v755 = vld [vmem:[#allocation6 + $0x70] sm:$0xff]
      %v756 = vld [vmem:[#allocation6 + $0x78] sm:$0xff]
      %v757 = vld [vmem:[#allocation6 + $0x80] sm:$0xff]
      %v758 = vld [vmem:[#allocation6 + $0x88] sm:$0xff]
      %v759 = vld [vmem:[#allocation6 + $0x90] sm:$0xff]
      %v760 = vld [vmem:[#allocation6 + $0x98] sm:$0xff]
      %v761 = vld [vmem:[#allocation6 + $0xa0] sm:$0xff]
      %v762 = vld [vmem:[#allocation6 + $0xa8] sm:$0xff]
      %v763 = vld [vmem:[#allocation6 + $0xb0] sm:$0xff]
      %v764 = vld [vmem:[#allocation6 + $0xb8] sm:$0xff]
      %v765 = vld [vmem:[#allocation6 + $0xc0] sm:$0xff]
      %v766 = vld [vmem:[#allocation6 + $0xc8] sm:$0xff]
      %v767 = vld [vmem:[#allocation6 + $0xd0] sm:$0xff]
      %v768 = vld [vmem:[#allocation6 + $0xd8] sm:$0xff]
      %v769 = vld [vmem:[#allocation6 + $0xe0] sm:$0xff]
      %v770 = vld [vmem:[#allocation6 + $0xe8] sm:$0xff]
      %v771 = vld [vmem:[#allocation6 + $0xf0] sm:$0xff]
      %v772 = vld [vmem:[#allocation6 + $0xf8] sm:$0xff]
      %v773 = vld [vmem:[#allocation6 + $0x100] sm:$0xff]
      %v774 = vld [vmem:[#allocation6 + $0x108] sm:$0xff]
      %v775 = vld [vmem:[#allocation6 + $0x110] sm:$0xff]
      %v776 = vld [vmem:[#allocation6 + $0x118] sm:$0xff]
      %v777 = vld [vmem:[#allocation6 + $0x120] sm:$0xff]
      %v778 = vld [vmem:[#allocation6 + $0x128] sm:$0xff]
      %v779 = vld [vmem:[#allocation6 + $0x130] sm:$0xff]
      %v780 = vld [vmem:[#allocation6 + $0x138] sm:$0xff]
      %v781 = vld [vmem:[#allocation6 + $0x140] sm:$0xff]
      %v782 = vld [vmem:[#allocation6 + $0x148] sm:$0xff]
      %v783 = vld [vmem:[#allocation6 + $0x150] sm:$0xff]
      %v784 = vld [vmem:[#allocation6 + $0x158] sm:$0xff]
      %v785 = vld [vmem:[#allocation6 + $0x160] sm:$0xff]
      %v786 = vld [vmem:[#allocation6 + $0x168] sm:$0xff]
      %v787 = vld [vmem:[#allocation6 + $0x170] sm:$0xff]
      %v788 = vld [vmem:[#allocation6 + $0x178] sm:$0xff]
      %v789 = vld [vmem:[#allocation6 + $0x180] sm:$0xff]
      %v790 = vld [vmem:[#allocation6 + $0x188] sm:$0xff]
      %v791 = vld [vmem:[#allocation6 + $0x190] sm:$0xff]
      %v792 = vld [vmem:[#allocation6 + $0x198] sm:$0xff]
      %v793 = vld [vmem:[#allocation6 + $0x1a0] sm:$0xff]
      %v794 = vld [vmem:[#allocation6 + $0x1a8] sm:$0xff]
      %v795 = vld [vmem:[#allocation6 + $0x1b0] sm:$0xff]
      %v796 = vld [vmem:[#allocation6 + $0x1b8] sm:$0xff]
      %v797 = vld [vmem:[#allocation6 + $0x1c0] sm:$0xff]
      %v798 = vld [vmem:[#allocation6 + $0x1c8] sm:$0xff]
      %v799 = vld [vmem:[#allocation6 + $0x1d0] sm:$0xff]
      %v800 = vld [vmem:[#allocation6 + $0x1d8] sm:$0xff]
      %v801 = vld [vmem:[#allocation6 + $0x1e0] sm:$0xff]
      %v802 = vld [vmem:[#allocation6 + $0x1e8] sm:$0xff]
      %v803 = vld [vmem:[#allocation6 + $0x1f0] sm:$0xff]
      %v804 = vld [vmem:[#allocation6 + $0x1f8] sm:$0xff]
      %v805 = vld [vmem:[#allocation6 + $0x200] sm:$0xff]
      %v806 = vld [vmem:[#allocation6 + $0x208] sm:$0xff]
      %v807 = vld [vmem:[#allocation6 + $0x210] sm:$0xff]
      %v808 = vld [vmem:[#allocation6 + $0x218] sm:$0xff]
      %v809 = vld [vmem:[#allocation6 + $0x220] sm:$0xff]
      %v810 = vld [vmem:[#allocation6 + $0x228] sm:$0xff]
      %v811 = vld [vmem:[#allocation6 + $0x230] sm:$0xff]
      %v812 = vld [vmem:[#allocation6 + $0x238] sm:$0xff]
      %v813 = vld [vmem:[#allocation6 + $0x240] sm:$0xff]
      %v814 = vld [vmem:[#allocation6 + $0x248] sm:$0xff]
      %v815 = vld [vmem:[#allocation6 + $0x250] sm:$0xff]
      %v816 = vld [vmem:[#allocation6 + $0x258] sm:$0xff]
      %v817 = vld [vmem:[#allocation6 + $0x260] sm:$0xff]
      %v818 = vld [vmem:[#allocation6 + $0x268] sm:$0xff]
      %v819 = vld [vmem:[#allocation6 + $0x270] sm:$0xff]
      %v820 = vld [vmem:[#allocation6 + $0x278] sm:$0xff]
      %v821 = vld [vmem:[#allocation6 + $0x280] sm:$0xff]
      %v822 = vld [vmem:[#allocation6 + $0x288] sm:$0xff]
      %v823 = vld [vmem:[#allocation6 + $0x290] sm:$0xff]
      %v824 = vld [vmem:[#allocation6 + $0x298] sm:$0xff]
      %v825 = vld [vmem:[#allocation6 + $0x2a0] sm:$0xff]
      %v826 = vld [vmem:[#allocation6 + $0x2a8] sm:$0xff]
      %v827 = vld [vmem:[#allocation6 + $0x2b0] sm:$0xff]
      %v828 = vld [vmem:[#allocation6 + $0x2b8] sm:$0xff]
      %v829 = vld [vmem:[#allocation6 + $0x2c0] sm:$0xff]
      %v830 = vld [vmem:[#allocation6 + $0x2c8] sm:$0xff]
      %v831 = vld [vmem:[#allocation6 + $0x2d0] sm:$0xff]
      %v832 = vld [vmem:[#allocation6 + $0x2d8] sm:$0xff]
      %v833 = vld [vmem:[#allocation6 + $0x2e0] sm:$0xff]
      %v834 = vld [vmem:[#allocation6 + $0x2e8] sm:$0xff]
      %v835 = vld [vmem:[#allocation6 + $0x2f0] sm:$0xff]
      %v836 = vld [vmem:[#allocation6 + $0x2f8] sm:$0xff]
      %v837 = vld [vmem:[#allocation6 + $0x300] sm:$0xff]
      %v838 = vld [vmem:[#allocation6 + $0x308] sm:$0xff]
      %v839 = vld [vmem:[#allocation6 + $0x310] sm:$0xff]
      %v840 = vld [vmem:[#allocation6 + $0x318] sm:$0xff]
      %v841 = vld [vmem:[#allocation6 + $0x320] sm:$0xff]
      %v842 = vld [vmem:[#allocation6 + $0x328] sm:$0xff]
      %v843 = vld [vmem:[#allocation6 + $0x330] sm:$0xff]
      %v844 = vld [vmem:[#allocation6 + $0x338] sm:$0xff]
      %v845 = vld [vmem:[#allocation6 + $0x340] sm:$0xff]
      %v846 = vld [vmem:[#allocation6 + $0x348] sm:$0xff]
      %v847 = vld [vmem:[#allocation6 + $0x350] sm:$0xff]
      %v848 = vld [vmem:[#allocation6 + $0x358] sm:$0xff]
      %v849 = vld [vmem:[#allocation6 + $0x360] sm:$0xff]
      %v850 = vld [vmem:[#allocation6 + $0x368] sm:$0xff]
      %v851 = vld [vmem:[#allocation6 + $0x370] sm:$0xff]
      %v852 = vld [vmem:[#allocation6 + $0x378] sm:$0xff]
      %v853 = vld [vmem:[#allocation6 + $0x380] sm:$0xff]
      %v854 = vld [vmem:[#allocation6 + $0x388] sm:$0xff]
      %v855 = vld [vmem:[#allocation6 + $0x390] sm:$0xff]
      %v856 = vld [vmem:[#allocation6 + $0x398] sm:$0xff]
      %v857 = vld [vmem:[#allocation6 + $0x3a0] sm:$0xff]
      %v858 = vld [vmem:[#allocation6 + $0x3a8] sm:$0xff]
      %v859 = vld [vmem:[#allocation6 + $0x3b0] sm:$0xff]
      %v860 = vld [vmem:[#allocation6 + $0x3b8] sm:$0xff]
      %v861 = vld [vmem:[#allocation6 + $0x3c0] sm:$0xff]
      %v862 = vld [vmem:[#allocation6 + $0x3c8] sm:$0xff]
      %v863 = vld [vmem:[#allocation6 + $0x3d0] sm:$0xff]
      %v864 = vld [vmem:[#allocation6 + $0x3d8] sm:$0xff]
      %v865 = vld [vmem:[#allocation6 + $0x3e0] sm:$0xff]
      %v866 = vld [vmem:[#allocation6 + $0x3e8] sm:$0xff]
      %v867 = vld [vmem:[#allocation6 + $0x3f0] sm:$0xff]
      %v868 = vld [vmem:[#allocation6 + $0x3f8] sm:$0xff]
      %v869 = vld [vmem:[#allocation6 + $0x400] sm:$0xff]
      %v870 = vld [vmem:[#allocation6 + $0x408] sm:$0xff]
      %v871 = vld [vmem:[#allocation6 + $0x410] sm:$0xff]
      %v872 = vld [vmem:[#allocation6 + $0x418] sm:$0xff]
      %v873 = vld [vmem:[#allocation6 + $0x420] sm:$0xff]
      %v874 = vld [vmem:[#allocation6 + $0x428] sm:$0xff]
      %v875 = vld [vmem:[#allocation6 + $0x430] sm:$0xff]
      %v876 = vld [vmem:[#allocation6 + $0x438] sm:$0xff]
      %v877 = vld [vmem:[#allocation6 + $0x440] sm:$0xff]
      %v878 = vld [vmem:[#allocation6 + $0x448] sm:$0xff]
      %v879 = vld [vmem:[#allocation6 + $0x450] sm:$0xff]
      %v880 = vld [vmem:[#allocation6 + $0x458] sm:$0xff]
      %v881 = vld [vmem:[#allocation6 + $0x460] sm:$0xff]
      %v882 = vld [vmem:[#allocation6 + $0x468] sm:$0xff]
      %v883 = vld [vmem:[#allocation6 + $0x470] sm:$0xff]
      %v884 = vld [vmem:[#allocation6 + $0x478] sm:$0xff]
      %v885 = vld [vmem:[#allocation6 + $0x480] sm:$0xff]
      %v886 = vld [vmem:[#allocation6 + $0x488] sm:$0xff]
      %v887 = vld [vmem:[#allocation6 + $0x490] sm:$0xff]
      %v888 = vld [vmem:[#allocation6 + $0x498] sm:$0xff]
      %v889 = vld [vmem:[#allocation6 + $0x4a0] sm:$0xff]
      %v890 = vld [vmem:[#allocation6 + $0x4a8] sm:$0xff]
      %v891 = vld [vmem:[#allocation6 + $0x4b0] sm:$0xff]
      %v892 = vld [vmem:[#allocation6 + $0x4b8] sm:$0xff]
      %v893 = vld [vmem:[#allocation6 + $0x4c0] sm:$0xff]
      %v894 = vld [vmem:[#allocation6 + $0x4c8] sm:$0xff]
      %v895 = vld [vmem:[#allocation6 + $0x4d0] sm:$0xff]
      %v896 = vld [vmem:[#allocation6 + $0x4d8] sm:$0xff]
      %v897 = vld [vmem:[#allocation6 + $0x4e0] sm:$0xff]
      %v898 = vld [vmem:[#allocation6 + $0x4e8] sm:$0xff]
      %v899 = vld [vmem:[#allocation6 + $0x4f0] sm:$0xff]
      %v900 = vld [vmem:[#allocation6 + $0x4f8] sm:$0xff]
      %v901 = vld [vmem:[#allocation6 + $0x500] sm:$0xff]
      %v902 = vld [vmem:[#allocation6 + $0x508] sm:$0xff]
      %v903 = vld [vmem:[#allocation6 + $0x510] sm:$0xff]
      %v904 = vld [vmem:[#allocation6 + $0x518] sm:$0xff]
      %v905 = vld [vmem:[#allocation6 + $0x520] sm:$0xff]
      %v906 = vld [vmem:[#allocation6 + $0x528] sm:$0xff]
      %v907 = vld [vmem:[#allocation6 + $0x530] sm:$0xff]
      %v908 = vld [vmem:[#allocation6 + $0x538] sm:$0xff]
      %v909 = vld [vmem:[#allocation6 + $0x540] sm:$0xff]
      %v910 = vld [vmem:[#allocation6 + $0x548] sm:$0xff]
      %v911 = vld [vmem:[#allocation6 + $0x550] sm:$0xff]
      %v912 = vld [vmem:[#allocation6 + $0x558] sm:$0xff]
      %v913 = vld [vmem:[#allocation6 + $0x560] sm:$0xff]
      %v914 = vld [vmem:[#allocation6 + $0x568] sm:$0xff]
      %v915 = vld [vmem:[#allocation6 + $0x570] sm:$0xff]
      %v916 = vld [vmem:[#allocation6 + $0x578] sm:$0xff]
      %v917 = vld [vmem:[#allocation6 + $0x580] sm:$0xff]
      %v918 = vld [vmem:[#allocation6 + $0x588] sm:$0xff]
      %v919 = vld [vmem:[#allocation6 + $0x590] sm:$0xff]
      %v920 = vld [vmem:[#allocation6 + $0x598] sm:$0xff]
      %v921 = vld [vmem:[#allocation6 + $0x5a0] sm:$0xff]
      %v922 = vld [vmem:[#allocation6 + $0x5a8] sm:$0xff]
      %v923 = vld [vmem:[#allocation6 + $0x5b0] sm:$0xff]
      %v924 = vld [vmem:[#allocation6 + $0x5b8] sm:$0xff]
      %v925 = vld [vmem:[#allocation6 + $0x5c0] sm:$0xff]
      %v926 = vld [vmem:[#allocation6 + $0x5c8] sm:$0xff]
      %v927 = vld [vmem:[#allocation6 + $0x5d0] sm:$0xff]
      %v928 = vld [vmem:[#allocation6 + $0x5d8] sm:$0xff]
      %v929 = vld [vmem:[#allocation6 + $0x5e0] sm:$0xff]
      %v930 = vld [vmem:[#allocation6 + $0x5e8] sm:$0xff]
      %v931 = vld [vmem:[#allocation6 + $0x5f0] sm:$0xff]
      %v932 = vld [vmem:[#allocation6 + $0x5f8] sm:$0xff]
      %933 = vmatprep.subr.mxu0 %v832
      %934 = vmatpush1.msra.mxu0 %v831
      %935 = vmatprep.subr.mxu0 %v826
      %936 = vmatpush1.msra.mxu0 %v825
      %937 = vmatprep.subr.mxu0 %v820
      %938 = vmatpush1.msra.mxu0 %v819
      %939 = vmatprep.subr.mxu0 %v814
      %940 = vmatpush1.msra.mxu0 %v813
      %941 = vmatprep.subr.mxu0 %v808
      %942 = vmatpush1.msra.mxu0 %v807
      %943 = vmatprep.subr.mxu0 %v802
      %944 = vmatpush1.msra.mxu0 %v801
      %945 = vmatprep.subr.mxu0 %v796
      %946 = vmatpush1.msra.mxu0 %v795
      %947 = vmatprep.subr.mxu0 %v790
      %948 = vmatpush1.msra.mxu0 %v789
      %949 = vmatprep.subr.mxu0 %v784
      %950 = vmatpush1.msra.mxu0 %v783
      %951 = vmatprep.subr.mxu0 %v778
      %952 = vmatpush1.msra.mxu0 %v777
      %953 = vmatprep.subr.mxu0 %v772
      %954 = vmatpush1.msra.mxu0 %v771
      %955 = vmatprep.subr.mxu0 %v766
      %956 = vmatpush1.msra.mxu0 %v765
      %957 = vmatprep.subr.mxu0 %v760
      %958 = vmatpush1.msra.mxu0 %v759
      %959 = vmatprep.subr.mxu0 %v754
      %960 = vmatpush1.msra.mxu0 %v753
      %961 = vmatprep.subr.mxu0 %v748
      %962 = vmatpush1.msra.mxu0 %v747
      %963 = vmatprep.subr.mxu0 %v742
      %964 = vmatpush1.msra.mxu0 %v741
      %965 = vmatprep.subr.mxu0 %v928
      %966 = vmatpush2.msra.mxu0 %v927
      %967 = vmatprep.subr.mxu0 %v922
      %968 = vmatpush2.msra.mxu0 %v921
      %969 = vmatprep.subr.mxu0 %v916
      %970 = vmatpush2.msra.mxu0 %v915
      %971 = vmatprep.subr.mxu0 %v910
      %972 = vmatpush2.msra.mxu0 %v909
      %973 = vmatprep.subr.mxu0 %v904
      %974 = vmatpush2.msra.mxu0 %v903
      %975 = vmatprep.subr.mxu0 %v898
      %976 = vmatpush2.msra.mxu0 %v897
      %977 = vmatprep.subr.mxu0 %v892
      %978 = vmatpush2.msra.mxu0 %v891
      %979 = vmatprep.subr.mxu0 %v886
      %980 = vmatpush2.msra.mxu0 %v885
      %981 = vmatprep.subr.mxu0 %v880
      %982 = vmatpush2.msra.mxu0 %v879
      %983 = vmatprep.subr.mxu0 %v874
      %984 = vmatpush2.msra.mxu0 %v873
      %985 = vmatprep.subr.mxu0 %v868
      %986 = vmatpush2.msra.mxu0 %v867
      %987 = vmatprep.subr.mxu0 %v862
      %988 = vmatpush2.msra.mxu0 %v861
      %989 = vmatprep.subr.mxu0 %v856
      %990 = vmatpush2.msra.mxu0 %v855
      %991 = vmatprep.subr.mxu0 %v850
      %992 = vmatpush2.msra.mxu0 %v849
      %993 = vmatprep.subr.mxu0 %v844
      %994 = vmatpush2.msra.mxu0 %v843
      %995 = vmatprep.subr.mxu0 %v838
      %996 = vmatpush2.msra.mxu0 %v837
      %997 = vmatprep.mubr.f32.mxu0 %v740
      %998 = vmatmul.mubr.f32.gmra.mxu0 %v739
      %v999 = vpop.f32.mrf.mxu0
      %v1000 = vadd.f32 %v702, %v999
      %v1001 = vpop.f32.mrf.mxu0
      %v1002 = vadd.f32 %v706, %v1001
      %1003 = vdwg.mxu0
      %1004 = vmatprep.subr.mxu0 %v834
      %1005 = vmatpush1.msra.mxu0 %v833
      %1006 = vmatprep.subr.mxu0 %v828
      %1007 = vmatpush1.msra.mxu0 %v827
      %1008 = vmatprep.subr.mxu0 %v822
      %1009 = vmatpush1.msra.mxu0 %v821
      %1010 = vmatprep.subr.mxu0 %v816
      %1011 = vmatpush1.msra.mxu0 %v815
      %1012 = vmatprep.subr.mxu0 %v810
      %1013 = vmatpush1.msra.mxu0 %v809
      %1014 = vmatprep.subr.mxu0 %v804
      %1015 = vmatpush1.msra.mxu0 %v803
      %1016 = vmatprep.subr.mxu0 %v798
      %1017 = vmatpush1.msra.mxu0 %v797
      %1018 = vmatprep.subr.mxu0 %v792
      %1019 = vmatpush1.msra.mxu0 %v791
      %1020 = vmatprep.subr.mxu0 %v786
      %1021 = vmatpush1.msra.mxu0 %v785
      %1022 = vmatprep.subr.mxu0 %v780
      %1023 = vmatpush1.msra.mxu0 %v779
      %1024 = vmatprep.subr.mxu0 %v774
      %1025 = vmatpush1.msra.mxu0 %v773
      %1026 = vmatprep.subr.mxu0 %v768
      %1027 = vmatpush1.msra.mxu0 %v767
      %1028 = vmatprep.subr.mxu0 %v762
      %1029 = vmatpush1.msra.mxu0 %v761
      %1030 = vmatprep.subr.mxu0 %v756
      %1031 = vmatpush1.msra.mxu0 %v755
      %1032 = vmatprep.subr.mxu0 %v750
      %1033 = vmatpush1.msra.mxu0 %v749
      %1034 = vmatprep.subr.mxu0 %v744
      %1035 = vmatpush1.msra.mxu0 %v743
      %1036 = vmatprep.subr.mxu0 %v930
      %1037 = vmatpush2.msra.mxu0 %v929
      %1038 = vmatprep.subr.mxu0 %v924
      %1039 = vmatpush2.msra.mxu0 %v923
      %1040 = vmatprep.subr.mxu0 %v918
      %1041 = vmatpush2.msra.mxu0 %v917
      %1042 = vmatprep.subr.mxu0 %v912
      %1043 = vmatpush2.msra.mxu0 %v911
      %1044 = vmatprep.subr.mxu0 %v906
      %1045 = vmatpush2.msra.mxu0 %v905
      %1046 = vmatprep.subr.mxu0 %v900
      %1047 = vmatpush2.msra.mxu0 %v899
      %1048 = vmatprep.subr.mxu0 %v894
      %1049 = vmatpush2.msra.mxu0 %v893
      %1050 = vmatprep.subr.mxu0 %v888
      %1051 = vmatpush2.msra.mxu0 %v887
      %1052 = vmatprep.subr.mxu0 %v882
      %1053 = vmatpush2.msra.mxu0 %v881
      %1054 = vmatprep.subr.mxu0 %v876
      %1055 = vmatpush2.msra.mxu0 %v875
      %1056 = vmatprep.subr.mxu0 %v870
      %1057 = vmatpush2.msra.mxu0 %v869
      %1058 = vmatprep.subr.mxu0 %v864
      %1059 = vmatpush2.msra.mxu0 %v863
      %1060 = vmatprep.subr.mxu0 %v858
      %1061 = vmatpush2.msra.mxu0 %v857
      %1062 = vmatprep.subr.mxu0 %v852
      %1063 = vmatpush2.msra.mxu0 %v851
      %1064 = vmatprep.subr.mxu0 %v846
      %1065 = vmatpush2.msra.mxu0 %v845
      %1066 = vmatprep.subr.mxu0 %v840
      %1067 = vmatpush2.msra.mxu0 %v839
      %1068 = vmatprep.mubr.f32.mxu0 %v740
      %1069 = vmatmul.mubr.f32.gmra.mxu0 %v739
      %v1070 = vpop.f32.mrf.mxu0
      %v1071 = vadd.f32 %v710, %v1070
      %v1072 = vpop.f32.mrf.mxu0
      %v1073 = vadd.f32 %v714, %v1072
      %1074 = vdwg.mxu0
      %1075 = vmatprep.subr.mxu0 %v836
      %1076 = vmatpush1.msra.mxu0 %v835
      %1077 = vmatprep.subr.mxu0 %v830
      %1078 = vmatpush1.msra.mxu0 %v829
      %1079 = vmatprep.subr.mxu0 %v824
      %1080 = vmatpush1.msra.mxu0 %v823
      %1081 = vmatprep.subr.mxu0 %v818
      %1082 = vmatpush1.msra.mxu0 %v817
      %1083 = vmatprep.subr.mxu0 %v812
      %1084 = vmatpush1.msra.mxu0 %v811
      %1085 = vmatprep.subr.mxu0 %v806
      %1086 = vmatpush1.msra.mxu0 %v805
      %1087 = vmatprep.subr.mxu0 %v800
      %1088 = vmatpush1.msra.mxu0 %v799
      %1089 = vmatprep.subr.mxu0 %v794
      %1090 = vmatpush1.msra.mxu0 %v793
      %1091 = vmatprep.subr.mxu0 %v788
      %1092 = vmatpush1.msra.mxu0 %v787
      %1093 = vmatprep.subr.mxu0 %v782
      %1094 = vmatpush1.msra.mxu0 %v781
      %1095 = vmatprep.subr.mxu0 %v776
      %1096 = vmatpush1.msra.mxu0 %v775
      %1097 = vmatprep.subr.mxu0 %v770
      %1098 = vmatpush1.msra.mxu0 %v769
      %1099 = vmatprep.subr.mxu0 %v764
      %1100 = vmatpush1.msra.mxu0 %v763
      %1101 = vmatprep.subr.mxu0 %v758
      %1102 = vmatpush1.msra.mxu0 %v757
      %1103 = vmatprep.subr.mxu0 %v752
      %1104 = vmatpush1.msra.mxu0 %v751
      %1105 = vmatprep.subr.mxu0 %v746
      %1106 = vmatpush1.msra.mxu0 %v745
      %1107 = vmatprep.subr.mxu0 %v932
      %1108 = vmatpush2.msra.mxu0 %v931
      %1109 = vmatprep.subr.mxu0 %v926
      %1110 = vmatpush2.msra.mxu0 %v925
      %1111 = vmatprep.subr.mxu0 %v920
      %1112 = vmatpush2.msra.mxu0 %v919
      %1113 = vmatprep.subr.mxu0 %v914
      %1114 = vmatpush2.msra.mxu0 %v913
      %1115 = vmatprep.subr.mxu0 %v908
      %1116 = vmatpush2.msra.mxu0 %v907
      %1117 = vmatprep.subr.mxu0 %v902
      %1118 = vmatpush2.msra.mxu0 %v901
      %1119 = vmatprep.subr.mxu0 %v896
      %1120 = vmatpush2.msra.mxu0 %v895
      %1121 = vmatprep.subr.mxu0 %v890
      %1122 = vmatpush2.msra.mxu0 %v889
      %1123 = vmatprep.subr.mxu0 %v884
      %1124 = vmatpush2.msra.mxu0 %v883
      %1125 = vmatprep.subr.mxu0 %v878
      %1126 = vmatpush2.msra.mxu0 %v877
      %1127 = vmatprep.subr.mxu0 %v872
      %1128 = vmatpush2.msra.mxu0 %v871
      %1129 = vmatprep.subr.mxu0 %v866
      %1130 = vmatpush2.msra.mxu0 %v865
      %1131 = vmatprep.subr.mxu0 %v860
      %1132 = vmatpush2.msra.mxu0 %v859
      %1133 = vmatprep.subr.mxu0 %v854
      %1134 = vmatpush2.msra.mxu0 %v853
      %1135 = vmatprep.subr.mxu0 %v848
      %1136 = vmatpush2.msra.mxu0 %v847
      %1137 = vmatprep.subr.mxu0 %v842
      %1138 = vmatpush2.msra.mxu0 %v841
      %1139 = vmatprep.mubr.f32.mxu0 %v740
      %1140 = vmatmul.mubr.f32.gmra.mxu0 %v739
      %v1141 = vpop.f32.mrf.mxu0
      %v1142 = vadd.f32 %v718, %v1141
      %v1143 = vpop.f32.mrf.mxu0
      %v1144 = vadd.f32 %v722, %v1143
      %1145 = vdwg.mxu0
      %s1146 = sshra.s32 %s736, 3
      %s1147 = sand.u32 %s736, 7
      %s1148 = smul.u32 %s1146, 3
      %s1149 = smul.addr %s1148, 8
      %s1150 = scalar_lea.vmem [#allocation4], %s1149
      %v1151 = vld [vmem:[%s1150] sm:$0xff]
      %v1152 = vld [vmem:[%s1150 + $0x8] sm:$0xff]
      %v1153 = vld [vmem:[%s1150 + $0x10] sm:$0xff]
      %v1154 = vadd.f32 %v1151, %v1000
      %v1155 = vxor.u32 %v1154, 2147483648
      %v1156 = vmul.f32 %v1155, 1.442695
      %v1157 = vpow.pop %v1156
      %v1158 = vadd.f32 %v1157, 1.0
      %v1159 = vrcp.pop %v1158
      %v1160 = vmul.f32 1.0, %v1159
      %v1161 = vadd.f32 %v1152, %v1002
      %v1162 = vxor.u32 %v1161, 2147483648
      %v1163 = vmul.f32 %v1162, 1.442695
      %v1164 = vpow.pop %v1163
      %v1165 = vadd.f32 %v1164, 1.0
      %v1166 = vrcp.pop %v1165
      %v1167 = vmul.f32 1.0, %v1166
      %v1168 = vmul.f32 %v1160, %v1071
      %v1169 = vadd.f32 %v1153, %v1168
      %v1170 = vtanh.pop %v1169
      %v1171 = vsub.f32 %v739, %v1170
      %v1172 = vmul.f32 %v1167, %v1171
      %v1173 = vadd.f32 %v1170, %v1172
      %s1174 = sshra.s32 %s738, 3
      %s1175 = sand.u32 %s738, 7
      %s1176 = smul.u32 %s1174, 3
      %s1177 = smul.addr %s1176, 8
      %s1178 = scalar_lea.vmem [#allocation5], %s1177
      %v1179 = vld [vmem:[%s1178] sm:$0xff]
      %v1180 = vld [vmem:[%s1178 + $0x8] sm:$0xff]
      %v1181 = vld [vmem:[%s1178 + $0x10] sm:$0xff]
      %v1182 = vadd.f32 %v1179, %v1073
      %v1183 = vxor.u32 %v1182, 2147483648
      %v1184 = vmul.f32 %v1183, 1.442695
      %v1185 = vpow.pop %v1184
      %v1186 = vadd.f32 %v1185, 1.0
      %v1187 = vrcp.pop %v1186
      %v1188 = vmul.f32 1.0, %v1187
      %v1189 = vadd.f32 %v1180, %v1142
      %v1190 = vxor.u32 %v1189, 2147483648
      %v1191 = vmul.f32 %v1190, 1.442695
      %v1192 = vpow.pop %v1191
      %v1193 = vadd.f32 %v1192, 1.0
      %v1194 = vrcp.pop %v1193
      %v1195 = vmul.f32 1.0, %v1194
      %v1196 = vmul.f32 %v1188, %v1144
      %v1197 = vadd.f32 %v1181, %v1196
      %v1198 = vtanh.pop %v1197
      %v1199 = vsub.f32 %v740, %v1198
      %v1200 = vmul.f32 %v1195, %v1199
      %v1201 = vadd.f32 %v1198, %v1200
      %1202 = vst [vmem:[#allocation2] sm:$0xff] %v1173
      %1203 = vst [vmem:[#allocation3] sm:$0xff] %v1201
      %s1204 = scalar_lea.vmem [#allocation9], %s736
      %1205 = vst [vmem:[%s1204] sm:$0xff] %v1173
      %s1206 = scalar_lea.vmem [#allocation10], %s738
      %1207 = vst [vmem:[%s1206] sm:$0xff] %v1201
      %s1208 = sadd.s32 %s735, 1
      %s1209 = smul.u32 %s1208, 8
      %s1210 = ssub.s32 6, %s735
      %s1211 = smul.u32 %s1210, 8
      %v1212 = vld [vmem:[#allocation2] sm:$0xff]
      %v1213 = vld [vmem:[#allocation3] sm:$0xff]
      %v1214 = vld [vmem:[#allocation6] sm:$0xff]
      %v1215 = vld [vmem:[#allocation6 + $0x8] sm:$0xff]
      %v1216 = vld [vmem:[#allocation6 + $0x10] sm:$0xff]
      %v1217 = vld [vmem:[#allocation6 + $0x18] sm:$0xff]
      %v1218 = vld [vmem:[#allocation6 + $0x20] sm:$0xff]
      %v1219 = vld [vmem:[#allocation6 + $0x28] sm:$0xff]
      %v1220 = vld [vmem:[#allocation6 + $0x30] sm:$0xff]
      %v1221 = vld [vmem:[#allocation6 + $0x38] sm:$0xff]
      %v1222 = vld [vmem:[#allocation6 + $0x40] sm:$0xff]
      %v1223 = vld [vmem:[#allocation6 + $0x48] sm:$0xff]
      %v1224 = vld [vmem:[#allocation6 + $0x50] sm:$0xff]
      %v1225 = vld [vmem:[#allocation6 + $0x58] sm:$0xff]
      %v1226 = vld [vmem:[#allocation6 + $0x60] sm:$0xff]
      %v1227 = vld [vmem:[#allocation6 + $0x68] sm:$0xff]
      %v1228 = vld [vmem:[#allocation6 + $0x70] sm:$0xff]
      %v1229 = vld [vmem:[#allocation6 + $0x78] sm:$0xff]
      %v1230 = vld [vmem:[#allocation6 + $0x80] sm:$0xff]
      %v1231 = vld [vmem:[#allocation6 + $0x88] sm:$0xff]
      %v1232 = vld [vmem:[#allocation6 + $0x90] sm:$0xff]
      %v1233 = vld [vmem:[#allocation6 + $0x98] sm:$0xff]
      %v1234 = vld [vmem:[#allocation6 + $0xa0] sm:$0xff]
      %v1235 = vld [vmem:[#allocation6 + $0xa8] sm:$0xff]
      %v1236 = vld [vmem:[#allocation6 + $0xb0] sm:$0xff]
      %v1237 = vld [vmem:[#allocation6 + $0xb8] sm:$0xff]
      %v1238 = vld [vmem:[#allocation6 + $0xc0] sm:$0xff]
      %v1239 = vld [vmem:[#allocation6 + $0xc8] sm:$0xff]
      %v1240 = vld [vmem:[#allocation6 + $0xd0] sm:$0xff]
      %v1241 = vld [vmem:[#allocation6 + $0xd8] sm:$0xff]
      %v1242 = vld [vmem:[#allocation6 + $0xe0] sm:$0xff]
      %v1243 = vld [vmem:[#allocation6 + $0xe8] sm:$0xff]
      %v1244 = vld [vmem:[#allocation6 + $0xf0] sm:$0xff]
      %v1245 = vld [vmem:[#allocation6 + $0xf8] sm:$0xff]
      %v1246 = vld [vmem:[#allocation6 + $0x100] sm:$0xff]
      %v1247 = vld [vmem:[#allocation6 + $0x108] sm:$0xff]
      %v1248 = vld [vmem:[#allocation6 + $0x110] sm:$0xff]
      %v1249 = vld [vmem:[#allocation6 + $0x118] sm:$0xff]
      %v1250 = vld [vmem:[#allocation6 + $0x120] sm:$0xff]
      %v1251 = vld [vmem:[#allocation6 + $0x128] sm:$0xff]
      %v1252 = vld [vmem:[#allocation6 + $0x130] sm:$0xff]
      %v1253 = vld [vmem:[#allocation6 + $0x138] sm:$0xff]
      %v1254 = vld [vmem:[#allocation6 + $0x140] sm:$0xff]
      %v1255 = vld [vmem:[#allocation6 + $0x148] sm:$0xff]
      %v1256 = vld [vmem:[#allocation6 + $0x150] sm:$0xff]
      %v1257 = vld [vmem:[#allocation6 + $0x158] sm:$0xff]
      %v1258 = vld [vmem:[#allocation6 + $0x160] sm:$0xff]
      %v1259 = vld [vmem:[#allocation6 + $0x168] sm:$0xff]
      %v1260 = vld [vmem:[#allocation6 + $0x170] sm:$0xff]
      %v1261 = vld [vmem:[#allocation6 + $0x178] sm:$0xff]
      %v1262 = vld [vmem:[#allocation6 + $0x180] sm:$0xff]
      %v1263 = vld [vmem:[#allocation6 + $0x188] sm:$0xff]
      %v1264 = vld [vmem:[#allocation6 + $0x190] sm:$0xff]
      %v1265 = vld [vmem:[#allocation6 + $0x198] sm:$0xff]
      %v1266 = vld [vmem:[#allocation6 + $0x1a0] sm:$0xff]
      %v1267 = vld [vmem:[#allocation6 + $0x1a8] sm:$0xff]
      %v1268 = vld [vmem:[#allocation6 + $0x1b0] sm:$0xff]
      %v1269 = vld [vmem:[#allocation6 + $0x1b8] sm:$0xff]
      %v1270 = vld [vmem:[#allocation6 + $0x1c0] sm:$0xff]
      %v1271 = vld [vmem:[#allocation6 + $0x1c8] sm:$0xff]
      %v1272 = vld [vmem:[#allocation6 + $0x1d0] sm:$0xff]
      %v1273 = vld [vmem:[#allocation6 + $0x1d8] sm:$0xff]
      %v1274 = vld [vmem:[#allocation6 + $0x1e0] sm:$0xff]
      %v1275 = vld [vmem:[#allocation6 + $0x1e8] sm:$0xff]
      %v1276 = vld [vmem:[#allocation6 + $0x1f0] sm:$0xff]
      %v1277 = vld [vmem:[#allocation6 + $0x1f8] sm:$0xff]
      %v1278 = vld [vmem:[#allocation6 + $0x200] sm:$0xff]
      %v1279 = vld [vmem:[#allocation6 + $0x208] sm:$0xff]
      %v1280 = vld [vmem:[#allocation6 + $0x210] sm:$0xff]
      %v1281 = vld [vmem:[#allocation6 + $0x218] sm:$0xff]
      %v1282 = vld [vmem:[#allocation6 + $0x220] sm:$0xff]
      %v1283 = vld [vmem:[#allocation6 + $0x228] sm:$0xff]
      %v1284 = vld [vmem:[#allocation6 + $0x230] sm:$0xff]
      %v1285 = vld [vmem:[#allocation6 + $0x238] sm:$0xff]
      %v1286 = vld [vmem:[#allocation6 + $0x240] sm:$0xff]
      %v1287 = vld [vmem:[#allocation6 + $0x248] sm:$0xff]
      %v1288 = vld [vmem:[#allocation6 + $0x250] sm:$0xff]
      %v1289 = vld [vmem:[#allocation6 + $0x258] sm:$0xff]
      %v1290 = vld [vmem:[#allocation6 + $0x260] sm:$0xff]
      %v1291 = vld [vmem:[#allocation6 + $0x268] sm:$0xff]
      %v1292 = vld [vmem:[#allocation6 + $0x270] sm:$0xff]
      %v1293 = vld [vmem:[#allocation6 + $0x278] sm:$0xff]
      %v1294 = vld [vmem:[#allocation6 + $0x280] sm:$0xff]
      %v1295 = vld [vmem:[#allocation6 + $0x288] sm:$0xff]
      %v1296 = vld [vmem:[#allocation6 + $0x290] sm:$0xff]
      %v1297 = vld [vmem:[#allocation6 + $0x298] sm:$0xff]
      %v1298 = vld [vmem:[#allocation6 + $0x2a0] sm:$0xff]
      %v1299 = vld [vmem:[#allocation6 + $0x2a8] sm:$0xff]
      %v1300 = vld [vmem:[#allocation6 + $0x2b0] sm:$0xff]
      %v1301 = vld [vmem:[#allocation6 + $0x2b8] sm:$0xff]
      %v1302 = vld [vmem:[#allocation6 + $0x2c0] sm:$0xff]
      %v1303 = vld [vmem:[#allocation6 + $0x2c8] sm:$0xff]
      %v1304 = vld [vmem:[#allocation6 + $0x2d0] sm:$0xff]
      %v1305 = vld [vmem:[#allocation6 + $0x2d8] sm:$0xff]
      %v1306 = vld [vmem:[#allocation6 + $0x2e0] sm:$0xff]
      %v1307 = vld [vmem:[#allocation6 + $0x2e8] sm:$0xff]
      %v1308 = vld [vmem:[#allocation6 + $0x2f0] sm:$0xff]
      %v1309 = vld [vmem:[#allocation6 + $0x2f8] sm:$0xff]
      %v1310 = vld [vmem:[#allocation6 + $0x300] sm:$0xff]
      %v1311 = vld [vmem:[#allocation6 + $0x308] sm:$0xff]
      %v1312 = vld [vmem:[#allocation6 + $0x310] sm:$0xff]
      %v1313 = vld [vmem:[#allocation6 + $0x318] sm:$0xff]
      %v1314 = vld [vmem:[#allocation6 + $0x320] sm:$0xff]
      %v1315 = vld [vmem:[#allocation6 + $0x328] sm:$0xff]
      %v1316 = vld [vmem:[#allocation6 + $0x330] sm:$0xff]
      %v1317 = vld [vmem:[#allocation6 + $0x338] sm:$0xff]
      %v1318 = vld [vmem:[#allocation6 + $0x340] sm:$0xff]
      %v1319 = vld [vmem:[#allocation6 + $0x348] sm:$0xff]
      %v1320 = vld [vmem:[#allocation6 + $0x350] sm:$0xff]
      %v1321 = vld [vmem:[#allocation6 + $0x358] sm:$0xff]
      %v1322 = vld [vmem:[#allocation6 + $0x360] sm:$0xff]
      %v1323 = vld [vmem:[#allocation6 + $0x368] sm:$0xff]
      %v1324 = vld [vmem:[#allocation6 + $0x370] sm:$0xff]
      %v1325 = vld [vmem:[#allocation6 + $0x378] sm:$0xff]
      %v1326 = vld [vmem:[#allocation6 + $0x380] sm:$0xff]
      %v1327 = vld [vmem:[#allocation6 + $0x388] sm:$0xff]
      %v1328 = vld [vmem:[#allocation6 + $0x390] sm:$0xff]
      %v1329 = vld [vmem:[#allocation6 + $0x398] sm:$0xff]
      %v1330 = vld [vmem:[#allocation6 + $0x3a0] sm:$0xff]
      %v1331 = vld [vmem:[#allocation6 + $0x3a8] sm:$0xff]
      %v1332 = vld [vmem:[#allocation6 + $0x3b0] sm:$0xff]
      %v1333 = vld [vmem:[#allocation6 + $0x3b8] sm:$0xff]
      %v1334 = vld [vmem:[#allocation6 + $0x3c0] sm:$0xff]
      %v1335 = vld [vmem:[#allocation6 + $0x3c8] sm:$0xff]
      %v1336 = vld [vmem:[#allocation6 + $0x3d0] sm:$0xff]
      %v1337 = vld [vmem:[#allocation6 + $0x3d8] sm:$0xff]
      %v1338 = vld [vmem:[#allocation6 + $0x3e0] sm:$0xff]
      %v1339 = vld [vmem:[#allocation6 + $0x3e8] sm:$0xff]
      %v1340 = vld [vmem:[#allocation6 + $0x3f0] sm:$0xff]
      %v1341 = vld [vmem:[#allocation6 + $0x3f8] sm:$0xff]
      %v1342 = vld [vmem:[#allocation6 + $0x400] sm:$0xff]
      %v1343 = vld [vmem:[#allocation6 + $0x408] sm:$0xff]
      %v1344 = vld [vmem:[#allocation6 + $0x410] sm:$0xff]
      %v1345 = vld [vmem:[#allocation6 + $0x418] sm:$0xff]
      %v1346 = vld [vmem:[#allocation6 + $0x420] sm:$0xff]
      %v1347 = vld [vmem:[#allocation6 + $0x428] sm:$0xff]
      %v1348 = vld [vmem:[#allocation6 + $0x430] sm:$0xff]
      %v1349 = vld [vmem:[#allocation6 + $0x438] sm:$0xff]
      %v1350 = vld [vmem:[#allocation6 + $0x440] sm:$0xff]
      %v1351 = vld [vmem:[#allocation6 + $0x448] sm:$0xff]
      %v1352 = vld [vmem:[#allocation6 + $0x450] sm:$0xff]
      %v1353 = vld [vmem:[#allocation6 + $0x458] sm:$0xff]
      %v1354 = vld [vmem:[#allocation6 + $0x460] sm:$0xff]
      %v1355 = vld [vmem:[#allocation6 + $0x468] sm:$0xff]
      %v1356 = vld [vmem:[#allocation6 + $0x470] sm:$0xff]
      %v1357 = vld [vmem:[#allocation6 + $0x478] sm:$0xff]
      %v1358 = vld [vmem:[#allocation6 + $0x480] sm:$0xff]
      %v1359 = vld [vmem:[#allocation6 + $0x488] sm:$0xff]
      %v1360 = vld [vmem:[#allocation6 + $0x490] sm:$0xff]
      %v1361 = vld [vmem:[#allocation6 + $0x498] sm:$0xff]
      %v1362 = vld [vmem:[#allocation6 + $0x4a0] sm:$0xff]
      %v1363 = vld [vmem:[#allocation6 + $0x4a8] sm:$0xff]
      %v1364 = vld [vmem:[#allocation6 + $0x4b0] sm:$0xff]
      %v1365 = vld [vmem:[#allocation6 + $0x4b8] sm:$0xff]
      %v1366 = vld [vmem:[#allocation6 + $0x4c0] sm:$0xff]
      %v1367 = vld [vmem:[#allocation6 + $0x4c8] sm:$0xff]
      %v1368 = vld [vmem:[#allocation6 + $0x4d0] sm:$0xff]
      %v1369 = vld [vmem:[#allocation6 + $0x4d8] sm:$0xff]
      %v1370 = vld [vmem:[#allocation6 + $0x4e0] sm:$0xff]
      %v1371 = vld [vmem:[#allocation6 + $0x4e8] sm:$0xff]
      %v1372 = vld [vmem:[#allocation6 + $0x4f0] sm:$0xff]
      %v1373 = vld [vmem:[#allocation6 + $0x4f8] sm:$0xff]
      %v1374 = vld [vmem:[#allocation6 + $0x500] sm:$0xff]
      %v1375 = vld [vmem:[#allocation6 + $0x508] sm:$0xff]
      %v1376 = vld [vmem:[#allocation6 + $0x510] sm:$0xff]
      %v1377 = vld [vmem:[#allocation6 + $0x518] sm:$0xff]
      %v1378 = vld [vmem:[#allocation6 + $0x520] sm:$0xff]
      %v1379 = vld [vmem:[#allocation6 + $0x528] sm:$0xff]
      %v1380 = vld [vmem:[#allocation6 + $0x530] sm:$0xff]
      %v1381 = vld [vmem:[#allocation6 + $0x538] sm:$0xff]
      %v1382 = vld [vmem:[#allocation6 + $0x540] sm:$0xff]
      %v1383 = vld [vmem:[#allocation6 + $0x548] sm:$0xff]
      %v1384 = vld [vmem:[#allocation6 + $0x550] sm:$0xff]
      %v1385 = vld [vmem:[#allocation6 + $0x558] sm:$0xff]
      %v1386 = vld [vmem:[#allocation6 + $0x560] sm:$0xff]
      %v1387 = vld [vmem:[#allocation6 + $0x568] sm:$0xff]
      %v1388 = vld [vmem:[#allocation6 + $0x570] sm:$0xff]
      %v1389 = vld [vmem:[#allocation6 + $0x578] sm:$0xff]
      %v1390 = vld [vmem:[#allocation6 + $0x580] sm:$0xff]
      %v1391 = vld [vmem:[#allocation6 + $0x588] sm:$0xff]
      %v1392 = vld [vmem:[#allocation6 + $0x590] sm:$0xff]
      %v1393 = vld [vmem:[#allocation6 + $0x598] sm:$0xff]
      %v1394 = vld [vmem:[#allocation6 + $0x5a0] sm:$0xff]
      %v1395 = vld [vmem:[#allocation6 + $0x5a8] sm:$0xff]
      %v1396 = vld [vmem:[#allocation6 + $0x5b0] sm:$0xff]
      %v1397 = vld [vmem:[#allocation6 + $0x5b8] sm:$0xff]
      %v1398 = vld [vmem:[#allocation6 + $0x5c0] sm:$0xff]
      %v1399 = vld [vmem:[#allocation6 + $0x5c8] sm:$0xff]
      %v1400 = vld [vmem:[#allocation6 + $0x5d0] sm:$0xff]
      %v1401 = vld [vmem:[#allocation6 + $0x5d8] sm:$0xff]
      %v1402 = vld [vmem:[#allocation6 + $0x5e0] sm:$0xff]
      %v1403 = vld [vmem:[#allocation6 + $0x5e8] sm:$0xff]
      %v1404 = vld [vmem:[#allocation6 + $0x5f0] sm:$0xff]
      %v1405 = vld [vmem:[#allocation6 + $0x5f8] sm:$0xff]
      %1406 = vmatprep.subr.mxu0 %v1305
      %1407 = vmatpush1.msra.mxu0 %v1304
      %1408 = vmatprep.subr.mxu0 %v1299
      %1409 = vmatpush1.msra.mxu0 %v1298
      %1410 = vmatprep.subr.mxu0 %v1293
      %1411 = vmatpush1.msra.mxu0 %v1292
      %1412 = vmatprep.subr.mxu0 %v1287
      %1413 = vmatpush1.msra.mxu0 %v1286
      %1414 = vmatprep.subr.mxu0 %v1281
      %1415 = vmatpush1.msra.mxu0 %v1280
      %1416 = vmatprep.subr.mxu0 %v1275
      %1417 = vmatpush1.msra.mxu0 %v1274
      %1418 = vmatprep.subr.mxu0 %v1269
      %1419 = vmatpush1.msra.mxu0 %v1268
      %1420 = vmatprep.subr.mxu0 %v1263
      %1421 = vmatpush1.msra.mxu0 %v1262
      %1422 = vmatprep.subr.mxu0 %v1257
      %1423 = vmatpush1.msra.mxu0 %v1256
      %1424 = vmatprep.subr.mxu0 %v1251
      %1425 = vmatpush1.msra.mxu0 %v1250
      %1426 = vmatprep.subr.mxu0 %v1245
      %1427 = vmatpush1.msra.mxu0 %v1244
      %1428 = vmatprep.subr.mxu0 %v1239
      %1429 = vmatpush1.msra.mxu0 %v1238
      %1430 = vmatprep.subr.mxu0 %v1233
      %1431 = vmatpush1.msra.mxu0 %v1232
      %1432 = vmatprep.subr.mxu0 %v1227
      %1433 = vmatpush1.msra.mxu0 %v1226
      %1434 = vmatprep.subr.mxu0 %v1221
      %1435 = vmatpush1.msra.mxu0 %v1220
      %1436 = vmatprep.subr.mxu0 %v1215
      %1437 = vmatpush1.msra.mxu0 %v1214
      %1438 = vmatprep.subr.mxu0 %v1401
      %1439 = vmatpush2.msra.mxu0 %v1400
      %1440 = vmatprep.subr.mxu0 %v1395
      %1441 = vmatpush2.msra.mxu0 %v1394
      %1442 = vmatprep.subr.mxu0 %v1389
      %1443 = vmatpush2.msra.mxu0 %v1388
      %1444 = vmatprep.subr.mxu0 %v1383
      %1445 = vmatpush2.msra.mxu0 %v1382
      %1446 = vmatprep.subr.mxu0 %v1377
      %1447 = vmatpush2.msra.mxu0 %v1376
      %1448 = vmatprep.subr.mxu0 %v1371
      %1449 = vmatpush2.msra.mxu0 %v1370
      %1450 = vmatprep.subr.mxu0 %v1365
      %1451 = vmatpush2.msra.mxu0 %v1364
      %1452 = vmatprep.subr.mxu0 %v1359
      %1453 = vmatpush2.msra.mxu0 %v1358
      %1454 = vmatprep.subr.mxu0 %v1353
      %1455 = vmatpush2.msra.mxu0 %v1352
      %1456 = vmatprep.subr.mxu0 %v1347
      %1457 = vmatpush2.msra.mxu0 %v1346
      %1458 = vmatprep.subr.mxu0 %v1341
      %1459 = vmatpush2.msra.mxu0 %v1340
      %1460 = vmatprep.subr.mxu0 %v1335
      %1461 = vmatpush2.msra.mxu0 %v1334
      %1462 = vmatprep.subr.mxu0 %v1329
      %1463 = vmatpush2.msra.mxu0 %v1328
      %1464 = vmatprep.subr.mxu0 %v1323
      %1465 = vmatpush2.msra.mxu0 %v1322
      %1466 = vmatprep.subr.mxu0 %v1317
      %1467 = vmatpush2.msra.mxu0 %v1316
      %1468 = vmatprep.subr.mxu0 %v1311
      %1469 = vmatpush2.msra.mxu0 %v1310
      %1470 = vmatprep.mubr.f32.mxu0 %v1213
      %1471 = vmatmul.mubr.f32.gmra.mxu0 %v1212
      %v1472 = vpop.f32.mrf.mxu0
      %v1473 = vadd.f32 %v702, %v1472
      %v1474 = vpop.f32.mrf.mxu0
      %v1475 = vadd.f32 %v706, %v1474
      %1476 = vdwg.mxu0
      %1477 = vmatprep.subr.mxu0 %v1307
      %1478 = vmatpush1.msra.mxu0 %v1306
      %1479 = vmatprep.subr.mxu0 %v1301
      %1480 = vmatpush1.msra.mxu0 %v1300
      %1481 = vmatprep.subr.mxu0 %v1295
      %1482 = vmatpush1.msra.mxu0 %v1294
      %1483 = vmatprep.subr.mxu0 %v1289
      %1484 = vmatpush1.msra.mxu0 %v1288
      %1485 = vmatprep.subr.mxu0 %v1283
      %1486 = vmatpush1.msra.mxu0 %v1282
      %1487 = vmatprep.subr.mxu0 %v1277
      %1488 = vmatpush1.msra.mxu0 %v1276
      %1489 = vmatprep.subr.mxu0 %v1271
      %1490 = vmatpush1.msra.mxu0 %v1270
      %1491 = vmatprep.subr.mxu0 %v1265
      %1492 = vmatpush1.msra.mxu0 %v1264
      %1493 = vmatprep.subr.mxu0 %v1259
      %1494 = vmatpush1.msra.mxu0 %v1258
      %1495 = vmatprep.subr.mxu0 %v1253
      %1496 = vmatpush1.msra.mxu0 %v1252
      %1497 = vmatprep.subr.mxu0 %v1247
      %1498 = vmatpush1.msra.mxu0 %v1246
      %1499 = vmatprep.subr.mxu0 %v1241
      %1500 = vmatpush1.msra.mxu0 %v1240
      %1501 = vmatprep.subr.mxu0 %v1235
      %1502 = vmatpush1.msra.mxu0 %v1234
      %1503 = vmatprep.subr.mxu0 %v1229
      %1504 = vmatpush1.msra.mxu0 %v1228
      %1505 = vmatprep.subr.mxu0 %v1223
      %1506 = vmatpush1.msra.mxu0 %v1222
      %1507 = vmatprep.subr.mxu0 %v1217
      %1508 = vmatpush1.msra.mxu0 %v1216
      %1509 = vmatprep.subr.mxu0 %v1403
      %1510 = vmatpush2.msra.mxu0 %v1402
      %1511 = vmatprep.subr.mxu0 %v1397
      %1512 = vmatpush2.msra.mxu0 %v1396
      %1513 = vmatprep.subr.mxu0 %v1391
      %1514 = vmatpush2.msra.mxu0 %v1390
      %1515 = vmatprep.subr.mxu0 %v1385
      %1516 = vmatpush2.msra.mxu0 %v1384
      %1517 = vmatprep.subr.mxu0 %v1379
      %1518 = vmatpush2.msra.mxu0 %v1378
      %1519 = vmatprep.subr.mxu0 %v1373
      %1520 = vmatpush2.msra.mxu0 %v1372
      %1521 = vmatprep.subr.mxu0 %v1367
      %1522 = vmatpush2.msra.mxu0 %v1366
      %1523 = vmatprep.subr.mxu0 %v1361
      %1524 = vmatpush2.msra.mxu0 %v1360
      %1525 = vmatprep.subr.mxu0 %v1355
      %1526 = vmatpush2.msra.mxu0 %v1354
      %1527 = vmatprep.subr.mxu0 %v1349
      %1528 = vmatpush2.msra.mxu0 %v1348
      %1529 = vmatprep.subr.mxu0 %v1343
      %1530 = vmatpush2.msra.mxu0 %v1342
      %1531 = vmatprep.subr.mxu0 %v1337
      %1532 = vmatpush2.msra.mxu0 %v1336
      %1533 = vmatprep.subr.mxu0 %v1331
      %1534 = vmatpush2.msra.mxu0 %v1330
      %1535 = vmatprep.subr.mxu0 %v1325
      %1536 = vmatpush2.msra.mxu0 %v1324
      %1537 = vmatprep.subr.mxu0 %v1319
      %1538 = vmatpush2.msra.mxu0 %v1318
      %1539 = vmatprep.subr.mxu0 %v1313
      %1540 = vmatpush2.msra.mxu0 %v1312
      %1541 = vmatprep.mubr.f32.mxu0 %v1213
      %1542 = vmatmul.mubr.f32.gmra.mxu0 %v1212
      %v1543 = vpop.f32.mrf.mxu0
      %v1544 = vadd.f32 %v710, %v1543
      %v1545 = vpop.f32.mrf.mxu0
      %v1546 = vadd.f32 %v714, %v1545
      %1547 = vdwg.mxu0
      %1548 = vmatprep.subr.mxu0 %v1309
      %1549 = vmatpush1.msra.mxu0 %v1308
      %1550 = vmatprep.subr.mxu0 %v1303
      %1551 = vmatpush1.msra.mxu0 %v1302
      %1552 = vmatprep.subr.mxu0 %v1297
      %1553 = vmatpush1.msra.mxu0 %v1296
      %1554 = vmatprep.subr.mxu0 %v1291
      %1555 = vmatpush1.msra.mxu0 %v1290
      %1556 = vmatprep.subr.mxu0 %v1285
      %1557 = vmatpush1.msra.mxu0 %v1284
      %1558 = vmatprep.subr.mxu0 %v1279
      %1559 = vmatpush1.msra.mxu0 %v1278
      %1560 = vmatprep.subr.mxu0 %v1273
      %1561 = vmatpush1.msra.mxu0 %v1272
      %1562 = vmatprep.subr.mxu0 %v1267
      %1563 = vmatpush1.msra.mxu0 %v1266
      %1564 = vmatprep.subr.mxu0 %v1261
      %1565 = vmatpush1.msra.mxu0 %v1260
      %1566 = vmatprep.subr.mxu0 %v1255
      %1567 = vmatpush1.msra.mxu0 %v1254
      %1568 = vmatprep.subr.mxu0 %v1249
      %1569 = vmatpush1.msra.mxu0 %v1248
      %1570 = vmatprep.subr.mxu0 %v1243
      %1571 = vmatpush1.msra.mxu0 %v1242
      %1572 = vmatprep.subr.mxu0 %v1237
      %1573 = vmatpush1.msra.mxu0 %v1236
      %1574 = vmatprep.subr.mxu0 %v1231
      %1575 = vmatpush1.msra.mxu0 %v1230
      %1576 = vmatprep.subr.mxu0 %v1225
      %1577 = vmatpush1.msra.mxu0 %v1224
      %1578 = vmatprep.subr.mxu0 %v1219
      %1579 = vmatpush1.msra.mxu0 %v1218
      %1580 = vmatprep.subr.mxu0 %v1405
      %1581 = vmatpush2.msra.mxu0 %v1404
      %1582 = vmatprep.subr.mxu0 %v1399
      %1583 = vmatpush2.msra.mxu0 %v1398
      %1584 = vmatprep.subr.mxu0 %v1393
      %1585 = vmatpush2.msra.mxu0 %v1392
      %1586 = vmatprep.subr.mxu0 %v1387
      %1587 = vmatpush2.msra.mxu0 %v1386
      %1588 = vmatprep.subr.mxu0 %v1381
      %1589 = vmatpush2.msra.mxu0 %v1380
      %1590 = vmatprep.subr.mxu0 %v1375
      %1591 = vmatpush2.msra.mxu0 %v1374
      %1592 = vmatprep.subr.mxu0 %v1369
      %1593 = vmatpush2.msra.mxu0 %v1368
      %1594 = vmatprep.subr.mxu0 %v1363
      %1595 = vmatpush2.msra.mxu0 %v1362
      %1596 = vmatprep.subr.mxu0 %v1357
      %1597 = vmatpush2.msra.mxu0 %v1356
      %1598 = vmatprep.subr.mxu0 %v1351
      %1599 = vmatpush2.msra.mxu0 %v1350
      %1600 = vmatprep.subr.mxu0 %v1345
      %1601 = vmatpush2.msra.mxu0 %v1344
      %1602 = vmatprep.subr.mxu0 %v1339
      %1603 = vmatpush2.msra.mxu0 %v1338
      %1604 = vmatprep.subr.mxu0 %v1333
      %1605 = vmatpush2.msra.mxu0 %v1332
      %1606 = vmatprep.subr.mxu0 %v1327
      %1607 = vmatpush2.msra.mxu0 %v1326
      %1608 = vmatprep.subr.mxu0 %v1321
      %1609 = vmatpush2.msra.mxu0 %v1320
      %1610 = vmatprep.subr.mxu0 %v1315
      %1611 = vmatpush2.msra.mxu0 %v1314
      %1612 = vmatprep.mubr.f32.mxu0 %v1213
      %1613 = vmatmul.mubr.f32.gmra.mxu0 %v1212
      %v1614 = vpop.f32.mrf.mxu0
      %v1615 = vadd.f32 %v718, %v1614
      %v1616 = vpop.f32.mrf.mxu0
      %v1617 = vadd.f32 %v722, %v1616
      %1618 = vdwg.mxu0
      %s1619 = sshra.s32 %s1209, 3
      %s1620 = sand.u32 %s1209, 7
      %s1621 = smul.u32 %s1619, 3
      %s1622 = smul.addr %s1621, 8
      %s1623 = scalar_lea.vmem [#allocation4], %s1622
      %v1624 = vld [vmem:[%s1623] sm:$0xff]
      %v1625 = vld [vmem:[%s1623 + $0x8] sm:$0xff]
      %v1626 = vld [vmem:[%s1623 + $0x10] sm:$0xff]
      %v1627 = vadd.f32 %v1624, %v1473
      %v1628 = vxor.u32 %v1627, 2147483648
      %v1629 = vmul.f32 %v1628, 1.442695
      %v1630 = vpow.pop %v1629
      %v1631 = vadd.f32 %v1630, 1.0
      %v1632 = vrcp.pop %v1631
      %v1633 = vmul.f32 1.0, %v1632
      %v1634 = vadd.f32 %v1625, %v1475
      %v1635 = vxor.u32 %v1634, 2147483648
      %v1636 = vmul.f32 %v1635, 1.442695
      %v1637 = vpow.pop %v1636
      %v1638 = vadd.f32 %v1637, 1.0
      %v1639 = vrcp.pop %v1638
      %v1640 = vmul.f32 1.0, %v1639
      %v1641 = vmul.f32 %v1633, %v1544
      %v1642 = vadd.f32 %v1626, %v1641
      %v1643 = vtanh.pop %v1642
      %v1644 = vsub.f32 %v1212, %v1643
      %v1645 = vmul.f32 %v1640, %v1644
      %v1646 = vadd.f32 %v1643, %v1645
      %s1647 = sshra.s32 %s1211, 3
      %s1648 = sand.u32 %s1211, 7
      %s1649 = smul.u32 %s1647, 3
      %s1650 = smul.addr %s1649, 8
      %s1651 = scalar_lea.vmem [#allocation5], %s1650
      %v1652 = vld [vmem:[%s1651] sm:$0xff]
      %v1653 = vld [vmem:[%s1651 + $0x8] sm:$0xff]
      %v1654 = vld [vmem:[%s1651 + $0x10] sm:$0xff]
      %v1655 = vadd.f32 %v1652, %v1546
      %v1656 = vxor.u32 %v1655, 2147483648
      %v1657 = vmul.f32 %v1656, 1.442695
      %v1658 = vpow.pop %v1657
      %v1659 = vadd.f32 %v1658, 1.0
      %v1660 = vrcp.pop %v1659
      %v1661 = vmul.f32 1.0, %v1660
      %v1662 = vadd.f32 %v1653, %v1615
      %v1663 = vxor.u32 %v1662, 2147483648
      %v1664 = vmul.f32 %v1663, 1.442695
      %v1665 = vpow.pop %v1664
      %v1666 = vadd.f32 %v1665, 1.0
      %v1667 = vrcp.pop %v1666
      %v1668 = vmul.f32 1.0, %v1667
      %v1669 = vmul.f32 %v1661, %v1617
      %v1670 = vadd.f32 %v1654, %v1669
      %v1671 = vtanh.pop %v1670
      %v1672 = vsub.f32 %v1213, %v1671
      %v1673 = vmul.f32 %v1668, %v1672
      %v1674 = vadd.f32 %v1671, %v1673
      %1675 = vst [vmem:[#allocation2] sm:$0xff] %v1646
      %1676 = vst [vmem:[#allocation3] sm:$0xff] %v1674
      %s1677 = scalar_lea.vmem [#allocation9], %s1209
      %1678 = vst [vmem:[%s1677] sm:$0xff] %v1646
      %s1679 = scalar_lea.vmem [#allocation10], %s1211
      %1680 = vst [vmem:[%s1679] sm:$0xff] %v1674
      %s1681 = sadd.s32 %s735, 2
      %s1682 = smul.u32 %s1681, 8
      %s1683 = ssub.s32 5, %s735
      %s1684 = smul.u32 %s1683, 8
      %v1685 = vld [vmem:[#allocation2] sm:$0xff]
      %v1686 = vld [vmem:[#allocation3] sm:$0xff]
      %v1687 = vld [vmem:[#allocation6] sm:$0xff]
      %v1688 = vld [vmem:[#allocation6 + $0x8] sm:$0xff]
      %v1689 = vld [vmem:[#allocation6 + $0x10] sm:$0xff]
      %v1690 = vld [vmem:[#allocation6 + $0x18] sm:$0xff]
      %v1691 = vld [vmem:[#allocation6 + $0x20] sm:$0xff]
      %v1692 = vld [vmem:[#allocation6 + $0x28] sm:$0xff]
      %v1693 = vld [vmem:[#allocation6 + $0x30] sm:$0xff]
      %v1694 = vld [vmem:[#allocation6 + $0x38] sm:$0xff]
      %v1695 = vld [vmem:[#allocation6 + $0x40] sm:$0xff]
      %v1696 = vld [vmem:[#allocation6 + $0x48] sm:$0xff]
      %v1697 = vld [vmem:[#allocation6 + $0x50] sm:$0xff]
      %v1698 = vld [vmem:[#allocation6 + $0x58] sm:$0xff]
      %v1699 = vld [vmem:[#allocation6 + $0x60] sm:$0xff]
      %v1700 = vld [vmem:[#allocation6 + $0x68] sm:$0xff]
      %v1701 = vld [vmem:[#allocation6 + $0x70] sm:$0xff]
      %v1702 = vld [vmem:[#allocation6 + $0x78] sm:$0xff]
      %v1703 = vld [vmem:[#allocation6 + $0x80] sm:$0xff]
      %v1704 = vld [vmem:[#allocation6 + $0x88] sm:$0xff]
      %v1705 = vld [vmem:[#allocation6 + $0x90] sm:$0xff]
      %v1706 = vld [vmem:[#allocation6 + $0x98] sm:$0xff]
      %v1707 = vld [vmem:[#allocation6 + $0xa0] sm:$0xff]
      %v1708 = vld [vmem:[#allocation6 + $0xa8] sm:$0xff]
      %v1709 = vld [vmem:[#allocation6 + $0xb0] sm:$0xff]
      %v1710 = vld [vmem:[#allocation6 + $0xb8] sm:$0xff]
      %v1711 = vld [vmem:[#allocation6 + $0xc0] sm:$0xff]
      %v1712 = vld [vmem:[#allocation6 + $0xc8] sm:$0xff]
      %v1713 = vld [vmem:[#allocation6 + $0xd0] sm:$0xff]
      %v1714 = vld [vmem:[#allocation6 + $0xd8] sm:$0xff]
      %v1715 = vld [vmem:[#allocation6 + $0xe0] sm:$0xff]
      %v1716 = vld [vmem:[#allocation6 + $0xe8] sm:$0xff]
      %v1717 = vld [vmem:[#allocation6 + $0xf0] sm:$0xff]
      %v1718 = vld [vmem:[#allocation6 + $0xf8] sm:$0xff]
      %v1719 = vld [vmem:[#allocation6 + $0x100] sm:$0xff]
      %v1720 = vld [vmem:[#allocation6 + $0x108] sm:$0xff]
      %v1721 = vld [vmem:[#allocation6 + $0x110] sm:$0xff]
      %v1722 = vld [vmem:[#allocation6 + $0x118] sm:$0xff]
      %v1723 = vld [vmem:[#allocation6 + $0x120] sm:$0xff]
      %v1724 = vld [vmem:[#allocation6 + $0x128] sm:$0xff]
      %v1725 = vld [vmem:[#allocation6 + $0x130] sm:$0xff]
      %v1726 = vld [vmem:[#allocation6 + $0x138] sm:$0xff]
      %v1727 = vld [vmem:[#allocation6 + $0x140] sm:$0xff]
      %v1728 = vld [vmem:[#allocation6 + $0x148] sm:$0xff]
      %v1729 = vld [vmem:[#allocation6 + $0x150] sm:$0xff]
      %v1730 = vld [vmem:[#allocation6 + $0x158] sm:$0xff]
      %v1731 = vld [vmem:[#allocation6 + $0x160] sm:$0xff]
      %v1732 = vld [vmem:[#allocation6 + $0x168] sm:$0xff]
      %v1733 = vld [vmem:[#allocation6 + $0x170] sm:$0xff]
      %v1734 = vld [vmem:[#allocation6 + $0x178] sm:$0xff]
      %v1735 = vld [vmem:[#allocation6 + $0x180] sm:$0xff]
      %v1736 = vld [vmem:[#allocation6 + $0x188] sm:$0xff]
      %v1737 = vld [vmem:[#allocation6 + $0x190] sm:$0xff]
      %v1738 = vld [vmem:[#allocation6 + $0x198] sm:$0xff]
      %v1739 = vld [vmem:[#allocation6 + $0x1a0] sm:$0xff]
      %v1740 = vld [vmem:[#allocation6 + $0x1a8] sm:$0xff]
      %v1741 = vld [vmem:[#allocation6 + $0x1b0] sm:$0xff]
      %v1742 = vld [vmem:[#allocation6 + $0x1b8] sm:$0xff]
      %v1743 = vld [vmem:[#allocation6 + $0x1c0] sm:$0xff]
      %v1744 = vld [vmem:[#allocation6 + $0x1c8] sm:$0xff]
      %v1745 = vld [vmem:[#allocation6 + $0x1d0] sm:$0xff]
      %v1746 = vld [vmem:[#allocation6 + $0x1d8] sm:$0xff]
      %v1747 = vld [vmem:[#allocation6 + $0x1e0] sm:$0xff]
      %v1748 = vld [vmem:[#allocation6 + $0x1e8] sm:$0xff]
      %v1749 = vld [vmem:[#allocation6 + $0x1f0] sm:$0xff]
      %v1750 = vld [vmem:[#allocation6 + $0x1f8] sm:$0xff]
      %v1751 = vld [vmem:[#allocation6 + $0x200] sm:$0xff]
      %v1752 = vld [vmem:[#allocation6 + $0x208] sm:$0xff]
      %v1753 = vld [vmem:[#allocation6 + $0x210] sm:$0xff]
      %v1754 = vld [vmem:[#allocation6 + $0x218] sm:$0xff]
      %v1755 = vld [vmem:[#allocation6 + $0x220] sm:$0xff]
      %v1756 = vld [vmem:[#allocation6 + $0x228] sm:$0xff]
      %v1757 = vld [vmem:[#allocation6 + $0x230] sm:$0xff]
      %v1758 = vld [vmem:[#allocation6 + $0x238] sm:$0xff]
      %v1759 = vld [vmem:[#allocation6 + $0x240] sm:$0xff]
      %v1760 = vld [vmem:[#allocation6 + $0x248] sm:$0xff]
      %v1761 = vld [vmem:[#allocation6 + $0x250] sm:$0xff]
      %v1762 = vld [vmem:[#allocation6 + $0x258] sm:$0xff]
      %v1763 = vld [vmem:[#allocation6 + $0x260] sm:$0xff]
      %v1764 = vld [vmem:[#allocation6 + $0x268] sm:$0xff]
      %v1765 = vld [vmem:[#allocation6 + $0x270] sm:$0xff]
      %v1766 = vld [vmem:[#allocation6 + $0x278] sm:$0xff]
      %v1767 = vld [vmem:[#allocation6 + $0x280] sm:$0xff]
      %v1768 = vld [vmem:[#allocation6 + $0x288] sm:$0xff]
      %v1769 = vld [vmem:[#allocation6 + $0x290] sm:$0xff]
      %v1770 = vld [vmem:[#allocation6 + $0x298] sm:$0xff]
      %v1771 = vld [vmem:[#allocation6 + $0x2a0] sm:$0xff]
      %v1772 = vld [vmem:[#allocation6 + $0x2a8] sm:$0xff]
      %v1773 = vld [vmem:[#allocation6 + $0x2b0] sm:$0xff]
      %v1774 = vld [vmem:[#allocation6 + $0x2b8] sm:$0xff]
      %v1775 = vld [vmem:[#allocation6 + $0x2c0] sm:$0xff]
      %v1776 = vld [vmem:[#allocation6 + $0x2c8] sm:$0xff]
      %v1777 = vld [vmem:[#allocation6 + $0x2d0] sm:$0xff]
      %v1778 = vld [vmem:[#allocation6 + $0x2d8] sm:$0xff]
      %v1779 = vld [vmem:[#allocation6 + $0x2e0] sm:$0xff]
      %v1780 = vld [vmem:[#allocation6 + $0x2e8] sm:$0xff]
      %v1781 = vld [vmem:[#allocation6 + $0x2f0] sm:$0xff]
      %v1782 = vld [vmem:[#allocation6 + $0x2f8] sm:$0xff]
      %v1783 = vld [vmem:[#allocation6 + $0x300] sm:$0xff]
      %v1784 = vld [vmem:[#allocation6 + $0x308] sm:$0xff]
      %v1785 = vld [vmem:[#allocation6 + $0x310] sm:$0xff]
      %v1786 = vld [vmem:[#allocation6 + $0x318] sm:$0xff]
      %v1787 = vld [vmem:[#allocation6 + $0x320] sm:$0xff]
      %v1788 = vld [vmem:[#allocation6 + $0x328] sm:$0xff]
      %v1789 = vld [vmem:[#allocation6 + $0x330] sm:$0xff]
      %v1790 = vld [vmem:[#allocation6 + $0x338] sm:$0xff]
      %v1791 = vld [vmem:[#allocation6 + $0x340] sm:$0xff]
      %v1792 = vld [vmem:[#allocation6 + $0x348] sm:$0xff]
      %v1793 = vld [vmem:[#allocation6 + $0x350] sm:$0xff]
      %v1794 = vld [vmem:[#allocation6 + $0x358] sm:$0xff]
      %v1795 = vld [vmem:[#allocation6 + $0x360] sm:$0xff]
      %v1796 = vld [vmem:[#allocation6 + $0x368] sm:$0xff]
      %v1797 = vld [vmem:[#allocation6 + $0x370] sm:$0xff]
      %v1798 = vld [vmem:[#allocation6 + $0x378] sm:$0xff]
      %v1799 = vld [vmem:[#allocation6 + $0x380] sm:$0xff]
      %v1800 = vld [vmem:[#allocation6 + $0x388] sm:$0xff]
      %v1801 = vld [vmem:[#allocation6 + $0x390] sm:$0xff]
      %v1802 = vld [vmem:[#allocation6 + $0x398] sm:$0xff]
      %v1803 = vld [vmem:[#allocation6 + $0x3a0] sm:$0xff]
      %v1804 = vld [vmem:[#allocation6 + $0x3a8] sm:$0xff]
      %v1805 = vld [vmem:[#allocation6 + $0x3b0] sm:$0xff]
      %v1806 = vld [vmem:[#allocation6 + $0x3b8] sm:$0xff]
      %v1807 = vld [vmem:[#allocation6 + $0x3c0] sm:$0xff]
      %v1808 = vld [vmem:[#allocation6 + $0x3c8] sm:$0xff]
      %v1809 = vld [vmem:[#allocation6 + $0x3d0] sm:$0xff]
      %v1810 = vld [vmem:[#allocation6 + $0x3d8] sm:$0xff]
      %v1811 = vld [vmem:[#allocation6 + $0x3e0] sm:$0xff]
      %v1812 = vld [vmem:[#allocation6 + $0x3e8] sm:$0xff]
      %v1813 = vld [vmem:[#allocation6 + $0x3f0] sm:$0xff]
      %v1814 = vld [vmem:[#allocation6 + $0x3f8] sm:$0xff]
      %v1815 = vld [vmem:[#allocation6 + $0x400] sm:$0xff]
      %v1816 = vld [vmem:[#allocation6 + $0x408] sm:$0xff]
      %v1817 = vld [vmem:[#allocation6 + $0x410] sm:$0xff]
      %v1818 = vld [vmem:[#allocation6 + $0x418] sm:$0xff]
      %v1819 = vld [vmem:[#allocation6 + $0x420] sm:$0xff]
      %v1820 = vld [vmem:[#allocation6 + $0x428] sm:$0xff]
      %v1821 = vld [vmem:[#allocation6 + $0x430] sm:$0xff]
      %v1822 = vld [vmem:[#allocation6 + $0x438] sm:$0xff]
      %v1823 = vld [vmem:[#allocation6 + $0x440] sm:$0xff]
      %v1824 = vld [vmem:[#allocation6 + $0x448] sm:$0xff]
      %v1825 = vld [vmem:[#allocation6 + $0x450] sm:$0xff]
      %v1826 = vld [vmem:[#allocation6 + $0x458] sm:$0xff]
      %v1827 = vld [vmem:[#allocation6 + $0x460] sm:$0xff]
      %v1828 = vld [vmem:[#allocation6 + $0x468] sm:$0xff]
      %v1829 = vld [vmem:[#allocation6 + $0x470] sm:$0xff]
      %v1830 = vld [vmem:[#allocation6 + $0x478] sm:$0xff]
      %v1831 = vld [vmem:[#allocation6 + $0x480] sm:$0xff]
      %v1832 = vld [vmem:[#allocation6 + $0x488] sm:$0xff]
      %v1833 = vld [vmem:[#allocation6 + $0x490] sm:$0xff]
      %v1834 = vld [vmem:[#allocation6 + $0x498] sm:$0xff]
      %v1835 = vld [vmem:[#allocation6 + $0x4a0] sm:$0xff]
      %v1836 = vld [vmem:[#allocation6 + $0x4a8] sm:$0xff]
      %v1837 = vld [vmem:[#allocation6 + $0x4b0] sm:$0xff]
      %v1838 = vld [vmem:[#allocation6 + $0x4b8] sm:$0xff]
      %v1839 = vld [vmem:[#allocation6 + $0x4c0] sm:$0xff]
      %v1840 = vld [vmem:[#allocation6 + $0x4c8] sm:$0xff]
      %v1841 = vld [vmem:[#allocation6 + $0x4d0] sm:$0xff]
      %v1842 = vld [vmem:[#allocation6 + $0x4d8] sm:$0xff]
      %v1843 = vld [vmem:[#allocation6 + $0x4e0] sm:$0xff]
      %v1844 = vld [vmem:[#allocation6 + $0x4e8] sm:$0xff]
      %v1845 = vld [vmem:[#allocation6 + $0x4f0] sm:$0xff]
      %v1846 = vld [vmem:[#allocation6 + $0x4f8] sm:$0xff]
      %v1847 = vld [vmem:[#allocation6 + $0x500] sm:$0xff]
      %v1848 = vld [vmem:[#allocation6 + $0x508] sm:$0xff]
      %v1849 = vld [vmem:[#allocation6 + $0x510] sm:$0xff]
      %v1850 = vld [vmem:[#allocation6 + $0x518] sm:$0xff]
      %v1851 = vld [vmem:[#allocation6 + $0x520] sm:$0xff]
      %v1852 = vld [vmem:[#allocation6 + $0x528] sm:$0xff]
      %v1853 = vld [vmem:[#allocation6 + $0x530] sm:$0xff]
      %v1854 = vld [vmem:[#allocation6 + $0x538] sm:$0xff]
      %v1855 = vld [vmem:[#allocation6 + $0x540] sm:$0xff]
      %v1856 = vld [vmem:[#allocation6 + $0x548] sm:$0xff]
      %v1857 = vld [vmem:[#allocation6 + $0x550] sm:$0xff]
      %v1858 = vld [vmem:[#allocation6 + $0x558] sm:$0xff]
      %v1859 = vld [vmem:[#allocation6 + $0x560] sm:$0xff]
      %v1860 = vld [vmem:[#allocation6 + $0x568] sm:$0xff]
      %v1861 = vld [vmem:[#allocation6 + $0x570] sm:$0xff]
      %v1862 = vld [vmem:[#allocation6 + $0x578] sm:$0xff]
      %v1863 = vld [vmem:[#allocation6 + $0x580] sm:$0xff]
      %v1864 = vld [vmem:[#allocation6 + $0x588] sm:$0xff]
      %v1865 = vld [vmem:[#allocation6 + $0x590] sm:$0xff]
      %v1866 = vld [vmem:[#allocation6 + $0x598] sm:$0xff]
      %v1867 = vld [vmem:[#allocation6 + $0x5a0] sm:$0xff]
      %v1868 = vld [vmem:[#allocation6 + $0x5a8] sm:$0xff]
      %v1869 = vld [vmem:[#allocation6 + $0x5b0] sm:$0xff]
      %v1870 = vld [vmem:[#allocation6 + $0x5b8] sm:$0xff]
      %v1871 = vld [vmem:[#allocation6 + $0x5c0] sm:$0xff]
      %v1872 = vld [vmem:[#allocation6 + $0x5c8] sm:$0xff]
      %v1873 = vld [vmem:[#allocation6 + $0x5d0] sm:$0xff]
      %v1874 = vld [vmem:[#allocation6 + $0x5d8] sm:$0xff]
      %v1875 = vld [vmem:[#allocation6 + $0x5e0] sm:$0xff]
      %v1876 = vld [vmem:[#allocation6 + $0x5e8] sm:$0xff]
      %v1877 = vld [vmem:[#allocation6 + $0x5f0] sm:$0xff]
      %v1878 = vld [vmem:[#allocation6 + $0x5f8] sm:$0xff]
      %1879 = vmatprep.subr.mxu0 %v1778
      %1880 = vmatpush1.msra.mxu0 %v1777
      %1881 = vmatprep.subr.mxu0 %v1772
      %1882 = vmatpush1.msra.mxu0 %v1771
      %1883 = vmatprep.subr.mxu0 %v1766
      %1884 = vmatpush1.msra.mxu0 %v1765
      %1885 = vmatprep.subr.mxu0 %v1760
      %1886 = vmatpush1.msra.mxu0 %v1759
      %1887 = vmatprep.subr.mxu0 %v1754
      %1888 = vmatpush1.msra.mxu0 %v1753
      %1889 = vmatprep.subr.mxu0 %v1748
      %1890 = vmatpush1.msra.mxu0 %v1747
      %1891 = vmatprep.subr.mxu0 %v1742
      %1892 = vmatpush1.msra.mxu0 %v1741
      %1893 = vmatprep.subr.mxu0 %v1736
      %1894 = vmatpush1.msra.mxu0 %v1735
      %1895 = vmatprep.subr.mxu0 %v1730
      %1896 = vmatpush1.msra.mxu0 %v1729
      %1897 = vmatprep.subr.mxu0 %v1724
      %1898 = vmatpush1.msra.mxu0 %v1723
      %1899 = vmatprep.subr.mxu0 %v1718
      %1900 = vmatpush1.msra.mxu0 %v1717
      %1901 = vmatprep.subr.mxu0 %v1712
      %1902 = vmatpush1.msra.mxu0 %v1711
      %1903 = vmatprep.subr.mxu0 %v1706
      %1904 = vmatpush1.msra.mxu0 %v1705
      %1905 = vmatprep.subr.mxu0 %v1700
      %1906 = vmatpush1.msra.mxu0 %v1699
      %1907 = vmatprep.subr.mxu0 %v1694
      %1908 = vmatpush1.msra.mxu0 %v1693
      %1909 = vmatprep.subr.mxu0 %v1688
      %1910 = vmatpush1.msra.mxu0 %v1687
      %1911 = vmatprep.subr.mxu0 %v1874
      %1912 = vmatpush2.msra.mxu0 %v1873
      %1913 = vmatprep.subr.mxu0 %v1868
      %1914 = vmatpush2.msra.mxu0 %v1867
      %1915 = vmatprep.subr.mxu0 %v1862
      %1916 = vmatpush2.msra.mxu0 %v1861
      %1917 = vmatprep.subr.mxu0 %v1856
      %1918 = vmatpush2.msra.mxu0 %v1855
      %1919 = vmatprep.subr.mxu0 %v1850
      %1920 = vmatpush2.msra.mxu0 %v1849
      %1921 = vmatprep.subr.mxu0 %v1844
      %1922 = vmatpush2.msra.mxu0 %v1843
      %1923 = vmatprep.subr.mxu0 %v1838
      %1924 = vmatpush2.msra.mxu0 %v1837
      %1925 = vmatprep.subr.mxu0 %v1832
      %1926 = vmatpush2.msra.mxu0 %v1831
      %1927 = vmatprep.subr.mxu0 %v1826
      %1928 = vmatpush2.msra.mxu0 %v1825
      %1929 = vmatprep.subr.mxu0 %v1820
      %1930 = vmatpush2.msra.mxu0 %v1819
      %1931 = vmatprep.subr.mxu0 %v1814
      %1932 = vmatpush2.msra.mxu0 %v1813
      %1933 = vmatprep.subr.mxu0 %v1808
      %1934 = vmatpush2.msra.mxu0 %v1807
      %1935 = vmatprep.subr.mxu0 %v1802
      %1936 = vmatpush2.msra.mxu0 %v1801
      %1937 = vmatprep.subr.mxu0 %v1796
      %1938 = vmatpush2.msra.mxu0 %v1795
      %1939 = vmatprep.subr.mxu0 %v1790
      %1940 = vmatpush2.msra.mxu0 %v1789
      %1941 = vmatprep.subr.mxu0 %v1784
      %1942 = vmatpush2.msra.mxu0 %v1783
      %1943 = vmatprep.mubr.f32.mxu0 %v1686
      %1944 = vmatmul.mubr.f32.gmra.mxu0 %v1685
      %v1945 = vpop.f32.mrf.mxu0
      %v1946 = vadd.f32 %v702, %v1945
      %v1947 = vpop.f32.mrf.mxu0
      %v1948 = vadd.f32 %v706, %v1947
      %1949 = vdwg.mxu0
      %1950 = vmatprep.subr.mxu0 %v1780
      %1951 = vmatpush1.msra.mxu0 %v1779
      %1952 = vmatprep.subr.mxu0 %v1774
      %1953 = vmatpush1.msra.mxu0 %v1773
      %1954 = vmatprep.subr.mxu0 %v1768
      %1955 = vmatpush1.msra.mxu0 %v1767
      %1956 = vmatprep.subr.mxu0 %v1762
      %1957 = vmatpush1.msra.mxu0 %v1761
      %1958 = vmatprep.subr.mxu0 %v1756
      %1959 = vmatpush1.msra.mxu0 %v1755
      %1960 = vmatprep.subr.mxu0 %v1750
      %1961 = vmatpush1.msra.mxu0 %v1749
      %1962 = vmatprep.subr.mxu0 %v1744
      %1963 = vmatpush1.msra.mxu0 %v1743
      %1964 = vmatprep.subr.mxu0 %v1738
      %1965 = vmatpush1.msra.mxu0 %v1737
      %1966 = vmatprep.subr.mxu0 %v1732
      %1967 = vmatpush1.msra.mxu0 %v1731
      %1968 = vmatprep.subr.mxu0 %v1726
      %1969 = vmatpush1.msra.mxu0 %v1725
      %1970 = vmatprep.subr.mxu0 %v1720
      %1971 = vmatpush1.msra.mxu0 %v1719
      %1972 = vmatprep.subr.mxu0 %v1714
      %1973 = vmatpush1.msra.mxu0 %v1713
      %1974 = vmatprep.subr.mxu0 %v1708
      %1975 = vmatpush1.msra.mxu0 %v1707
      %1976 = vmatprep.subr.mxu0 %v1702
      %1977 = vmatpush1.msra.mxu0 %v1701
      %1978 = vmatprep.subr.mxu0 %v1696
      %1979 = vmatpush1.msra.mxu0 %v1695
      %1980 = vmatprep.subr.mxu0 %v1690
      %1981 = vmatpush1.msra.mxu0 %v1689
      %1982 = vmatprep.subr.mxu0 %v1876
      %1983 = vmatpush2.msra.mxu0 %v1875
      %1984 = vmatprep.subr.mxu0 %v1870
      %1985 = vmatpush2.msra.mxu0 %v1869
      %1986 = vmatprep.subr.mxu0 %v1864
      %1987 = vmatpush2.msra.mxu0 %v1863
      %1988 = vmatprep.subr.mxu0 %v1858
      %1989 = vmatpush2.msra.mxu0 %v1857
      %1990 = vmatprep.subr.mxu0 %v1852
      %1991 = vmatpush2.msra.mxu0 %v1851
      %1992 = vmatprep.subr.mxu0 %v1846
      %1993 = vmatpush2.msra.mxu0 %v1845
      %1994 = vmatprep.subr.mxu0 %v1840
      %1995 = vmatpush2.msra.mxu0 %v1839
      %1996 = vmatprep.subr.mxu0 %v1834
      %1997 = vmatpush2.msra.mxu0 %v1833
      %1998 = vmatprep.subr.mxu0 %v1828
      %1999 = vmatpush2.msra.mxu0 %v1827
      %2000 = vmatprep.subr.mxu0 %v1822
      %2001 = vmatpush2.msra.mxu0 %v1821
      %2002 = vmatprep.subr.mxu0 %v1816
      %2003 = vmatpush2.msra.mxu0 %v1815
      %2004 = vmatprep.subr.mxu0 %v1810
      %2005 = vmatpush2.msra.mxu0 %v1809
      %2006 = vmatprep.subr.mxu0 %v1804
      %2007 = vmatpush2.msra.mxu0 %v1803
      %2008 = vmatprep.subr.mxu0 %v1798
      %2009 = vmatpush2.msra.mxu0 %v1797
      %2010 = vmatprep.subr.mxu0 %v1792
      %2011 = vmatpush2.msra.mxu0 %v1791
      %2012 = vmatprep.subr.mxu0 %v1786
      %2013 = vmatpush2.msra.mxu0 %v1785
      %2014 = vmatprep.mubr.f32.mxu0 %v1686
      %2015 = vmatmul.mubr.f32.gmra.mxu0 %v1685
      %v2016 = vpop.f32.mrf.mxu0
      %v2017 = vadd.f32 %v710, %v2016
      %v2018 = vpop.f32.mrf.mxu0
      %v2019 = vadd.f32 %v714, %v2018
      %2020 = vdwg.mxu0
      %2021 = vmatprep.subr.mxu0 %v1782
      %2022 = vmatpush1.msra.mxu0 %v1781
      %2023 = vmatprep.subr.mxu0 %v1776
      %2024 = vmatpush1.msra.mxu0 %v1775
      %2025 = vmatprep.subr.mxu0 %v1770
      %2026 = vmatpush1.msra.mxu0 %v1769
      %2027 = vmatprep.subr.mxu0 %v1764
      %2028 = vmatpush1.msra.mxu0 %v1763
      %2029 = vmatprep.subr.mxu0 %v1758
      %2030 = vmatpush1.msra.mxu0 %v1757
      %2031 = vmatprep.subr.mxu0 %v1752
      %2032 = vmatpush1.msra.mxu0 %v1751
      %2033 = vmatprep.subr.mxu0 %v1746
      %2034 = vmatpush1.msra.mxu0 %v1745
      %2035 = vmatprep.subr.mxu0 %v1740
      %2036 = vmatpush1.msra.mxu0 %v1739
      %2037 = vmatprep.subr.mxu0 %v1734
      %2038 = vmatpush1.msra.mxu0 %v1733
      %2039 = vmatprep.subr.mxu0 %v1728
      %2040 = vmatpush1.msra.mxu0 %v1727
      %2041 = vmatprep.subr.mxu0 %v1722
      %2042 = vmatpush1.msra.mxu0 %v1721
      %2043 = vmatprep.subr.mxu0 %v1716
      %2044 = vmatpush1.msra.mxu0 %v1715
      %2045 = vmatprep.subr.mxu0 %v1710
      %2046 = vmatpush1.msra.mxu0 %v1709
      %2047 = vmatprep.subr.mxu0 %v1704
      %2048 = vmatpush1.msra.mxu0 %v1703
      %2049 = vmatprep.subr.mxu0 %v1698
      %2050 = vmatpush1.msra.mxu0 %v1697
      %2051 = vmatprep.subr.mxu0 %v1692
      %2052 = vmatpush1.msra.mxu0 %v1691
      %2053 = vmatprep.subr.mxu0 %v1878
      %2054 = vmatpush2.msra.mxu0 %v1877
      %2055 = vmatprep.subr.mxu0 %v1872
      %2056 = vmatpush2.msra.mxu0 %v1871
      %2057 = vmatprep.subr.mxu0 %v1866
      %2058 = vmatpush2.msra.mxu0 %v1865
      %2059 = vmatprep.subr.mxu0 %v1860
      %2060 = vmatpush2.msra.mxu0 %v1859
      %2061 = vmatprep.subr.mxu0 %v1854
      %2062 = vmatpush2.msra.mxu0 %v1853
      %2063 = vmatprep.subr.mxu0 %v1848
      %2064 = vmatpush2.msra.mxu0 %v1847
      %2065 = vmatprep.subr.mxu0 %v1842
      %2066 = vmatpush2.msra.mxu0 %v1841
      %2067 = vmatprep.subr.mxu0 %v1836
      %2068 = vmatpush2.msra.mxu0 %v1835
      %2069 = vmatprep.subr.mxu0 %v1830
      %2070 = vmatpush2.msra.mxu0 %v1829
      %2071 = vmatprep.subr.mxu0 %v1824
      %2072 = vmatpush2.msra.mxu0 %v1823
      %2073 = vmatprep.subr.mxu0 %v1818
      %2074 = vmatpush2.msra.mxu0 %v1817
      %2075 = vmatprep.subr.mxu0 %v1812
      %2076 = vmatpush2.msra.mxu0 %v1811
      %2077 = vmatprep.subr.mxu0 %v1806
      %2078 = vmatpush2.msra.mxu0 %v1805
      %2079 = vmatprep.subr.mxu0 %v1800
      %2080 = vmatpush2.msra.mxu0 %v1799
      %2081 = vmatprep.subr.mxu0 %v1794
      %2082 = vmatpush2.msra.mxu0 %v1793
      %2083 = vmatprep.subr.mxu0 %v1788
      %2084 = vmatpush2.msra.mxu0 %v1787
      %2085 = vmatprep.mubr.f32.mxu0 %v1686
      %2086 = vmatmul.mubr.f32.gmra.mxu0 %v1685
      %v2087 = vpop.f32.mrf.mxu0
      %v2088 = vadd.f32 %v718, %v2087
      %v2089 = vpop.f32.mrf.mxu0
      %v2090 = vadd.f32 %v722, %v2089
      %2091 = vdwg.mxu0
      %s2092 = sshra.s32 %s1682, 3
      %s2093 = sand.u32 %s1682, 7
      %s2094 = smul.u32 %s2092, 3
      %s2095 = smul.addr %s2094, 8
      %s2096 = scalar_lea.vmem [#allocation4], %s2095
      %v2097 = vld [vmem:[%s2096] sm:$0xff]
      %v2098 = vld [vmem:[%s2096 + $0x8] sm:$0xff]
      %v2099 = vld [vmem:[%s2096 + $0x10] sm:$0xff]
      %v2100 = vadd.f32 %v2097, %v1946
      %v2101 = vxor.u32 %v2100, 2147483648
      %v2102 = vmul.f32 %v2101, 1.442695
      %v2103 = vpow.pop %v2102
      %v2104 = vadd.f32 %v2103, 1.0
      %v2105 = vrcp.pop %v2104
      %v2106 = vmul.f32 1.0, %v2105
      %v2107 = vadd.f32 %v2098, %v1948
      %v2108 = vxor.u32 %v2107, 2147483648
      %v2109 = vmul.f32 %v2108, 1.442695
      %v2110 = vpow.pop %v2109
      %v2111 = vadd.f32 %v2110, 1.0
      %v2112 = vrcp.pop %v2111
      %v2113 = vmul.f32 1.0, %v2112
      %v2114 = vmul.f32 %v2106, %v2017
      %v2115 = vadd.f32 %v2099, %v2114
      %v2116 = vtanh.pop %v2115
      %v2117 = vsub.f32 %v1685, %v2116
      %v2118 = vmul.f32 %v2113, %v2117
      %v2119 = vadd.f32 %v2116, %v2118
      %s2120 = sshra.s32 %s1684, 3
      %s2121 = sand.u32 %s1684, 7
      %s2122 = smul.u32 %s2120, 3
      %s2123 = smul.addr %s2122, 8
      %s2124 = scalar_lea.vmem [#allocation5], %s2123
      %v2125 = vld [vmem:[%s2124] sm:$0xff]
      %v2126 = vld [vmem:[%s2124 + $0x8] sm:$0xff]
      %v2127 = vld [vmem:[%s2124 + $0x10] sm:$0xff]
      %v2128 = vadd.f32 %v2125, %v2019
      %v2129 = vxor.u32 %v2128, 2147483648
      %v2130 = vmul.f32 %v2129, 1.442695
      %v2131 = vpow.pop %v2130
      %v2132 = vadd.f32 %v2131, 1.0
      %v2133 = vrcp.pop %v2132
      %v2134 = vmul.f32 1.0, %v2133
      %v2135 = vadd.f32 %v2126, %v2088
      %v2136 = vxor.u32 %v2135, 2147483648
      %v2137 = vmul.f32 %v2136, 1.442695
      %v2138 = vpow.pop %v2137
      %v2139 = vadd.f32 %v2138, 1.0
      %v2140 = vrcp.pop %v2139
      %v2141 = vmul.f32 1.0, %v2140
      %v2142 = vmul.f32 %v2134, %v2090
      %v2143 = vadd.f32 %v2127, %v2142
      %v2144 = vtanh.pop %v2143
      %v2145 = vsub.f32 %v1686, %v2144
      %v2146 = vmul.f32 %v2141, %v2145
      %v2147 = vadd.f32 %v2144, %v2146
      %2148 = vst [vmem:[#allocation2] sm:$0xff] %v2119
      %2149 = vst [vmem:[#allocation3] sm:$0xff] %v2147
      %s2150 = scalar_lea.vmem [#allocation9], %s1682
      %2151 = vst [vmem:[%s2150] sm:$0xff] %v2119
      %s2152 = scalar_lea.vmem [#allocation10], %s1684
      %2153 = vst [vmem:[%s2152] sm:$0xff] %v2147
      %s2154 = sadd.s32 %s735, 3
      %s2155 = smul.u32 %s2154, 8
      %s2156 = ssub.s32 4, %s735
      %s2157 = smul.u32 %s2156, 8
      %v2158 = vld [vmem:[#allocation2] sm:$0xff]
      %v2159 = vld [vmem:[#allocation3] sm:$0xff]
      %v2160 = vld [vmem:[#allocation6] sm:$0xff]
      %v2161 = vld [vmem:[#allocation6 + $0x8] sm:$0xff]
      %v2162 = vld [vmem:[#allocation6 + $0x10] sm:$0xff]
      %v2163 = vld [vmem:[#allocation6 + $0x18] sm:$0xff]
      %v2164 = vld [vmem:[#allocation6 + $0x20] sm:$0xff]
      %v2165 = vld [vmem:[#allocation6 + $0x28] sm:$0xff]
      %v2166 = vld [vmem:[#allocation6 + $0x30] sm:$0xff]
      %v2167 = vld [vmem:[#allocation6 + $0x38] sm:$0xff]
      %v2168 = vld [vmem:[#allocation6 + $0x40] sm:$0xff]
      %v2169 = vld [vmem:[#allocation6 + $0x48] sm:$0xff]
      %v2170 = vld [vmem:[#allocation6 + $0x50] sm:$0xff]
      %v2171 = vld [vmem:[#allocation6 + $0x58] sm:$0xff]
      %v2172 = vld [vmem:[#allocation6 + $0x60] sm:$0xff]
      %v2173 = vld [vmem:[#allocation6 + $0x68] sm:$0xff]
      %v2174 = vld [vmem:[#allocation6 + $0x70] sm:$0xff]
      %v2175 = vld [vmem:[#allocation6 + $0x78] sm:$0xff]
      %v2176 = vld [vmem:[#allocation6 + $0x80] sm:$0xff]
      %v2177 = vld [vmem:[#allocation6 + $0x88] sm:$0xff]
      %v2178 = vld [vmem:[#allocation6 + $0x90] sm:$0xff]
      %v2179 = vld [vmem:[#allocation6 + $0x98] sm:$0xff]
      %v2180 = vld [vmem:[#allocation6 + $0xa0] sm:$0xff]
      %v2181 = vld [vmem:[#allocation6 + $0xa8] sm:$0xff]
      %v2182 = vld [vmem:[#allocation6 + $0xb0] sm:$0xff]
      %v2183 = vld [vmem:[#allocation6 + $0xb8] sm:$0xff]
      %v2184 = vld [vmem:[#allocation6 + $0xc0] sm:$0xff]
      %v2185 = vld [vmem:[#allocation6 + $0xc8] sm:$0xff]
      %v2186 = vld [vmem:[#allocation6 + $0xd0] sm:$0xff]
      %v2187 = vld [vmem:[#allocation6 + $0xd8] sm:$0xff]
      %v2188 = vld [vmem:[#allocation6 + $0xe0] sm:$0xff]
      %v2189 = vld [vmem:[#allocation6 + $0xe8] sm:$0xff]
      %v2190 = vld [vmem:[#allocation6 + $0xf0] sm:$0xff]
      %v2191 = vld [vmem:[#allocation6 + $0xf8] sm:$0xff]
      %v2192 = vld [vmem:[#allocation6 + $0x100] sm:$0xff]
      %v2193 = vld [vmem:[#allocation6 + $0x108] sm:$0xff]
      %v2194 = vld [vmem:[#allocation6 + $0x110] sm:$0xff]
      %v2195 = vld [vmem:[#allocation6 + $0x118] sm:$0xff]
      %v2196 = vld [vmem:[#allocation6 + $0x120] sm:$0xff]
      %v2197 = vld [vmem:[#allocation6 + $0x128] sm:$0xff]
      %v2198 = vld [vmem:[#allocation6 + $0x130] sm:$0xff]
      %v2199 = vld [vmem:[#allocation6 + $0x138] sm:$0xff]
      %v2200 = vld [vmem:[#allocation6 + $0x140] sm:$0xff]
      %v2201 = vld [vmem:[#allocation6 + $0x148] sm:$0xff]
      %v2202 = vld [vmem:[#allocation6 + $0x150] sm:$0xff]
      %v2203 = vld [vmem:[#allocation6 + $0x158] sm:$0xff]
      %v2204 = vld [vmem:[#allocation6 + $0x160] sm:$0xff]
      %v2205 = vld [vmem:[#allocation6 + $0x168] sm:$0xff]
      %v2206 = vld [vmem:[#allocation6 + $0x170] sm:$0xff]
      %v2207 = vld [vmem:[#allocation6 + $0x178] sm:$0xff]
      %v2208 = vld [vmem:[#allocation6 + $0x180] sm:$0xff]
      %v2209 = vld [vmem:[#allocation6 + $0x188] sm:$0xff]
      %v2210 = vld [vmem:[#allocation6 + $0x190] sm:$0xff]
      %v2211 = vld [vmem:[#allocation6 + $0x198] sm:$0xff]
      %v2212 = vld [vmem:[#allocation6 + $0x1a0] sm:$0xff]
      %v2213 = vld [vmem:[#allocation6 + $0x1a8] sm:$0xff]
      %v2214 = vld [vmem:[#allocation6 + $0x1b0] sm:$0xff]
      %v2215 = vld [vmem:[#allocation6 + $0x1b8] sm:$0xff]
      %v2216 = vld [vmem:[#allocation6 + $0x1c0] sm:$0xff]
      %v2217 = vld [vmem:[#allocation6 + $0x1c8] sm:$0xff]
      %v2218 = vld [vmem:[#allocation6 + $0x1d0] sm:$0xff]
      %v2219 = vld [vmem:[#allocation6 + $0x1d8] sm:$0xff]
      %v2220 = vld [vmem:[#allocation6 + $0x1e0] sm:$0xff]
      %v2221 = vld [vmem:[#allocation6 + $0x1e8] sm:$0xff]
      %v2222 = vld [vmem:[#allocation6 + $0x1f0] sm:$0xff]
      %v2223 = vld [vmem:[#allocation6 + $0x1f8] sm:$0xff]
      %v2224 = vld [vmem:[#allocation6 + $0x200] sm:$0xff]
      %v2225 = vld [vmem:[#allocation6 + $0x208] sm:$0xff]
      %v2226 = vld [vmem:[#allocation6 + $0x210] sm:$0xff]
      %v2227 = vld [vmem:[#allocation6 + $0x218] sm:$0xff]
      %v2228 = vld [vmem:[#allocation6 + $0x220] sm:$0xff]
      %v2229 = vld [vmem:[#allocation6 + $0x228] sm:$0xff]
      %v2230 = vld [vmem:[#allocation6 + $0x230] sm:$0xff]
      %v2231 = vld [vmem:[#allocation6 + $0x238] sm:$0xff]
      %v2232 = vld [vmem:[#allocation6 + $0x240] sm:$0xff]
      %v2233 = vld [vmem:[#allocation6 + $0x248] sm:$0xff]
      %v2234 = vld [vmem:[#allocation6 + $0x250] sm:$0xff]
      %v2235 = vld [vmem:[#allocation6 + $0x258] sm:$0xff]
      %v2236 = vld [vmem:[#allocation6 + $0x260] sm:$0xff]
      %v2237 = vld [vmem:[#allocation6 + $0x268] sm:$0xff]
      %v2238 = vld [vmem:[#allocation6 + $0x270] sm:$0xff]
      %v2239 = vld [vmem:[#allocation6 + $0x278] sm:$0xff]
      %v2240 = vld [vmem:[#allocation6 + $0x280] sm:$0xff]
      %v2241 = vld [vmem:[#allocation6 + $0x288] sm:$0xff]
      %v2242 = vld [vmem:[#allocation6 + $0x290] sm:$0xff]
      %v2243 = vld [vmem:[#allocation6 + $0x298] sm:$0xff]
      %v2244 = vld [vmem:[#allocation6 + $0x2a0] sm:$0xff]
      %v2245 = vld [vmem:[#allocation6 + $0x2a8] sm:$0xff]
      %v2246 = vld [vmem:[#allocation6 + $0x2b0] sm:$0xff]
      %v2247 = vld [vmem:[#allocation6 + $0x2b8] sm:$0xff]
      %v2248 = vld [vmem:[#allocation6 + $0x2c0] sm:$0xff]
      %v2249 = vld [vmem:[#allocation6 + $0x2c8] sm:$0xff]
      %v2250 = vld [vmem:[#allocation6 + $0x2d0] sm:$0xff]
      %v2251 = vld [vmem:[#allocation6 + $0x2d8] sm:$0xff]
      %v2252 = vld [vmem:[#allocation6 + $0x2e0] sm:$0xff]
      %v2253 = vld [vmem:[#allocation6 + $0x2e8] sm:$0xff]
      %v2254 = vld [vmem:[#allocation6 + $0x2f0] sm:$0xff]
      %v2255 = vld [vmem:[#allocation6 + $0x2f8] sm:$0xff]
      %v2256 = vld [vmem:[#allocation6 + $0x300] sm:$0xff]
      %v2257 = vld [vmem:[#allocation6 + $0x308] sm:$0xff]
      %v2258 = vld [vmem:[#allocation6 + $0x310] sm:$0xff]
      %v2259 = vld [vmem:[#allocation6 + $0x318] sm:$0xff]
      %v2260 = vld [vmem:[#allocation6 + $0x320] sm:$0xff]
      %v2261 = vld [vmem:[#allocation6 + $0x328] sm:$0xff]
      %v2262 = vld [vmem:[#allocation6 + $0x330] sm:$0xff]
      %v2263 = vld [vmem:[#allocation6 + $0x338] sm:$0xff]
      %v2264 = vld [vmem:[#allocation6 + $0x340] sm:$0xff]
      %v2265 = vld [vmem:[#allocation6 + $0x348] sm:$0xff]
      %v2266 = vld [vmem:[#allocation6 + $0x350] sm:$0xff]
      %v2267 = vld [vmem:[#allocation6 + $0x358] sm:$0xff]
      %v2268 = vld [vmem:[#allocation6 + $0x360] sm:$0xff]
      %v2269 = vld [vmem:[#allocation6 + $0x368] sm:$0xff]
      %v2270 = vld [vmem:[#allocation6 + $0x370] sm:$0xff]
      %v2271 = vld [vmem:[#allocation6 + $0x378] sm:$0xff]
      %v2272 = vld [vmem:[#allocation6 + $0x380] sm:$0xff]
      %v2273 = vld [vmem:[#allocation6 + $0x388] sm:$0xff]
      %v2274 = vld [vmem:[#allocation6 + $0x390] sm:$0xff]
      %v2275 = vld [vmem:[#allocation6 + $0x398] sm:$0xff]
      %v2276 = vld [vmem:[#allocation6 + $0x3a0] sm:$0xff]
      %v2277 = vld [vmem:[#allocation6 + $0x3a8] sm:$0xff]
      %v2278 = vld [vmem:[#allocation6 + $0x3b0] sm:$0xff]
      %v2279 = vld [vmem:[#allocation6 + $0x3b8] sm:$0xff]
      %v2280 = vld [vmem:[#allocation6 + $0x3c0] sm:$0xff]
      %v2281 = vld [vmem:[#allocation6 + $0x3c8] sm:$0xff]
      %v2282 = vld [vmem:[#allocation6 + $0x3d0] sm:$0xff]
      %v2283 = vld [vmem:[#allocation6 + $0x3d8] sm:$0xff]
      %v2284 = vld [vmem:[#allocation6 + $0x3e0] sm:$0xff]
      %v2285 = vld [vmem:[#allocation6 + $0x3e8] sm:$0xff]
      %v2286 = vld [vmem:[#allocation6 + $0x3f0] sm:$0xff]
      %v2287 = vld [vmem:[#allocation6 + $0x3f8] sm:$0xff]
      %v2288 = vld [vmem:[#allocation6 + $0x400] sm:$0xff]
      %v2289 = vld [vmem:[#allocation6 + $0x408] sm:$0xff]
      %v2290 = vld [vmem:[#allocation6 + $0x410] sm:$0xff]
      %v2291 = vld [vmem:[#allocation6 + $0x418] sm:$0xff]
      %v2292 = vld [vmem:[#allocation6 + $0x420] sm:$0xff]
      %v2293 = vld [vmem:[#allocation6 + $0x428] sm:$0xff]
      %v2294 = vld [vmem:[#allocation6 + $0x430] sm:$0xff]
      %v2295 = vld [vmem:[#allocation6 + $0x438] sm:$0xff]
      %v2296 = vld [vmem:[#allocation6 + $0x440] sm:$0xff]
      %v2297 = vld [vmem:[#allocation6 + $0x448] sm:$0xff]
      %v2298 = vld [vmem:[#allocation6 + $0x450] sm:$0xff]
      %v2299 = vld [vmem:[#allocation6 + $0x458] sm:$0xff]
      %v2300 = vld [vmem:[#allocation6 + $0x460] sm:$0xff]
      %v2301 = vld [vmem:[#allocation6 + $0x468] sm:$0xff]
      %v2302 = vld [vmem:[#allocation6 + $0x470] sm:$0xff]
      %v2303 = vld [vmem:[#allocation6 + $0x478] sm:$0xff]
      %v2304 = vld [vmem:[#allocation6 + $0x480] sm:$0xff]
      %v2305 = vld [vmem:[#allocation6 + $0x488] sm:$0xff]
      %v2306 = vld [vmem:[#allocation6 + $0x490] sm:$0xff]
      %v2307 = vld [vmem:[#allocation6 + $0x498] sm:$0xff]
      %v2308 = vld [vmem:[#allocation6 + $0x4a0] sm:$0xff]
      %v2309 = vld [vmem:[#allocation6 + $0x4a8] sm:$0xff]
      %v2310 = vld [vmem:[#allocation6 + $0x4b0] sm:$0xff]
      %v2311 = vld [vmem:[#allocation6 + $0x4b8] sm:$0xff]
      %v2312 = vld [vmem:[#allocation6 + $0x4c0] sm:$0xff]
      %v2313 = vld [vmem:[#allocation6 + $0x4c8] sm:$0xff]
      %v2314 = vld [vmem:[#allocation6 + $0x4d0] sm:$0xff]
      %v2315 = vld [vmem:[#allocation6 + $0x4d8] sm:$0xff]
      %v2316 = vld [vmem:[#allocation6 + $0x4e0] sm:$0xff]
      %v2317 = vld [vmem:[#allocation6 + $0x4e8] sm:$0xff]
      %v2318 = vld [vmem:[#allocation6 + $0x4f0] sm:$0xff]
      %v2319 = vld [vmem:[#allocation6 + $0x4f8] sm:$0xff]
      %v2320 = vld [vmem:[#allocation6 + $0x500] sm:$0xff]
      %v2321 = vld [vmem:[#allocation6 + $0x508] sm:$0xff]
      %v2322 = vld [vmem:[#allocation6 + $0x510] sm:$0xff]
      %v2323 = vld [vmem:[#allocation6 + $0x518] sm:$0xff]
      %v2324 = vld [vmem:[#allocation6 + $0x520] sm:$0xff]
      %v2325 = vld [vmem:[#allocation6 + $0x528] sm:$0xff]
      %v2326 = vld [vmem:[#allocation6 + $0x530] sm:$0xff]
      %v2327 = vld [vmem:[#allocation6 + $0x538] sm:$0xff]
      %v2328 = vld [vmem:[#allocation6 + $0x540] sm:$0xff]
      %v2329 = vld [vmem:[#allocation6 + $0x548] sm:$0xff]
      %v2330 = vld [vmem:[#allocation6 + $0x550] sm:$0xff]
      %v2331 = vld [vmem:[#allocation6 + $0x558] sm:$0xff]
      %v2332 = vld [vmem:[#allocation6 + $0x560] sm:$0xff]
      %v2333 = vld [vmem:[#allocation6 + $0x568] sm:$0xff]
      %v2334 = vld [vmem:[#allocation6 + $0x570] sm:$0xff]
      %v2335 = vld [vmem:[#allocation6 + $0x578] sm:$0xff]
      %v2336 = vld [vmem:[#allocation6 + $0x580] sm:$0xff]
      %v2337 = vld [vmem:[#allocation6 + $0x588] sm:$0xff]
      %v2338 = vld [vmem:[#allocation6 + $0x590] sm:$0xff]
      %v2339 = vld [vmem:[#allocation6 + $0x598] sm:$0xff]
      %v2340 = vld [vmem:[#allocation6 + $0x5a0] sm:$0xff]
      %v2341 = vld [vmem:[#allocation6 + $0x5a8] sm:$0xff]
      %v2342 = vld [vmem:[#allocation6 + $0x5b0] sm:$0xff]
      %v2343 = vld [vmem:[#allocation6 + $0x5b8] sm:$0xff]
      %v2344 = vld [vmem:[#allocation6 + $0x5c0] sm:$0xff]
      %v2345 = vld [vmem:[#allocation6 + $0x5c8] sm:$0xff]
      %v2346 = vld [vmem:[#allocation6 + $0x5d0] sm:$0xff]
      %v2347 = vld [vmem:[#allocation6 + $0x5d8] sm:$0xff]
      %v2348 = vld [vmem:[#allocation6 + $0x5e0] sm:$0xff]
      %v2349 = vld [vmem:[#allocation6 + $0x5e8] sm:$0xff]
      %v2350 = vld [vmem:[#allocation6 + $0x5f0] sm:$0xff]
      %v2351 = vld [vmem:[#allocation6 + $0x5f8] sm:$0xff]
      %2352 = vmatprep.subr.mxu0 %v2251
      %2353 = vmatpush1.msra.mxu0 %v2250
      %2354 = vmatprep.subr.mxu0 %v2245
      %2355 = vmatpush1.msra.mxu0 %v2244
      %2356 = vmatprep.subr.mxu0 %v2239
      %2357 = vmatpush1.msra.mxu0 %v2238
      %2358 = vmatprep.subr.mxu0 %v2233
      %2359 = vmatpush1.msra.mxu0 %v2232
      %2360 = vmatprep.subr.mxu0 %v2227
      %2361 = vmatpush1.msra.mxu0 %v2226
      %2362 = vmatprep.subr.mxu0 %v2221
      %2363 = vmatpush1.msra.mxu0 %v2220
      %2364 = vmatprep.subr.mxu0 %v2215
      %2365 = vmatpush1.msra.mxu0 %v2214
      %2366 = vmatprep.subr.mxu0 %v2209
      %2367 = vmatpush1.msra.mxu0 %v2208
      %2368 = vmatprep.subr.mxu0 %v2203
      %2369 = vmatpush1.msra.mxu0 %v2202
      %2370 = vmatprep.subr.mxu0 %v2197
      %2371 = vmatpush1.msra.mxu0 %v2196
      %2372 = vmatprep.subr.mxu0 %v2191
      %2373 = vmatpush1.msra.mxu0 %v2190
      %2374 = vmatprep.subr.mxu0 %v2185
      %2375 = vmatpush1.msra.mxu0 %v2184
      %2376 = vmatprep.subr.mxu0 %v2179
      %2377 = vmatpush1.msra.mxu0 %v2178
      %2378 = vmatprep.subr.mxu0 %v2173
      %2379 = vmatpush1.msra.mxu0 %v2172
      %2380 = vmatprep.subr.mxu0 %v2167
      %2381 = vmatpush1.msra.mxu0 %v2166
      %2382 = vmatprep.subr.mxu0 %v2161
      %2383 = vmatpush1.msra.mxu0 %v2160
      %2384 = vmatprep.subr.mxu0 %v2347
      %2385 = vmatpush2.msra.mxu0 %v2346
      %2386 = vmatprep.subr.mxu0 %v2341
      %2387 = vmatpush2.msra.mxu0 %v2340
      %2388 = vmatprep.subr.mxu0 %v2335
      %2389 = vmatpush2.msra.mxu0 %v2334
      %2390 = vmatprep.subr.mxu0 %v2329
      %2391 = vmatpush2.msra.mxu0 %v2328
      %2392 = vmatprep.subr.mxu0 %v2323
      %2393 = vmatpush2.msra.mxu0 %v2322
      %2394 = vmatprep.subr.mxu0 %v2317
      %2395 = vmatpush2.msra.mxu0 %v2316
      %2396 = vmatprep.subr.mxu0 %v2311
      %2397 = vmatpush2.msra.mxu0 %v2310
      %2398 = vmatprep.subr.mxu0 %v2305
      %2399 = vmatpush2.msra.mxu0 %v2304
      %2400 = vmatprep.subr.mxu0 %v2299
      %2401 = vmatpush2.msra.mxu0 %v2298
      %2402 = vmatprep.subr.mxu0 %v2293
      %2403 = vmatpush2.msra.mxu0 %v2292
      %2404 = vmatprep.subr.mxu0 %v2287
      %2405 = vmatpush2.msra.mxu0 %v2286
      %2406 = vmatprep.subr.mxu0 %v2281
      %2407 = vmatpush2.msra.mxu0 %v2280
      %2408 = vmatprep.subr.mxu0 %v2275
      %2409 = vmatpush2.msra.mxu0 %v2274
      %2410 = vmatprep.subr.mxu0 %v2269
      %2411 = vmatpush2.msra.mxu0 %v2268
      %2412 = vmatprep.subr.mxu0 %v2263
      %2413 = vmatpush2.msra.mxu0 %v2262
      %2414 = vmatprep.subr.mxu0 %v2257
      %2415 = vmatpush2.msra.mxu0 %v2256
      %2416 = vmatprep.mubr.f32.mxu0 %v2159
      %2417 = vmatmul.mubr.f32.gmra.mxu0 %v2158
      %v2418 = vpop.f32.mrf.mxu0
      %v2419 = vadd.f32 %v702, %v2418
      %v2420 = vpop.f32.mrf.mxu0
      %v2421 = vadd.f32 %v706, %v2420
      %2422 = vdwg.mxu0
      %2423 = vmatprep.subr.mxu0 %v2253
      %2424 = vmatpush1.msra.mxu0 %v2252
      %2425 = vmatprep.subr.mxu0 %v2247
      %2426 = vmatpush1.msra.mxu0 %v2246
      %2427 = vmatprep.subr.mxu0 %v2241
      %2428 = vmatpush1.msra.mxu0 %v2240
      %2429 = vmatprep.subr.mxu0 %v2235
      %2430 = vmatpush1.msra.mxu0 %v2234
      %2431 = vmatprep.subr.mxu0 %v2229
      %2432 = vmatpush1.msra.mxu0 %v2228
      %2433 = vmatprep.subr.mxu0 %v2223
      %2434 = vmatpush1.msra.mxu0 %v2222
      %2435 = vmatprep.subr.mxu0 %v2217
      %2436 = vmatpush1.msra.mxu0 %v2216
      %2437 = vmatprep.subr.mxu0 %v2211
      %2438 = vmatpush1.msra.mxu0 %v2210
      %2439 = vmatprep.subr.mxu0 %v2205
      %2440 = vmatpush1.msra.mxu0 %v2204
      %2441 = vmatprep.subr.mxu0 %v2199
      %2442 = vmatpush1.msra.mxu0 %v2198
      %2443 = vmatprep.subr.mxu0 %v2193
      %2444 = vmatpush1.msra.mxu0 %v2192
      %2445 = vmatprep.subr.mxu0 %v2187
      %2446 = vmatpush1.msra.mxu0 %v2186
      %2447 = vmatprep.subr.mxu0 %v2181
      %2448 = vmatpush1.msra.mxu0 %v2180
      %2449 = vmatprep.subr.mxu0 %v2175
      %2450 = vmatpush1.msra.mxu0 %v2174
      %2451 = vmatprep.subr.mxu0 %v2169
      %2452 = vmatpush1.msra.mxu0 %v2168
      %2453 = vmatprep.subr.mxu0 %v2163
      %2454 = vmatpush1.msra.mxu0 %v2162
      %2455 = vmatprep.subr.mxu0 %v2349
      %2456 = vmatpush2.msra.mxu0 %v2348
      %2457 = vmatprep.subr.mxu0 %v2343
      %2458 = vmatpush2.msra.mxu0 %v2342
      %2459 = vmatprep.subr.mxu0 %v2337
      %2460 = vmatpush2.msra.mxu0 %v2336
      %2461 = vmatprep.subr.mxu0 %v2331
      %2462 = vmatpush2.msra.mxu0 %v2330
      %2463 = vmatprep.subr.mxu0 %v2325
      %2464 = vmatpush2.msra.mxu0 %v2324
      %2465 = vmatprep.subr.mxu0 %v2319
      %2466 = vmatpush2.msra.mxu0 %v2318
      %2467 = vmatprep.subr.mxu0 %v2313
      %2468 = vmatpush2.msra.mxu0 %v2312
      %2469 = vmatprep.subr.mxu0 %v2307
      %2470 = vmatpush2.msra.mxu0 %v2306
      %2471 = vmatprep.subr.mxu0 %v2301
      %2472 = vmatpush2.msra.mxu0 %v2300
      %2473 = vmatprep.subr.mxu0 %v2295
      %2474 = vmatpush2.msra.mxu0 %v2294
      %2475 = vmatprep.subr.mxu0 %v2289
      %2476 = vmatpush2.msra.mxu0 %v2288
      %2477 = vmatprep.subr.mxu0 %v2283
      %2478 = vmatpush2.msra.mxu0 %v2282
      %2479 = vmatprep.subr.mxu0 %v2277
      %2480 = vmatpush2.msra.mxu0 %v2276
      %2481 = vmatprep.subr.mxu0 %v2271
      %2482 = vmatpush2.msra.mxu0 %v2270
      %2483 = vmatprep.subr.mxu0 %v2265
      %2484 = vmatpush2.msra.mxu0 %v2264
      %2485 = vmatprep.subr.mxu0 %v2259
      %2486 = vmatpush2.msra.mxu0 %v2258
      %2487 = vmatprep.mubr.f32.mxu0 %v2159
      %2488 = vmatmul.mubr.f32.gmra.mxu0 %v2158
      %v2489 = vpop.f32.mrf.mxu0
      %v2490 = vadd.f32 %v710, %v2489
      %v2491 = vpop.f32.mrf.mxu0
      %v2492 = vadd.f32 %v714, %v2491
      %2493 = vdwg.mxu0
      %2494 = vmatprep.subr.mxu0 %v2255
      %2495 = vmatpush1.msra.mxu0 %v2254
      %2496 = vmatprep.subr.mxu0 %v2249
      %2497 = vmatpush1.msra.mxu0 %v2248
      %2498 = vmatprep.subr.mxu0 %v2243
      %2499 = vmatpush1.msra.mxu0 %v2242
      %2500 = vmatprep.subr.mxu0 %v2237
      %2501 = vmatpush1.msra.mxu0 %v2236
      %2502 = vmatprep.subr.mxu0 %v2231
      %2503 = vmatpush1.msra.mxu0 %v2230
      %2504 = vmatprep.subr.mxu0 %v2225
      %2505 = vmatpush1.msra.mxu0 %v2224
      %2506 = vmatprep.subr.mxu0 %v2219
      %2507 = vmatpush1.msra.mxu0 %v2218
      %2508 = vmatprep.subr.mxu0 %v2213
      %2509 = vmatpush1.msra.mxu0 %v2212
      %2510 = vmatprep.subr.mxu0 %v2207
      %2511 = vmatpush1.msra.mxu0 %v2206
      %2512 = vmatprep.subr.mxu0 %v2201
      %2513 = vmatpush1.msra.mxu0 %v2200
      %2514 = vmatprep.subr.mxu0 %v2195
      %2515 = vmatpush1.msra.mxu0 %v2194
      %2516 = vmatprep.subr.mxu0 %v2189
      %2517 = vmatpush1.msra.mxu0 %v2188
      %2518 = vmatprep.subr.mxu0 %v2183
      %2519 = vmatpush1.msra.mxu0 %v2182
      %2520 = vmatprep.subr.mxu0 %v2177
      %2521 = vmatpush1.msra.mxu0 %v2176
      %2522 = vmatprep.subr.mxu0 %v2171
      %2523 = vmatpush1.msra.mxu0 %v2170
      %2524 = vmatprep.subr.mxu0 %v2165
      %2525 = vmatpush1.msra.mxu0 %v2164
      %2526 = vmatprep.subr.mxu0 %v2351
      %2527 = vmatpush2.msra.mxu0 %v2350
      %2528 = vmatprep.subr.mxu0 %v2345
      %2529 = vmatpush2.msra.mxu0 %v2344
      %2530 = vmatprep.subr.mxu0 %v2339
      %2531 = vmatpush2.msra.mxu0 %v2338
      %2532 = vmatprep.subr.mxu0 %v2333
      %2533 = vmatpush2.msra.mxu0 %v2332
      %2534 = vmatprep.subr.mxu0 %v2327
      %2535 = vmatpush2.msra.mxu0 %v2326
      %2536 = vmatprep.subr.mxu0 %v2321
      %2537 = vmatpush2.msra.mxu0 %v2320
      %2538 = vmatprep.subr.mxu0 %v2315
      %2539 = vmatpush2.msra.mxu0 %v2314
      %2540 = vmatprep.subr.mxu0 %v2309
      %2541 = vmatpush2.msra.mxu0 %v2308
      %2542 = vmatprep.subr.mxu0 %v2303
      %2543 = vmatpush2.msra.mxu0 %v2302
      %2544 = vmatprep.subr.mxu0 %v2297
      %2545 = vmatpush2.msra.mxu0 %v2296
      %2546 = vmatprep.subr.mxu0 %v2291
      %2547 = vmatpush2.msra.mxu0 %v2290
      %2548 = vmatprep.subr.mxu0 %v2285
      %2549 = vmatpush2.msra.mxu0 %v2284
      %2550 = vmatprep.subr.mxu0 %v2279
      %2551 = vmatpush2.msra.mxu0 %v2278
      %2552 = vmatprep.subr.mxu0 %v2273
      %2553 = vmatpush2.msra.mxu0 %v2272
      %2554 = vmatprep.subr.mxu0 %v2267
      %2555 = vmatpush2.msra.mxu0 %v2266
      %2556 = vmatprep.subr.mxu0 %v2261
      %2557 = vmatpush2.msra.mxu0 %v2260
      %2558 = vmatprep.mubr.f32.mxu0 %v2159
      %2559 = vmatmul.mubr.f32.gmra.mxu0 %v2158
      %v2560 = vpop.f32.mrf.mxu0
      %v2561 = vadd.f32 %v718, %v2560
      %v2562 = vpop.f32.mrf.mxu0
      %v2563 = vadd.f32 %v722, %v2562
      %2564 = vdwg.mxu0
      %s2565 = sshra.s32 %s2155, 3
      %s2566 = sand.u32 %s2155, 7
      %s2567 = smul.u32 %s2565, 3
      %s2568 = smul.addr %s2567, 8
      %s2569 = scalar_lea.vmem [#allocation4], %s2568
      %v2570 = vld [vmem:[%s2569] sm:$0xff]
      %v2571 = vld [vmem:[%s2569 + $0x8] sm:$0xff]
      %v2572 = vld [vmem:[%s2569 + $0x10] sm:$0xff]
      %v2573 = vadd.f32 %v2570, %v2419
      %v2574 = vxor.u32 %v2573, 2147483648
      %v2575 = vmul.f32 %v2574, 1.442695
      %v2576 = vpow.pop %v2575
      %v2577 = vadd.f32 %v2576, 1.0
      %v2578 = vrcp.pop %v2577
      %v2579 = vmul.f32 1.0, %v2578
      %v2580 = vadd.f32 %v2571, %v2421
      %v2581 = vxor.u32 %v2580, 2147483648
      %v2582 = vmul.f32 %v2581, 1.442695
      %v2583 = vpow.pop %v2582
      %v2584 = vadd.f32 %v2583, 1.0
      %v2585 = vrcp.pop %v2584
      %v2586 = vmul.f32 1.0, %v2585
      %v2587 = vmul.f32 %v2579, %v2490
      %v2588 = vadd.f32 %v2572, %v2587
      %v2589 = vtanh.pop %v2588
      %v2590 = vsub.f32 %v2158, %v2589
      %v2591 = vmul.f32 %v2586, %v2590
      %v2592 = vadd.f32 %v2589, %v2591
      %s2593 = sshra.s32 %s2157, 3
      %s2594 = sand.u32 %s2157, 7
      %s2595 = smul.u32 %s2593, 3
      %s2596 = smul.addr %s2595, 8
      %s2597 = scalar_lea.vmem [#allocation5], %s2596
      %v2598 = vld [vmem:[%s2597] sm:$0xff]
      %v2599 = vld [vmem:[%s2597 + $0x8] sm:$0xff]
      %v2600 = vld [vmem:[%s2597 + $0x10] sm:$0xff]
      %v2601 = vadd.f32 %v2598, %v2492
      %v2602 = vxor.u32 %v2601, 2147483648
      %v2603 = vmul.f32 %v2602, 1.442695
      %v2604 = vpow.pop %v2603
      %v2605 = vadd.f32 %v2604, 1.0
      %v2606 = vrcp.pop %v2605
      %v2607 = vmul.f32 1.0, %v2606
      %v2608 = vadd.f32 %v2599, %v2561
      %v2609 = vxor.u32 %v2608, 2147483648
      %v2610 = vmul.f32 %v2609, 1.442695
      %v2611 = vpow.pop %v2610
      %v2612 = vadd.f32 %v2611, 1.0
      %v2613 = vrcp.pop %v2612
      %v2614 = vmul.f32 1.0, %v2613
      %v2615 = vmul.f32 %v2607, %v2563
      %v2616 = vadd.f32 %v2600, %v2615
      %v2617 = vtanh.pop %v2616
      %v2618 = vsub.f32 %v2159, %v2617
      %v2619 = vmul.f32 %v2614, %v2618
      %v2620 = vadd.f32 %v2617, %v2619
      %2621 = vst [vmem:[#allocation2] sm:$0xff] %v2592
      %2622 = vst [vmem:[#allocation3] sm:$0xff] %v2620
      %s2623 = scalar_lea.vmem [#allocation9], %s2155
      %2624 = vst [vmem:[%s2623] sm:$0xff] %v2592
      %s2625 = scalar_lea.vmem [#allocation10], %s2157
      %2626 = vst [vmem:[%s2625] sm:$0xff] %v2620
    $region46: #{tpu_custom_call.1} parent=1 // loop_footer
      %s734 = sadd.s32 1, %s730
    $region47: #{tpu_custom_call.1} parent=1 // loop_footer_branch
      %729 = sbr.rel target = $region43
    $region48: #{tpu_custom_call.1} parent=1 // loop_exit
      _
    // Predicated region
    $region49: #{tpu_custom_call.1} parent=1 // pred_check
      _
    $region50: #{tpu_custom_call.1} parent=1 // pred_check_branch
      %2628 = sbr.rel (0) target = $region52
    $region51: #{tpu_custom_call.1} parent=1 // pred_region
      %s2630 = ssub.s32 1024, 1024
      %2631 = vsyncadd [#allocation8], %s2630
      %s2632 = sshll.u32 [#allocation9], 4
      %s2633 = int_to_ptr.vmem [resolvable:$true] %s2632
      %2638 = dma.vmem_to_hbm [thread:$0]  %s2633, 1024, %s8, [#allocation8], 128, 128, 8
    $region52: #{tpu_custom_call.1} parent=1 // pred_fallthru
      _
    // Predicated region
    $region53: #{tpu_custom_call.1} parent=1 // pred_check
      _
    $region54: #{tpu_custom_call.1} parent=1 // pred_check_branch
      %2640 = sbr.rel (0) target = $region56
    $region55: #{tpu_custom_call.1} parent=1 // pred_region
      %s2641 = ssub.s32 0, 0
      %s2642 = smul.u32 8, %s2641
      %s2644 = ssub.s32 1024, 1024
      %2645 = vsyncadd [#allocation11], %s2644
      %s2646 = smul.addr %s2642, 128
      %s2647 = scalar_lea.hbm %s9, %s2646
      %s2648 = sshll.u32 [#allocation10], 4
      %s2649 = int_to_ptr.vmem [resolvable:$true] %s2648
      %2654 = dma.vmem_to_hbm [thread:$0]  %s2649, 1024, %s2647, [#allocation11], 128, 128, 8
    $region56: #{tpu_custom_call.1} parent=1 // pred_fallthru
      _
    // Predicated region
    $region57: #{tpu_custom_call.1} parent=1 // pred_check
      _
    $region58: #{tpu_custom_call.1} parent=1 // pred_check_branch
      %2656 = sbr.rel (0) target = $region60
    $region59: #{tpu_custom_call.1} parent=1 // pred_region
      %2657 = dma.done [#allocation8], 1024
    $region60: #{tpu_custom_call.1} parent=1 // pred_fallthru
      _
    // Predicated region
    $region61: #{tpu_custom_call.1} parent=1 // pred_check
      _
    $region62: #{tpu_custom_call.1} parent=1 // pred_check_branch
      %2659 = sbr.rel (0) target = $region64
    $region63: #{tpu_custom_call.1} parent=1 // pred_region
      %2660 = dma.done [#allocation11], 1024
    $region64: #{tpu_custom_call.1} parent=1 // pred_fallthru
      _
    %2661 = vsyncpa [#allocation7], 1
    %2662 = vsyncpa [#allocation8], 1
    %2663 = vsyncpa [#allocation11], 1

</llo_original>
